<compile_context>
chip_gen: v7x
topology: tpu7x:2x2x1
jax: 0.10.0
libtpu: 0.0.40
codegen_flags: <defaults>
</compile_context>

<pallas_src>
import jax
import jax.numpy as jnp
from jax.experimental import pallas as pl
from jax.experimental.pallas import tpu as pltpu  # noqa: F401  (TPU backend)

N_NODES = 10
N_EDGES = 20
IN_FEATS = 16
HID_FEATS = 16
OUT_FEATS = 5
N_HEADS = 8
HEAD_FEATS = HID_FEATS // N_HEADS          # 2
NUM_LAYERS = 4
REL_NAMES = ("rel1", "rel2", "rel3")
N_RELS = len(REL_NAMES)
CAT_FEATS = HID_FEATS * N_RELS             # 48
LANE = 128                                 # lane-tile width for packed weight blocks
LEAKY_GAT = 0.2                            # LeakyReLU inside SparseGATConv
LEAKY_OUT = 0.01                           # F.leaky_relu default slope
BN_EPS = 1e-5


# ---------------------------------------------------------------------------
# Fused full-model kernel.  Whole arrays are VMEM-resident (no grid).
#   x_ref   : (10, 16)          raw node features
#   adj_ref : (10, 10, 48)      dense edge counts; lane c belongs to relation c//16
#   w_ref   : (5, 48, 384)      packed weights:
#               slots 0..3  -> per-layer [W_cat|0 , W@a_l|0 , W@a_r|0] (128-lane blocks)
#               slot  4     -> MLP weights at disjoint row/lane windows:
#                               [0:16, 0:16]    ew1 (BN folded)
#                               [16:32, 0:48]   ew2 tiled x3  (-> emb48 directly)
#                               [0:48, 128:144] dw1 (BN folded)
#                               [0:16, 256:261] dw2
#   o_ref   : (10, 5)           logits
# ---------------------------------------------------------------------------
def _rgcn4_kernel(x_ref, adj_ref, w_ref, o_ref):
    f32 = jnp.float32

    wm = w_ref[NUM_LAYERS]                       # (48, 384) MLP weight slot
    ew1 = wm[0:IN_FEATS, 0:HID_FEATS]            # (16, 16)
    ew2_48 = wm[IN_FEATS:2 * IN_FEATS, 0:CAT_FEATS]           # (16, 48)
    dw1 = wm[0:CAT_FEATS, LANE:LANE + HID_FEATS]              # (48, 16)
    dw2 = wm[0:HID_FEATS, 2 * LANE:2 * LANE + OUT_FEATS]      # (16, 5)

    # ---- embed MLP2 (Dropout = identity in eval; eval-BN folded into ew1) ----
    t = jnp.maximum(jnp.dot(x_ref[...], ew1, preferred_element_type=f32), 0.0)
    emb48 = jnp.dot(t, ew2_48, preferred_element_type=f32)    # (10, 48) = [emb|emb|emb]

    adj48 = adj_ref[...]                                      # (Ns, Nt, 48) edge counts

    h = emb48
    for layer in range(NUM_LAYERS):              # static unroll; all layers uniform
        # Single MXU call per layer: projected feats + both attention scores.
        proj = jnp.dot(h, w_ref[layer], preferred_element_type=f32)   # (10, 384)
        h_all = proj[:, 0:CAT_FEATS]                     # (10, 48) projected src feats
        el = proj[:, LANE:LANE + CAT_FEATS]              # per-(rel,head) src scores
        er = proj[:, 2 * LANE:2 * LANE + CAT_FEATS]      # per-(rel,head) trg scores

        s = el[:, None, :] + er[None, :, :]              # (Ns, Nt, 48)
        s = jnp.where(s > 0.0, s, LEAKY_GAT * s)         # LeakyReLU(0.2)

        # Per-target max shift (unmasked: scores are O(1), no f32 exp underflow;
        # non-edges are zeroed by adj48 below).  Reference uses a single global
        # shift -- identical up to the +1e-16 epsilon.
        m = jnp.max(s, axis=0)                           # (Nt, 48)
        e_w = adj48 * jnp.exp(s - m[None, :, :])         # edge-count-weighted exp scores
        den = jnp.sum(e_w, axis=0) + 1e-16               # (Nt, 48) softmax denom
        num = jnp.sum(e_w * h_all[:, None, :], axis=0)   # (Nt, 48) weighted aggregation
        out = num * pl.reciprocal(den, approx=True)      # divide on the EUP slot

        # leaky_relu(cat(rel outputs)) + tiled embedding residual, fused.
        h = jnp.where(out > 0.0, out, LEAKY_OUT * out) + emb48

    # ---- decision MLP (eval-BN folded into dw1) ----
    d = jnp.maximum(jnp.dot(h, dw1, preferred_element_type=f32), 0.0)
    o_ref[...] = jnp.dot(d, dw2, preferred_element_type=f32)


# ---------------------------------------------------------------------------
# One-time host-side parameter folding / packing (NOT on the per-call path).
# ---------------------------------------------------------------------------
def _fold_attn(w, a):
    """Fold a per-head attention vector into the projection so that (h @ result)
    gives the per-(head) score replicated across that head's feature lanes.
      w: (in_dim, H*F), a: (H, F)  ->  (in_dim, H*F)"""
    in_dim = w.shape[0]
    wh = w.reshape(in_dim, N_HEADS, HEAD_FEATS)
    s = jnp.einsum("ihf,hf->ih", wh, a)                   # (in_dim, H)
    return jnp.repeat(s, HEAD_FEATS, axis=1)              # (in_dim, H*F)


def prepare_operands(adjs, params):
    """Call ONCE per (adjs, params).  Returns (adj48, w_blob) reused every forward."""
    bn_scale = 1.0 / (1.0 + BN_EPS) ** 0.5                # eval BatchNorm1d, folded

    ew1 = params["embed"]["w1"] * bn_scale                               # (16, 16)
    ew2_48 = jnp.tile(params["embed"]["w2"], (1, N_RELS))                # (16, 48)
    dw1 = params["decision"]["w1"] * bn_scale                            # (48, 16)
    dw2 = params["decision"]["w2"]                                       # (16, 5)

    def pack_layer(layer, in_dim):
        wc, wl, wr = [], [], []
        for rel in REL_NAMES:
            p = layer[rel]
            wc.append(p["w"])
            wl.append(_fold_attn(p["w"], p["al"]))
            wr.append(_fold_attn(p["w"], p["ar"]))

        def pad(ws):
            w = jnp.concatenate(ws, axis=1)                              # (in_dim, 48)
            # zero-pad rows to 48 (layer 0: emb48 @ pad == emb @ w) and lanes to 128
            return jnp.pad(w, ((0, CAT_FEATS - in_dim), (0, LANE - CAT_FEATS)))

        return jnp.concatenate([pad(wc), pad(wl), pad(wr)], axis=1)      # (48, 384)

    layer_blocks = [
        pack_layer(params["gnn"][l], HID_FEATS if l == 0 else CAT_FEATS)
        for l in range(NUM_LAYERS)
    ]

    mlp_block = jnp.zeros((CAT_FEATS, 3 * LANE), jnp.float32)
    mlp_block = mlp_block.at[0:IN_FEATS, 0:HID_FEATS].set(ew1)
    mlp_block = mlp_block.at[IN_FEATS:2 * IN_FEATS, 0:CAT_FEATS].set(ew2_48)
    mlp_block = mlp_block.at[0:CAT_FEATS, LANE:LANE + HID_FEATS].set(dw1)
    mlp_block = mlp_block.at[0:HID_FEATS, 2 * LANE:2 * LANE + OUT_FEATS].set(dw2)

    w_blob = jnp.stack(layer_blocks + [mlp_block])                       # (5, 48, 384)

    adj48 = jnp.concatenate(
        [jnp.broadcast_to(adjs[rel][:, :, None], (N_NODES, N_NODES, HID_FEATS))
         for rel in REL_NAMES], axis=-1).astype(jnp.float32)             # (10, 10, 48)

    return adj48, w_blob


def make_rgcn4_forward(adjs, params):
    """Fold/pack once; return a jitted forward(inputs) -> (10, 5) logits."""
    adj48, w_blob = prepare_operands(adjs, params)

    @jax.jit
    def forward(inputs):
        return pl.pallas_call(
            _rgcn4_kernel,
            out_shape=jax.ShapeDtypeStruct((N_NODES, OUT_FEATS), jnp.float32),
        )(inputs, adj48, w_blob)

    return forward


# ---------------------------------------------------------------------------
# Deterministic example parameters (xavier-uniform, matching the torch init).
# ---------------------------------------------------------------------------
def init_params(key):
    keys = iter(jax.random.split(key, 64))

    def xavier(shape, fan_in, fan_out):
        bound = (6.0 / (fan_in + fan_out)) ** 0.5
        return jax.random.uniform(next(keys), shape, jnp.float32, -bound, bound)

    params = {
        "embed": {"w1": xavier((IN_FEATS, HID_FEATS), IN_FEATS, HID_FEATS),
                  "w2": xavier((HID_FEATS, HID_FEATS), HID_FEATS, HID_FEATS)},
        "decision": {"w1": xavier((CAT_FEATS, HID_FEATS), CAT_FEATS, HID_FEATS),
                     "w2": xavier((HID_FEATS, OUT_FEATS), HID_FEATS, OUT_FEATS)},
        "gnn": [],
    }
    for layer_idx in range(NUM_LAYERS):
        in_dim = HID_FEATS if layer_idx == 0 else CAT_FEATS
        layer = {}
        for rel in REL_NAMES:
            layer[rel] = {
                "w": xavier((in_dim, HID_FEATS), in_dim, HID_FEATS),
                "al": xavier((N_HEADS, HEAD_FEATS), N_HEADS * HEAD_FEATS, HEAD_FEATS),
                "ar": xavier((N_HEADS, HEAD_FEATS), N_HEADS * HEAD_FEATS, HEAD_FEATS),
            }
        params["gnn"].append(layer)
    return params


if __name__ == "__main__":
    key = jax.random.PRNGKey(0)
    k_adj, k_x, k_p = jax.random.split(key, 3)

    # Dense edge-count adjacency matrices (equivalent to the COO tensors, with
    # duplicate random edges accumulating as counts).
    adjs = {}
    for rel, kr in zip(REL_NAMES, jax.random.split(k_adj, N_RELS)):
        idx = jax.random.randint(kr, (2, N_EDGES), 0, N_NODES)
        adjs[rel] = jnp.zeros((N_NODES, N_NODES), jnp.float32).at[idx[0], idx[1]].add(1.0)

    inputs = jax.random.normal(k_x, (N_NODES, IN_FEATS), jnp.float32)
    params = init_params(k_p)

    forward = make_rgcn4_forward(adjs, params)   # one-time folding/packing + jit
    out = jax.block_until_ready(forward(inputs))

    assert out.shape == (N_NODES, OUT_FEATS)
    assert bool(jnp.all(jnp.isfinite(out)))
    print("KERNEL_OK")
</pallas_src>

<mosaic_0001>
module attributes {stable_mosaic.version = 11 : i64} {
  func.func @_rgcn4_kernel(%arg0: memref<10x16xf32, #tpu.memory_space<vmem>>, %arg1: memref<10x10x48xf32, #tpu.memory_space<vmem>>, %arg2: memref<5x48x384xf32, #tpu.memory_space<vmem>>, %arg3: memref<10x5xf32, #tpu.memory_space<vmem>>) attributes {dimension_semantics = [], scalar_prefetch = 0 : i64, scratch_operands = 0 : i64, tpu.core_type = #tpu.core_type<tc>} {
    %c4 = arith.constant 4 : index
    %c0 = arith.constant 0 : index
    %c0_0 = arith.constant 0 : index
    %0 = vector.load %arg2[%c4, %c0, %c0_0] : memref<5x48x384xf32, #tpu.memory_space<vmem>>, vector<1x48x384xf32>
    %1 = vector.shape_cast %0 : vector<1x48x384xf32> to vector<48x384xf32>
    %2 = vector.extract_strided_slice %1 {offsets = [0, 0], sizes = [16, 16], strides = [1, 1]} : vector<48x384xf32> to vector<16x16xf32>
    %3 = vector.extract_strided_slice %1 {offsets = [16, 0], sizes = [16, 48], strides = [1, 1]} : vector<48x384xf32> to vector<16x48xf32>
    %4 = vector.extract_strided_slice %1 {offsets = [0, 128], sizes = [48, 16], strides = [1, 1]} : vector<48x384xf32> to vector<48x16xf32>
    %5 = vector.extract_strided_slice %1 {offsets = [0, 256], sizes = [16, 5], strides = [1, 1]} : vector<48x384xf32> to vector<16x5xf32>
    %c0_1 = arith.constant 0 : index
    %c0_2 = arith.constant 0 : index
    %6 = vector.load %arg0[%c0_1, %c0_2] : memref<10x16xf32, #tpu.memory_space<vmem>>, vector<10x16xf32>
    %cst = arith.constant dense<0.000000e+00> : vector<10x16xf32>
    %7 = tpu.matmul %6, %2, %cst {dimension_numbers = #tpu.dot_dimension_numbers<[1], [0], [0], [1], [0, 0, 1, 1], [], []>} : vector<10x16xf32>, vector<16x16xf32>, vector<10x16xf32> -> vector<10x16xf32>
    %cst_3 = arith.constant 0.000000e+00 : f32
    %8 = vector.broadcast %cst_3 : f32 to vector<10x16xf32>
    %9 = arith.maximumf %7, %8 : vector<10x16xf32>
    %cst_4 = arith.constant dense<0.000000e+00> : vector<10x48xf32>
    %10 = tpu.matmul %9, %3, %cst_4 {dimension_numbers = #tpu.dot_dimension_numbers<[1], [0], [0], [1], [0, 0, 1, 1], [], []>} : vector<10x16xf32>, vector<16x48xf32>, vector<10x48xf32> -> vector<10x48xf32>
    %c0_5 = arith.constant 0 : index
    %c0_6 = arith.constant 0 : index
    %c0_7 = arith.constant 0 : index
    %11 = vector.load %arg1[%c0_5, %c0_6, %c0_7] : memref<10x10x48xf32, #tpu.memory_space<vmem>>, vector<10x10x48xf32>
    %c0_8 = arith.constant 0 : index
    %c0_9 = arith.constant 0 : index
    %c0_10 = arith.constant 0 : index
    %12 = vector.load %arg2[%c0_8, %c0_9, %c0_10] : memref<5x48x384xf32, #tpu.memory_space<vmem>>, vector<1x48x384xf32>
    %13 = vector.shape_cast %12 : vector<1x48x384xf32> to vector<48x384xf32>
    %cst_11 = arith.constant dense<0.000000e+00> : vector<10x384xf32>
    %14 = tpu.matmul %10, %13, %cst_11 {dimension_numbers = #tpu.dot_dimension_numbers<[1], [0], [0], [1], [0, 0, 1, 1], [], []>} : vector<10x48xf32>, vector<48x384xf32>, vector<10x384xf32> -> vector<10x384xf32>
    %15 = vector.extract_strided_slice %14 {offsets = [0, 0], sizes = [10, 48], strides = [1, 1]} : vector<10x384xf32> to vector<10x48xf32>
    %16 = vector.extract_strided_slice %14 {offsets = [0, 128], sizes = [10, 48], strides = [1, 1]} : vector<10x384xf32> to vector<10x48xf32>
    %17 = vector.extract_strided_slice %14 {offsets = [0, 256], sizes = [10, 48], strides = [1, 1]} : vector<10x384xf32> to vector<10x48xf32>
    %18 = vector.shape_cast %16 : vector<10x48xf32> to vector<10x1x48xf32>
    %19 = vector.shape_cast %17 : vector<10x48xf32> to vector<1x10x48xf32>
    %20 = vector.broadcast %18 : vector<10x1x48xf32> to vector<10x10x48xf32>
    %21 = vector.broadcast %19 : vector<1x10x48xf32> to vector<10x10x48xf32>
    %22 = arith.addf %20, %21 : vector<10x10x48xf32>
    %cst_12 = arith.constant 0.000000e+00 : f32
    %23 = vector.broadcast %cst_12 : f32 to vector<10x10x48xf32>
    %24 = arith.cmpf ogt, %22, %23 : vector<10x10x48xf32>
    %cst_13 = arith.constant 2.000000e-01 : f32
    %25 = vector.broadcast %cst_13 : f32 to vector<10x10x48xf32>
    %26 = arith.mulf %25, %22 : vector<10x10x48xf32>
    %27 = arith.select %24, %22, %26 : vector<10x10x48xi1>, vector<10x10x48xf32>
    %cst_14 = arith.constant dense<0xFF800000> : vector<10x48xf32>
    %28 = vector.multi_reduction <maximumf>, %27, %cst_14 [0] : vector<10x10x48xf32> to vector<10x48xf32>
    %29 = vector.shape_cast %28 : vector<10x48xf32> to vector<1x10x48xf32>
    %30 = vector.broadcast %29 : vector<1x10x48xf32> to vector<10x10x48xf32>
    %31 = arith.subf %27, %30 : vector<10x10x48xf32>
    %32 = math.exp %31 : vector<10x10x48xf32>
    %33 = arith.mulf %11, %32 : vector<10x10x48xf32>
    %cst_15 = arith.constant dense<0.000000e+00> : vector<10x48xf32>
    %34 = vector.multi_reduction <add>, %33, %cst_15 [0] : vector<10x10x48xf32> to vector<10x48xf32>
    %cst_16 = arith.constant 1.000000e-16 : f32
    %35 = vector.broadcast %cst_16 : f32 to vector<10x48xf32>
    %36 = arith.addf %34, %35 : vector<10x48xf32>
    %37 = vector.shape_cast %15 : vector<10x48xf32> to vector<10x1x48xf32>
    %38 = vector.broadcast %37 : vector<10x1x48xf32> to vector<10x10x48xf32>
    %39 = arith.mulf %33, %38 : vector<10x10x48xf32>
    %cst_17 = arith.constant dense<0.000000e+00> : vector<10x48xf32>
    %40 = vector.multi_reduction <add>, %39, %cst_17 [0] : vector<10x10x48xf32> to vector<10x48xf32>
    %41 = tpu.reciprocal %36 {approx = true} : vector<10x48xf32> -> vector<10x48xf32>
    %42 = arith.mulf %40, %41 : vector<10x48xf32>
    %cst_18 = arith.constant 0.000000e+00 : f32
    %43 = vector.broadcast %cst_18 : f32 to vector<10x48xf32>
    %44 = arith.cmpf ogt, %42, %43 : vector<10x48xf32>
    %cst_19 = arith.constant 0.00999999977 : f32
    %45 = vector.broadcast %cst_19 : f32 to vector<10x48xf32>
    %46 = arith.mulf %45, %42 : vector<10x48xf32>
    %47 = arith.select %44, %42, %46 : vector<10x48xi1>, vector<10x48xf32>
    %48 = arith.addf %47, %10 : vector<10x48xf32>
    %c1 = arith.constant 1 : index
    %c0_20 = arith.constant 0 : index
    %c0_21 = arith.constant 0 : index
    %49 = vector.load %arg2[%c1, %c0_20, %c0_21] : memref<5x48x384xf32, #tpu.memory_space<vmem>>, vector<1x48x384xf32>
    %50 = vector.shape_cast %49 : vector<1x48x384xf32> to vector<48x384xf32>
    %cst_22 = arith.constant dense<0.000000e+00> : vector<10x384xf32>
    %51 = tpu.matmul %48, %50, %cst_22 {dimension_numbers = #tpu.dot_dimension_numbers<[1], [0], [0], [1], [0, 0, 1, 1], [], []>} : vector<10x48xf32>, vector<48x384xf32>, vector<10x384xf32> -> vector<10x384xf32>
    %52 = vector.extract_strided_slice %51 {offsets = [0, 0], sizes = [10, 48], strides = [1, 1]} : vector<10x384xf32> to vector<10x48xf32>
    %53 = vector.extract_strided_slice %51 {offsets = [0, 128], sizes = [10, 48], strides = [1, 1]} : vector<10x384xf32> to vector<10x48xf32>
    %54 = vector.extract_strided_slice %51 {offsets = [0, 256], sizes = [10, 48], strides = [1, 1]} : vector<10x384xf32> to vector<10x48xf32>
    %55 = vector.shape_cast %53 : vector<10x48xf32> to vector<10x1x48xf32>
    %56 = vector.shape_cast %54 : vector<10x48xf32> to vector<1x10x48xf32>
    %57 = vector.broadcast %55 : vector<10x1x48xf32> to vector<10x10x48xf32>
    %58 = vector.broadcast %56 : vector<1x10x48xf32> to vector<10x10x48xf32>
    %59 = arith.addf %57, %58 : vector<10x10x48xf32>
    %cst_23 = arith.constant 0.000000e+00 : f32
    %60 = vector.broadcast %cst_23 : f32 to vector<10x10x48xf32>
    %61 = arith.cmpf ogt, %59, %60 : vector<10x10x48xf32>
    %cst_24 = arith.constant 2.000000e-01 : f32
    %62 = vector.broadcast %cst_24 : f32 to vector<10x10x48xf32>
    %63 = arith.mulf %62, %59 : vector<10x10x48xf32>
    %64 = arith.select %61, %59, %63 : vector<10x10x48xi1>, vector<10x10x48xf32>
    %cst_25 = arith.constant dense<0xFF800000> : vector<10x48xf32>
    %65 = vector.multi_reduction <maximumf>, %64, %cst_25 [0] : vector<10x10x48xf32> to vector<10x48xf32>
    %66 = vector.shape_cast %65 : vector<10x48xf32> to vector<1x10x48xf32>
    %67 = vector.broadcast %66 : vector<1x10x48xf32> to vector<10x10x48xf32>
    %68 = arith.subf %64, %67 : vector<10x10x48xf32>
    %69 = math.exp %68 : vector<10x10x48xf32>
    %70 = arith.mulf %11, %69 : vector<10x10x48xf32>
    %cst_26 = arith.constant dense<0.000000e+00> : vector<10x48xf32>
    %71 = vector.multi_reduction <add>, %70, %cst_26 [0] : vector<10x10x48xf32> to vector<10x48xf32>
    %cst_27 = arith.constant 1.000000e-16 : f32
    %72 = vector.broadcast %cst_27 : f32 to vector<10x48xf32>
    %73 = arith.addf %71, %72 : vector<10x48xf32>
    %74 = vector.shape_cast %52 : vector<10x48xf32> to vector<10x1x48xf32>
    %75 = vector.broadcast %74 : vector<10x1x48xf32> to vector<10x10x48xf32>
    %76 = arith.mulf %70, %75 : vector<10x10x48xf32>
    %cst_28 = arith.constant dense<0.000000e+00> : vector<10x48xf32>
    %77 = vector.multi_reduction <add>, %76, %cst_28 [0] : vector<10x10x48xf32> to vector<10x48xf32>
    %78 = tpu.reciprocal %73 {approx = true} : vector<10x48xf32> -> vector<10x48xf32>
    %79 = arith.mulf %77, %78 : vector<10x48xf32>
    %cst_29 = arith.constant 0.000000e+00 : f32
    %80 = vector.broadcast %cst_29 : f32 to vector<10x48xf32>
    %81 = arith.cmpf ogt, %79, %80 : vector<10x48xf32>
    %cst_30 = arith.constant 0.00999999977 : f32
    %82 = vector.broadcast %cst_30 : f32 to vector<10x48xf32>
    %83 = arith.mulf %82, %79 : vector<10x48xf32>
    %84 = arith.select %81, %79, %83 : vector<10x48xi1>, vector<10x48xf32>
    %85 = arith.addf %84, %10 : vector<10x48xf32>
    %c2 = arith.constant 2 : index
    %c0_31 = arith.constant 0 : index
    %c0_32 = arith.constant 0 : index
    %86 = vector.load %arg2[%c2, %c0_31, %c0_32] : memref<5x48x384xf32, #tpu.memory_space<vmem>>, vector<1x48x384xf32>
    %87 = vector.shape_cast %86 : vector<1x48x384xf32> to vector<48x384xf32>
    %cst_33 = arith.constant dense<0.000000e+00> : vector<10x384xf32>
    %88 = tpu.matmul %85, %87, %cst_33 {dimension_numbers = #tpu.dot_dimension_numbers<[1], [0], [0], [1], [0, 0, 1, 1], [], []>} : vector<10x48xf32>, vector<48x384xf32>, vector<10x384xf32> -> vector<10x384xf32>
    %89 = vector.extract_strided_slice %88 {offsets = [0, 0], sizes = [10, 48], strides = [1, 1]} : vector<10x384xf32> to vector<10x48xf32>
    %90 = vector.extract_strided_slice %88 {offsets = [0, 128], sizes = [10, 48], strides = [1, 1]} : vector<10x384xf32> to vector<10x48xf32>
    %91 = vector.extract_strided_slice %88 {offsets = [0, 256], sizes = [10, 48], strides = [1, 1]} : vector<10x384xf32> to vector<10x48xf32>
    %92 = vector.shape_cast %90 : vector<10x48xf32> to vector<10x1x48xf32>
    %93 = vector.shape_cast %91 : vector<10x48xf32> to vector<1x10x48xf32>
    %94 = vector.broadcast %92 : vector<10x1x48xf32> to vector<10x10x48xf32>
    %95 = vector.broadcast %93 : vector<1x10x48xf32> to vector<10x10x48xf32>
    %96 = arith.addf %94, %95 : vector<10x10x48xf32>
    %cst_34 = arith.constant 0.000000e+00 : f32
    %97 = vector.broadcast %cst_34 : f32 to vector<10x10x48xf32>
    %98 = arith.cmpf ogt, %96, %97 : vector<10x10x48xf32>
    %cst_35 = arith.constant 2.000000e-01 : f32
    %99 = vector.broadcast %cst_35 : f32 to vector<10x10x48xf32>
    %100 = arith.mulf %99, %96 : vector<10x10x48xf32>
    %101 = arith.select %98, %96, %100 : vector<10x10x48xi1>, vector<10x10x48xf32>
    %cst_36 = arith.constant dense<0xFF800000> : vector<10x48xf32>
    %102 = vector.multi_reduction <maximumf>, %101, %cst_36 [0] : vector<10x10x48xf32> to vector<10x48xf32>
    %103 = vector.shape_cast %102 : vector<10x48xf32> to vector<1x10x48xf32>
    %104 = vector.broadcast %103 : vector<1x10x48xf32> to vector<10x10x48xf32>
    %105 = arith.subf %101, %104 : vector<10x10x48xf32>
    %106 = math.exp %105 : vector<10x10x48xf32>
    %107 = arith.mulf %11, %106 : vector<10x10x48xf32>
    %cst_37 = arith.constant dense<0.000000e+00> : vector<10x48xf32>
    %108 = vector.multi_reduction <add>, %107, %cst_37 [0] : vector<10x10x48xf32> to vector<10x48xf32>
    %cst_38 = arith.constant 1.000000e-16 : f32
    %109 = vector.broadcast %cst_38 : f32 to vector<10x48xf32>
    %110 = arith.addf %108, %109 : vector<10x48xf32>
    %111 = vector.shape_cast %89 : vector<10x48xf32> to vector<10x1x48xf32>
    %112 = vector.broadcast %111 : vector<10x1x48xf32> to vector<10x10x48xf32>
    %113 = arith.mulf %107, %112 : vector<10x10x48xf32>
    %cst_39 = arith.constant dense<0.000000e+00> : vector<10x48xf32>
    %114 = vector.multi_reduction <add>, %113, %cst_39 [0] : vector<10x10x48xf32> to vector<10x48xf32>
    %115 = tpu.reciprocal %110 {approx = true} : vector<10x48xf32> -> vector<10x48xf32>
    %116 = arith.mulf %114, %115 : vector<10x48xf32>
    %cst_40 = arith.constant 0.000000e+00 : f32
    %117 = vector.broadcast %cst_40 : f32 to vector<10x48xf32>
    %118 = arith.cmpf ogt, %116, %117 : vector<10x48xf32>
    %cst_41 = arith.constant 0.00999999977 : f32
    %119 = vector.broadcast %cst_41 : f32 to vector<10x48xf32>
    %120 = arith.mulf %119, %116 : vector<10x48xf32>
    %121 = arith.select %118, %116, %120 : vector<10x48xi1>, vector<10x48xf32>
    %122 = arith.addf %121, %10 : vector<10x48xf32>
    %c3 = arith.constant 3 : index
    %c0_42 = arith.constant 0 : index
    %c0_43 = arith.constant 0 : index
    %123 = vector.load %arg2[%c3, %c0_42, %c0_43] : memref<5x48x384xf32, #tpu.memory_space<vmem>>, vector<1x48x384xf32>
    %124 = vector.shape_cast %123 : vector<1x48x384xf32> to vector<48x384xf32>
    %cst_44 = arith.constant dense<0.000000e+00> : vector<10x384xf32>
    %125 = tpu.matmul %122, %124, %cst_44 {dimension_numbers = #tpu.dot_dimension_numbers<[1], [0], [0], [1], [0, 0, 1, 1], [], []>} : vector<10x48xf32>, vector<48x384xf32>, vector<10x384xf32> -> vector<10x384xf32>
    %126 = vector.extract_strided_slice %125 {offsets = [0, 0], sizes = [10, 48], strides = [1, 1]} : vector<10x384xf32> to vector<10x48xf32>
    %127 = vector.extract_strided_slice %125 {offsets = [0, 128], sizes = [10, 48], strides = [1, 1]} : vector<10x384xf32> to vector<10x48xf32>
    %128 = vector.extract_strided_slice %125 {offsets = [0, 256], sizes = [10, 48], strides = [1, 1]} : vector<10x384xf32> to vector<10x48xf32>
    %129 = vector.shape_cast %127 : vector<10x48xf32> to vector<10x1x48xf32>
    %130 = vector.shape_cast %128 : vector<10x48xf32> to vector<1x10x48xf32>
    %131 = vector.broadcast %129 : vector<10x1x48xf32> to vector<10x10x48xf32>
    %132 = vector.broadcast %130 : vector<1x10x48xf32> to vector<10x10x48xf32>
    %133 = arith.addf %131, %132 : vector<10x10x48xf32>
    %cst_45 = arith.constant 0.000000e+00 : f32
    %134 = vector.broadcast %cst_45 : f32 to vector<10x10x48xf32>
    %135 = arith.cmpf ogt, %133, %134 : vector<10x10x48xf32>
    %cst_46 = arith.constant 2.000000e-01 : f32
    %136 = vector.broadcast %cst_46 : f32 to vector<10x10x48xf32>
    %137 = arith.mulf %136, %133 : vector<10x10x48xf32>
    %138 = arith.select %135, %133, %137 : vector<10x10x48xi1>, vector<10x10x48xf32>
    %cst_47 = arith.constant dense<0xFF800000> : vector<10x48xf32>
    %139 = vector.multi_reduction <maximumf>, %138, %cst_47 [0] : vector<10x10x48xf32> to vector<10x48xf32>
    %140 = vector.shape_cast %139 : vector<10x48xf32> to vector<1x10x48xf32>
    %141 = vector.broadcast %140 : vector<1x10x48xf32> to vector<10x10x48xf32>
    %142 = arith.subf %138, %141 : vector<10x10x48xf32>
    %143 = math.exp %142 : vector<10x10x48xf32>
    %144 = arith.mulf %11, %143 : vector<10x10x48xf32>
    %cst_48 = arith.constant dense<0.000000e+00> : vector<10x48xf32>
    %145 = vector.multi_reduction <add>, %144, %cst_48 [0] : vector<10x10x48xf32> to vector<10x48xf32>
    %cst_49 = arith.constant 1.000000e-16 : f32
    %146 = vector.broadcast %cst_49 : f32 to vector<10x48xf32>
    %147 = arith.addf %145, %146 : vector<10x48xf32>
    %148 = vector.shape_cast %126 : vector<10x48xf32> to vector<10x1x48xf32>
    %149 = vector.broadcast %148 : vector<10x1x48xf32> to vector<10x10x48xf32>
    %150 = arith.mulf %144, %149 : vector<10x10x48xf32>
    %cst_50 = arith.constant dense<0.000000e+00> : vector<10x48xf32>
    %151 = vector.multi_reduction <add>, %150, %cst_50 [0] : vector<10x10x48xf32> to vector<10x48xf32>
    %152 = tpu.reciprocal %147 {approx = true} : vector<10x48xf32> -> vector<10x48xf32>
    %153 = arith.mulf %151, %152 : vector<10x48xf32>
    %cst_51 = arith.constant 0.000000e+00 : f32
    %154 = vector.broadcast %cst_51 : f32 to vector<10x48xf32>
    %155 = arith.cmpf ogt, %153, %154 : vector<10x48xf32>
    %cst_52 = arith.constant 0.00999999977 : f32
    %156 = vector.broadcast %cst_52 : f32 to vector<10x48xf32>
    %157 = arith.mulf %156, %153 : vector<10x48xf32>
    %158 = arith.select %155, %153, %157 : vector<10x48xi1>, vector<10x48xf32>
    %159 = arith.addf %158, %10 : vector<10x48xf32>
    %cst_53 = arith.constant dense<0.000000e+00> : vector<10x16xf32>
    %160 = tpu.matmul %159, %4, %cst_53 {dimension_numbers = #tpu.dot_dimension_numbers<[1], [0], [0], [1], [0, 0, 1, 1], [], []>} : vector<10x48xf32>, vector<48x16xf32>, vector<10x16xf32> -> vector<10x16xf32>
    %cst_54 = arith.constant 0.000000e+00 : f32
    %161 = vector.broadcast %cst_54 : f32 to vector<10x16xf32>
    %162 = arith.maximumf %160, %161 : vector<10x16xf32>
    %cst_55 = arith.constant dense<0.000000e+00> : vector<10x5xf32>
    %163 = tpu.matmul %162, %5, %cst_55 {dimension_numbers = #tpu.dot_dimension_numbers<[1], [0], [0], [1], [0, 0, 1, 1], [], []>} : vector<10x16xf32>, vector<16x5xf32>, vector<10x5xf32> -> vector<10x5xf32>
    %c0_56 = arith.constant 0 : index
    %c0_57 = arith.constant 0 : index
    %164 = vector.load %arg3[%c0_56, %c0_57] : memref<10x5xf32, #tpu.memory_space<vmem>>, vector<10x5xf32>
    tpu.vector_store %arg3[%c0_56, %c0_57], %163 {strides = array<i32>} : memref<10x5xf32, #tpu.memory_space<vmem>>, vector<10x5xf32>,
    return
  }
}

</mosaic_0001>

<llo_original>
// kernel: forward.1
$region0: #{forward.1}
  #allocation0 [shape = 'u32[]', space=smem, size = 0x4, offset = 0x4, fixed_abs, tag = 'smem constant byte address 0x4 - core index']
  #allocation1 [shape = 'u32[144,128]{1,0:T(1,128)}', space=vmem, size = 0x12000, scoped, tag = 'internal scratch']
  %s0 = inlined_call_operand.hbm [shape: f32[10,16], index: 0, kind: input, shape index: {}]
  %s1 = inlined_call_operand.hbm [shape: f32[10,10,48], index: 1, kind: input, shape index: {}]
  %s2 = inlined_call_operand.hbm [shape: f32[5,48,384], index: 2, kind: input, shape index: {}]
  %s3 = inlined_call_operand.vmem [shape: f32[10,5], index: 3, kind: output, shape index: {}]
  %s4 = sld [smem:[#allocation0]]
  $region34: #{forward.1} parent=0
    _
  %s6 = ssub.s32 1, %s4
  %s7 = scalar_select 0, %s6, %s4
  $region1: #{forward.1} parent=0
    #allocation2 [shape = 'u8[8192]{0}', space=vmem, size = 0x2000, scoped, tag = 'input window, operand 0, single buffered']
    #allocation3 [shape = 's32[1]{0}', space=sflag, size = 0x4, scoped, tag = 'scoped memory for forward.1']
    #allocation4 [shape = 'u8[81920]{0}', space=vmem, size = 0x14000, scoped, tag = 'input window, operand 1, single buffered']
    #allocation5 [shape = 's32[1]{0}', space=sflag, size = 0x4, scoped, tag = 'scoped memory for forward.1']
    #allocation6 [shape = 'u8[368640]{0}', space=vmem, size = 0x5a000, scoped, tag = 'input window, operand 2, single buffered']
    %8 = vsyncpa [#allocation3], 0
    %9 = vsyncpa [#allocation5], 0
    // Predicated region
    $region2: #{forward.1} parent=1 // pred_check
      _
    $region3: #{forward.1} parent=1 // pred_check_branch
      %11 = sbr.rel (0) target = $region5
    $region4: #{forward.1} parent=1 // pred_region
      %s13 = ssub.s32 256, 256
      %14 = vsyncadd [#allocation3], %s13
      %s15 = sshll.u32 [#allocation2], 4
      %s16 = int_to_ptr.vmem [resolvable:$true] %s15
      %21 = dma.hbm_to_vmem [thread:$0]  %s0, 256, %s16, [#allocation3], 128, 128, 8
    $region5: #{forward.1} parent=1 // pred_fallthru
      _
    // Predicated region
    $region6: #{forward.1} parent=1 // pred_check
      _
    $region7: #{forward.1} parent=1 // pred_check_branch
      %23 = sbr.rel (0) target = $region9
    $region8: #{forward.1} parent=1 // pred_region
      %s25 = ssub.s32 2560, 2560
      %26 = vsyncadd [#allocation5], %s25
      %s27 = sshll.u32 [#allocation4], 4
      %s28 = int_to_ptr.vmem [resolvable:$true] %s27
      %33 = dma.hbm_to_vmem [thread:$0]  %s1, 2560, %s28, [#allocation5], 128, 128, 8
    $region9: #{forward.1} parent=1 // pred_fallthru
      _
    // Predicated region
    $region10: #{forward.1} parent=1 // pred_check
      _
    $region11: #{forward.1} parent=1 // pred_check_branch
      %35 = sbr.rel (0) target = $region13
    $region12: #{forward.1} parent=1 // pred_region
      %s37 = ssub.s32 11520, 11520
      %38 = vsyncadd [#allocation5], %s37
      %s39 = sshll.u32 [#allocation6], 4
      %s40 = int_to_ptr.vmem [resolvable:$true] %s39
      %45 = dma.hbm_to_vmem [thread:$0]  %s2, 11520, %s40, [#allocation5], 384, 384, 24
    $region13: #{forward.1} parent=1 // pred_fallthru
      _
    // Predicated region
    $region14: #{forward.1} parent=1 // pred_check
      _
    $region15: #{forward.1} parent=1 // pred_check_branch
      %47 = sbr.rel (0) target = $region17
    $region16: #{forward.1} parent=1 // pred_region
      %48 = dma.done [#allocation3], 256
    $region17: #{forward.1} parent=1 // pred_fallthru
      _
    // Predicated region
    $region18: #{forward.1} parent=1 // pred_check
      _
    $region19: #{forward.1} parent=1 // pred_check_branch
      %50 = sbr.rel (0) target = $region21
    $region20: #{forward.1} parent=1 // pred_region
      %51 = dma.done [#allocation5], 2560
    $region21: #{forward.1} parent=1 // pred_fallthru
      _
    // Predicated region
    $region22: #{forward.1} parent=1 // pred_check
      _
    $region23: #{forward.1} parent=1 // pred_check_branch
      %53 = sbr.rel (0) target = $region25
    $region24: #{forward.1} parent=1 // pred_region
      %54 = dma.done [#allocation5], 11520
    $region25: #{forward.1} parent=1 // pred_fallthru
      _
    %s55 = scalar_lea.vmem [#allocation6], 576
    %v56 = vld [vmem:[%s55] sm:$0xff]
    %v57 = vld [vmem:[%s55 + $0x8] sm:$0xff]
    %v58 = vld [vmem:[%s55 + $0x10] sm:$0xff]
    %v59 = vld [vmem:[%s55 + $0x18] sm:$0xff]
    %v60 = vld [vmem:[%s55 + $0x20] sm:$0xff]
    %v61 = vld [vmem:[%s55 + $0x28] sm:$0xff]
    %v62 = vld [vmem:[%s55 + $0x30] sm:$0xff]
    %v63 = vld [vmem:[%s55 + $0x38] sm:$0xff]
    %v64 = vld [vmem:[%s55 + $0x48] sm:$0xff]
    %v65 = vld [vmem:[%s55 + $0x50] sm:$0xff]
    %v66 = vld [vmem:[%s55 + $0x68] sm:$0xff]
    %v67 = vld [vmem:[%s55 + $0x80] sm:$0xff]
    %v68 = vld [vmem:[#allocation2] sm:$0xff]
    %v69 = vld [vmem:[#allocation2 + $0x8] sm:$0x3]
    %vm70 = vcmask 130048
    %v72 = vsel %vm70, %v68, 0
    %v75 = vsel %vm70, %v69, 0
    %77 = vmatprep.subr.mxu0 0.0
    %78 = vmatpush1.msra.mxu0 %v56
    %79 = vmatprep.subr.mxu0 0.0
    %80 = vmatpush1.msra.mxu0 %v59
    %81 = vmatprep.subr.mxu0 0.0
    %82 = vmatpush1.msra.mxu0 0.0
    %83 = vmatprep.subr.mxu0 0.0
    %84 = vmatpush1.msra.mxu0 0.0
    %85 = vmatprep.subr.mxu0 0.0
    %86 = vmatpush1.msra.mxu0 0.0
    %87 = vmatprep.subr.mxu0 0.0
    %88 = vmatpush1.msra.mxu0 0.0
    %89 = vmatprep.subr.mxu0 0.0
    %90 = vmatpush1.msra.mxu0 0.0
    %91 = vmatprep.subr.mxu0 0.0
    %92 = vmatpush1.msra.mxu0 0.0
    %93 = vmatprep.subr.mxu0 0.0
    %94 = vmatpush1.msra.mxu0 0.0
    %95 = vmatprep.subr.mxu0 0.0
    %96 = vmatpush1.msra.mxu0 0.0
    %97 = vmatprep.subr.mxu0 0.0
    %98 = vmatpush1.msra.mxu0 0.0
    %99 = vmatprep.subr.mxu0 0.0
    %100 = vmatpush1.msra.mxu0 0.0
    %101 = vmatprep.subr.mxu0 0.0
    %102 = vmatpush1.msra.mxu0 0.0
    %103 = vmatprep.subr.mxu0 0.0
    %104 = vmatpush1.msra.mxu0 0.0
    %105 = vmatprep.subr.mxu0 0.0
    %106 = vmatpush1.msra.mxu0 0.0
    %107 = vmatprep.subr.mxu0 0.0
    %108 = vmatpush1.msra.mxu0 0.0
    %109 = vmatprep.subr.mxu0 0.0
    %110 = vmatpush1.msra.mxu0 0.0
    %111 = vmatprep.subr.mxu0 0.0
    %112 = vmatpush1.msra.mxu0 0.0
    %113 = vmatprep.subr.mxu0 0.0
    %114 = vmatpush1.msra.mxu0 0.0
    %115 = vmatprep.subr.mxu0 0.0
    %116 = vmatpush1.msra.mxu0 0.0
    %117 = vmatprep.subr.mxu0 0.0
    %118 = vmatpush1.msra.mxu0 0.0
    %119 = vmatprep.subr.mxu0 0.0
    %120 = vmatpush1.msra.mxu0 0.0
    %121 = vmatprep.subr.mxu0 0.0
    %122 = vmatpush1.msra.mxu0 0.0
    %123 = vmatprep.subr.mxu0 0.0
    %124 = vmatpush1.msra.mxu0 0.0
    %125 = vmatprep.subr.mxu0 0.0
    %126 = vmatpush1.msra.mxu0 0.0
    %127 = vmatprep.subr.mxu0 0.0
    %128 = vmatpush1.msra.mxu0 0.0
    %129 = vmatprep.subr.mxu0 0.0
    %130 = vmatpush1.msra.mxu0 0.0
    %131 = vmatprep.subr.mxu0 0.0
    %132 = vmatpush1.msra.mxu0 0.0
    %133 = vmatprep.subr.mxu0 0.0
    %134 = vmatpush1.msra.mxu0 0.0
    %135 = vmatprep.subr.mxu0 0.0
    %136 = vmatpush1.msra.mxu0 0.0
    %137 = vmatprep.subr.mxu0 0.0
    %138 = vmatpush1.msra.mxu0 0.0
    %139 = vmatprep.subr.mxu0 0.0
    %140 = vmatpush1.msra.mxu0 0.0
    %141 = vmatprep.mubr.f32.mxu0 0.0
    %142 = vmatmul.mubr.f32.gmra.mrb[0].mxu0 %v72
    %v143 = vpop.f32.mrb[0].mxu0
    %v144 = vadd.f32 0.0, %v143
    %v145 = vpop.f32.mrb[0].mxu0
    %146 = vmatprep.mubr.f32.mxu0 0.0
    %147 = vmatmul.mubr.f32.gmra.mrb[0].mxu0 %v75
    %v148 = vpop.f32.mrb[0].mxu0
    %v149 = vadd.f32 0.0, %v148
    %v150 = vpop.f32.mrb[0].mxu0
    %151 = vdwg.mxu0
    %v152 = vmax.f32 %v144, 0.0
    %v153 = vmax.f32 %v149, 0.0
    %v155 = vsel %vm70, %v152, 0
    %v158 = vsel %vm70, %v153, 0
    %160 = vmatprep.subr.mxu0 0.0
    %161 = vmatpush1.msra.mxu0 %v62
    %162 = vmatprep.subr.mxu0 0.0
    %163 = vmatpush1.msra.mxu0 %v64
    %164 = vmatprep.subr.mxu0 0.0
    %165 = vmatpush1.msra.mxu0 0.0
    %166 = vmatprep.subr.mxu0 0.0
    %167 = vmatpush1.msra.mxu0 0.0
    %168 = vmatprep.subr.mxu0 0.0
    %169 = vmatpush1.msra.mxu0 0.0
    %170 = vmatprep.subr.mxu0 0.0
    %171 = vmatpush1.msra.mxu0 0.0
    %172 = vmatprep.subr.mxu0 0.0
    %173 = vmatpush1.msra.mxu0 0.0
    %174 = vmatprep.subr.mxu0 0.0
    %175 = vmatpush1.msra.mxu0 0.0
    %176 = vmatprep.subr.mxu0 0.0
    %177 = vmatpush1.msra.mxu0 0.0
    %178 = vmatprep.subr.mxu0 0.0
    %179 = vmatpush1.msra.mxu0 0.0
    %180 = vmatprep.subr.mxu0 0.0
    %181 = vmatpush1.msra.mxu0 0.0
    %182 = vmatprep.subr.mxu0 0.0
    %183 = vmatpush1.msra.mxu0 0.0
    %184 = vmatprep.subr.mxu0 0.0
    %185 = vmatpush1.msra.mxu0 0.0
    %186 = vmatprep.subr.mxu0 0.0
    %187 = vmatpush1.msra.mxu0 0.0
    %188 = vmatprep.subr.mxu0 0.0
    %189 = vmatpush1.msra.mxu0 0.0
    %190 = vmatprep.subr.mxu0 0.0
    %191 = vmatpush1.msra.mxu0 0.0
    %192 = vmatprep.subr.mxu0 0.0
    %193 = vmatpush1.msra.mxu0 0.0
    %194 = vmatprep.subr.mxu0 0.0
    %195 = vmatpush1.msra.mxu0 0.0
    %196 = vmatprep.subr.mxu0 0.0
    %197 = vmatpush1.msra.mxu0 0.0
    %198 = vmatprep.subr.mxu0 0.0
    %199 = vmatpush1.msra.mxu0 0.0
    %200 = vmatprep.subr.mxu0 0.0
    %201 = vmatpush1.msra.mxu0 0.0
    %202 = vmatprep.subr.mxu0 0.0
    %203 = vmatpush1.msra.mxu0 0.0
    %204 = vmatprep.subr.mxu0 0.0
    %205 = vmatpush1.msra.mxu0 0.0
    %206 = vmatprep.subr.mxu0 0.0
    %207 = vmatpush1.msra.mxu0 0.0
    %208 = vmatprep.subr.mxu0 0.0
    %209 = vmatpush1.msra.mxu0 0.0
    %210 = vmatprep.subr.mxu0 0.0
    %211 = vmatpush1.msra.mxu0 0.0
    %212 = vmatprep.subr.mxu0 0.0
    %213 = vmatpush1.msra.mxu0 0.0
    %214 = vmatprep.subr.mxu0 0.0
    %215 = vmatpush1.msra.mxu0 0.0
    %216 = vmatprep.subr.mxu0 0.0
    %217 = vmatpush1.msra.mxu0 0.0
    %218 = vmatprep.subr.mxu0 0.0
    %219 = vmatpush1.msra.mxu0 0.0
    %220 = vmatprep.subr.mxu0 0.0
    %221 = vmatpush1.msra.mxu0 0.0
    %222 = vmatprep.subr.mxu0 0.0
    %223 = vmatpush1.msra.mxu0 0.0
    %224 = vmatprep.mubr.f32.mxu0 0.0
    %225 = vmatmul.mubr.f32.gmra.mrb[0].mxu0 %v155
    %v226 = vpop.f32.mrb[0].mxu0
    %v227 = vadd.f32 0.0, %v226
    %v228 = vpop.f32.mrb[0].mxu0
    %229 = vmatprep.mubr.f32.mxu0 0.0
    %230 = vmatmul.mubr.f32.gmra.mrb[0].mxu0 %v158
    %v231 = vpop.f32.mrb[0].mxu0
    %v232 = vadd.f32 0.0, %v231
    %v233 = vpop.f32.mrb[0].mxu0
    %234 = vdwg.mxu0
    %v235 = vld [vmem:[#allocation4] sm:$0xff]
    %v236 = vld [vmem:[#allocation4 + $0x8] sm:$0x3]
    %v237 = vld [vmem:[#allocation4 + $0x10] sm:$0xff]
    %v238 = vld [vmem:[#allocation4 + $0x18] sm:$0x3]
    %v239 = vld [vmem:[#allocation4 + $0x20] sm:$0xff]
    %v240 = vld [vmem:[#allocation4 + $0x28] sm:$0x3]
    %v241 = vld [vmem:[#allocation4 + $0x30] sm:$0xff]
    %v242 = vld [vmem:[#allocation4 + $0x38] sm:$0x3]
    %v243 = vld [vmem:[#allocation4 + $0x40] sm:$0xff]
    %v244 = vld [vmem:[#allocation4 + $0x48] sm:$0x3]
    %v245 = vld [vmem:[#allocation4 + $0x50] sm:$0xff]
    %v246 = vld [vmem:[#allocation4 + $0x58] sm:$0x3]
    %v247 = vld [vmem:[#allocation4 + $0x60] sm:$0xff]
    %v248 = vld [vmem:[#allocation4 + $0x68] sm:$0x3]
    %v249 = vld [vmem:[#allocation4 + $0x70] sm:$0xff]
    %v250 = vld [vmem:[#allocation4 + $0x78] sm:$0x3]
    %v251 = vld [vmem:[#allocation4 + $0x80] sm:$0xff]
    %v252 = vld [vmem:[#allocation4 + $0x88] sm:$0x3]
    %v253 = vld [vmem:[#allocation4 + $0x90] sm:$0xff]
    %v254 = vld [vmem:[#allocation4 + $0x98] sm:$0x3]
    %v255 = vld [vmem:[#allocation6] sm:$0xff]
    %v256 = vld [vmem:[#allocation6 + $0x8] sm:$0xff]
    %v257 = vld [vmem:[#allocation6 + $0x10] sm:$0xff]
    %v258 = vld [vmem:[#allocation6 + $0x18] sm:$0xff]
    %v259 = vld [vmem:[#allocation6 + $0x20] sm:$0xff]
    %v260 = vld [vmem:[#allocation6 + $0x28] sm:$0xff]
    %v261 = vld [vmem:[#allocation6 + $0x30] sm:$0xff]
    %v262 = vld [vmem:[#allocation6 + $0x38] sm:$0xff]
    %v263 = vld [vmem:[#allocation6 + $0x40] sm:$0xff]
    %v264 = vld [vmem:[#allocation6 + $0x48] sm:$0xff]
    %v265 = vld [vmem:[#allocation6 + $0x50] sm:$0xff]
    %v266 = vld [vmem:[#allocation6 + $0x58] sm:$0xff]
    %v267 = vld [vmem:[#allocation6 + $0x60] sm:$0xff]
    %v268 = vld [vmem:[#allocation6 + $0x68] sm:$0xff]
    %v269 = vld [vmem:[#allocation6 + $0x70] sm:$0xff]
    %v270 = vld [vmem:[#allocation6 + $0x78] sm:$0xff]
    %v271 = vld [vmem:[#allocation6 + $0x80] sm:$0xff]
    %v272 = vld [vmem:[#allocation6 + $0x88] sm:$0xff]
    %vm273 = vcmask 392192
    %v275 = vsel %vm273, %v227, 0
    %v278 = vsel %vm273, %v232, 0
    %280 = vmatprep.subr.mxu0 %v256
    %281 = vmatpush1.msra.mxu0 %v255
    %282 = vmatprep.subr.mxu0 %v259
    %283 = vmatpush1.msra.mxu0 %v258
    %284 = vmatprep.subr.mxu0 %v262
    %285 = vmatpush1.msra.mxu0 %v261
    %286 = vmatprep.subr.mxu0 %v265
    %287 = vmatpush1.msra.mxu0 %v264
    %288 = vmatprep.subr.mxu0 %v268
    %289 = vmatpush1.msra.mxu0 %v267
    %290 = vmatprep.subr.mxu0 %v271
    %291 = vmatpush1.msra.mxu0 %v270
    %292 = vmatprep.subr.mxu0 0.0
    %293 = vmatpush1.msra.mxu0 0.0
    %294 = vmatprep.subr.mxu0 0.0
    %295 = vmatpush1.msra.mxu0 0.0
    %296 = vmatprep.subr.mxu0 0.0
    %297 = vmatpush1.msra.mxu0 0.0
    %298 = vmatprep.subr.mxu0 0.0
    %299 = vmatpush1.msra.mxu0 0.0
    %300 = vmatprep.subr.mxu0 0.0
    %301 = vmatpush1.msra.mxu0 0.0
    %302 = vmatprep.subr.mxu0 0.0
    %303 = vmatpush1.msra.mxu0 0.0
    %304 = vmatprep.subr.mxu0 0.0
    %305 = vmatpush1.msra.mxu0 0.0
    %306 = vmatprep.subr.mxu0 0.0
    %307 = vmatpush1.msra.mxu0 0.0
    %308 = vmatprep.subr.mxu0 0.0
    %309 = vmatpush1.msra.mxu0 0.0
    %310 = vmatprep.subr.mxu0 0.0
    %311 = vmatpush1.msra.mxu0 0.0
    %312 = vmatprep.subr.mxu0 0.0
    %313 = vmatpush1.msra.mxu0 0.0
    %314 = vmatprep.subr.mxu0 0.0
    %315 = vmatpush1.msra.mxu0 0.0
    %316 = vmatprep.subr.mxu0 0.0
    %317 = vmatpush1.msra.mxu0 0.0
    %318 = vmatprep.subr.mxu0 0.0
    %319 = vmatpush1.msra.mxu0 0.0
    %320 = vmatprep.subr.mxu0 0.0
    %321 = vmatpush1.msra.mxu0 0.0
    %322 = vmatprep.subr.mxu0 0.0
    %323 = vmatpush1.msra.mxu0 0.0
    %324 = vmatprep.subr.mxu0 0.0
    %325 = vmatpush1.msra.mxu0 0.0
    %326 = vmatprep.subr.mxu0 0.0
    %327 = vmatpush1.msra.mxu0 0.0
    %328 = vmatprep.subr.mxu0 0.0
    %329 = vmatpush1.msra.mxu0 0.0
    %330 = vmatprep.subr.mxu0 0.0
    %331 = vmatpush1.msra.mxu0 0.0
    %332 = vmatprep.subr.mxu0 0.0
    %333 = vmatpush1.msra.mxu0 0.0
    %334 = vmatprep.subr.mxu0 0.0
    %335 = vmatpush1.msra.mxu0 0.0
    %336 = vmatprep.subr.mxu0 0.0
    %337 = vmatpush1.msra.mxu0 0.0
    %338 = vmatprep.subr.mxu0 0.0
    %339 = vmatpush1.msra.mxu0 0.0
    %340 = vmatprep.subr.mxu0 0.0
    %341 = vmatpush1.msra.mxu0 0.0
    %342 = vmatprep.subr.mxu0 0.0
    %343 = vmatpush1.msra.mxu0 0.0
    %344 = vmatprep.mubr.f32.mxu0 0.0
    %345 = vmatmul.mubr.f32.gmra.mrb[0].mxu0 %v275
    %v346 = vpop.f32.mrb[0].mxu0
    %v347 = vadd.f32 0.0, %v346
    %v348 = vpop.f32.mrb[0].mxu0
    %v349 = vadd.f32 0.0, %v348
    %350 = vmatprep.mubr.f32.mxu0 0.0
    %351 = vmatmul.mubr.f32.gmra.mrb[0].mxu0 %v278
    %v352 = vpop.f32.mrb[0].mxu0
    %v353 = vadd.f32 0.0, %v352
    %v354 = vpop.f32.mrb[0].mxu0
    %v355 = vadd.f32 0.0, %v354
    %356 = vdwg.mxu0
    %357 = vmatprep.subr.mxu0 0.0
    %358 = vmatpush1.msra.mxu0 %v257
    %359 = vmatprep.subr.mxu0 0.0
    %360 = vmatpush1.msra.mxu0 %v260
    %361 = vmatprep.subr.mxu0 0.0
    %362 = vmatpush1.msra.mxu0 %v263
    %363 = vmatprep.subr.mxu0 0.0
    %364 = vmatpush1.msra.mxu0 %v266
    %365 = vmatprep.subr.mxu0 0.0
    %366 = vmatpush1.msra.mxu0 %v269
    %367 = vmatprep.subr.mxu0 0.0
    %368 = vmatpush1.msra.mxu0 %v272
    %369 = vmatprep.subr.mxu0 0.0
    %370 = vmatpush1.msra.mxu0 0.0
    %371 = vmatprep.subr.mxu0 0.0
    %372 = vmatpush1.msra.mxu0 0.0
    %373 = vmatprep.subr.mxu0 0.0
    %374 = vmatpush1.msra.mxu0 0.0
    %375 = vmatprep.subr.mxu0 0.0
    %376 = vmatpush1.msra.mxu0 0.0
    %377 = vmatprep.subr.mxu0 0.0
    %378 = vmatpush1.msra.mxu0 0.0
    %379 = vmatprep.subr.mxu0 0.0
    %380 = vmatpush1.msra.mxu0 0.0
    %381 = vmatprep.subr.mxu0 0.0
    %382 = vmatpush1.msra.mxu0 0.0
    %383 = vmatprep.subr.mxu0 0.0
    %384 = vmatpush1.msra.mxu0 0.0
    %385 = vmatprep.subr.mxu0 0.0
    %386 = vmatpush1.msra.mxu0 0.0
    %387 = vmatprep.subr.mxu0 0.0
    %388 = vmatpush1.msra.mxu0 0.0
    %389 = vmatprep.subr.mxu0 0.0
    %390 = vmatpush1.msra.mxu0 0.0
    %391 = vmatprep.subr.mxu0 0.0
    %392 = vmatpush1.msra.mxu0 0.0
    %393 = vmatprep.subr.mxu0 0.0
    %394 = vmatpush1.msra.mxu0 0.0
    %395 = vmatprep.subr.mxu0 0.0
    %396 = vmatpush1.msra.mxu0 0.0
    %397 = vmatprep.subr.mxu0 0.0
    %398 = vmatpush1.msra.mxu0 0.0
    %399 = vmatprep.subr.mxu0 0.0
    %400 = vmatpush1.msra.mxu0 0.0
    %401 = vmatprep.subr.mxu0 0.0
    %402 = vmatpush1.msra.mxu0 0.0
    %403 = vmatprep.subr.mxu0 0.0
    %404 = vmatpush1.msra.mxu0 0.0
    %405 = vmatprep.subr.mxu0 0.0
    %406 = vmatpush1.msra.mxu0 0.0
    %407 = vmatprep.subr.mxu0 0.0
    %408 = vmatpush1.msra.mxu0 0.0
    %409 = vmatprep.subr.mxu0 0.0
    %410 = vmatpush1.msra.mxu0 0.0
    %411 = vmatprep.subr.mxu0 0.0
    %412 = vmatpush1.msra.mxu0 0.0
    %413 = vmatprep.subr.mxu0 0.0
    %414 = vmatpush1.msra.mxu0 0.0
    %415 = vmatprep.subr.mxu0 0.0
    %416 = vmatpush1.msra.mxu0 0.0
    %417 = vmatprep.subr.mxu0 0.0
    %418 = vmatpush1.msra.mxu0 0.0
    %419 = vmatprep.subr.mxu0 0.0
    %420 = vmatpush1.msra.mxu0 0.0
    %421 = vmatprep.mubr.f32.mxu0 0.0
    %422 = vmatmul.mubr.f32.gmra.mrb[0].mxu0 %v275
    %v423 = vpop.f32.mrb[0].mxu0
    %v424 = vadd.f32 0.0, %v423
    %v425 = vpop.f32.mrb[0].mxu0
    %426 = vmatprep.mubr.f32.mxu0 0.0
    %427 = vmatmul.mubr.f32.gmra.mrb[0].mxu0 %v278
    %v428 = vpop.f32.mrb[0].mxu0
    %v429 = vadd.f32 0.0, %v428
    %v430 = vpop.f32.mrb[0].mxu0
    %431 = vdwg.mxu0
    %v434 = vcombine.high %v349, %v349
    %v436 = vunpack.c.l.s4 1966171168
    %v437 = vunpack.c.0.s8 %v436
    %v438 = vlaneseq
    %v439 = vshrl.u32 %v438, 7
    %v440 = vsub.s32 %v437, %v439
    %v441 = vrot.slane %v349, %v440
    %v443 = vunpack.c.l.s4 1966171168
    %v444 = vunpack.c.0.s8 %v443
    %v445 = vlaneseq
    %v446 = vshrl.u32 %v445, 7
    %v447 = vsub.s32 %v444, %v446
    %v448 = vrot.slane %v434, %v447
    %v449 = vcombine.high %v441, %v441
    %v450 = vcombine.high %v448, %v448
    %v452 = vunpack.c.l.s4 1966171168
    %v453 = vunpack.c.0.s8 %v452
    %v454 = vlaneseq
    %v455 = vshrl.u32 %v454, 7
    %v456 = vsub.s32 %v453, %v455
    %v457 = vrot.slane %v441, %v456
    %v459 = vunpack.c.l.s4 1966171168
    %v460 = vunpack.c.0.s8 %v459
    %v461 = vlaneseq
    %v462 = vshrl.u32 %v461, 7
    %v463 = vsub.s32 %v460, %v462
    %v464 = vrot.slane %v448, %v463
    %v466 = vunpack.c.l.s4 1966171168
    %v467 = vunpack.c.0.s8 %v466
    %v468 = vlaneseq
    %v469 = vshrl.u32 %v468, 7
    %v470 = vsub.s32 %v467, %v469
    %v471 = vrot.slane %v449, %v470
    %v473 = vunpack.c.l.s4 1966171168
    %v474 = vunpack.c.0.s8 %v473
    %v475 = vlaneseq
    %v476 = vshrl.u32 %v475, 7
    %v477 = vsub.s32 %v474, %v476
    %v478 = vrot.slane %v450, %v477
    %v479 = vcombine.high %v457, %v457
    %v480 = vcombine.high %v464, %v464
    %v481 = vcombine.high %v471, %v471
    %v482 = vcombine.high %v478, %v478
    %v484 = vunpack.c.l.s4 1966171168
    %v485 = vunpack.c.0.s8 %v484
    %v486 = vlaneseq
    %v487 = vshrl.u32 %v486, 7
    %v488 = vsub.s32 %v485, %v487
    %v489 = vrot.slane %v355, %v488
    %v490 = vcombine.high %v489, %v489
    %v492 = vunpack.c.l.s4 1966171168
    %v493 = vunpack.c.0.s8 %v492
    %v494 = vlaneseq
    %v495 = vshrl.u32 %v494, 7
    %v496 = vsub.s32 %v493, %v495
    %v497 = vrot.slane %v489, %v496
    %v499 = vunpack.c.l.s4 1966171168
    %v500 = vunpack.c.0.s8 %v499
    %v501 = vlaneseq
    %v502 = vshrl.u32 %v501, 7
    %v503 = vsub.s32 %v500, %v502
    %v504 = vrot.slane %v490, %v503
    %v505 = vlaneseq
    %v506 = vshrl.u32 %v505, 7
    %v507 = vsub.s32 0, %v506
    %v508 = vrot.slane %v457, %v507
    %v509 = vlaneseq
    %v510 = vshrl.u32 %v509, 7
    %v511 = vsub.s32 0, %v510
    %v512 = vrot.slane %v471, %v511
    %v513 = vlaneseq
    %v514 = vshrl.u32 %v513, 7
    %v515 = vsub.s32 0, %v514
    %v516 = vrot.slane %v479, %v515
    %v517 = vlaneseq
    %v518 = vshrl.u32 %v517, 7
    %v519 = vsub.s32 0, %v518
    %v520 = vrot.slane %v481, %v519
    %v521 = vlaneseq
    %v522 = vshrl.u32 %v521, 7
    %v523 = vsub.s32 0, %v522
    %v524 = vrot.slane %v464, %v523
    %v525 = vlaneseq
    %v526 = vshrl.u32 %v525, 7
    %v527 = vsub.s32 0, %v526
    %v528 = vrot.slane %v478, %v527
    %v529 = vlaneseq
    %v530 = vshrl.u32 %v529, 7
    %v531 = vsub.s32 0, %v530
    %v532 = vrot.slane %v480, %v531
    %v533 = vlaneseq
    %v534 = vshrl.u32 %v533, 7
    %v535 = vsub.s32 0, %v534
    %v536 = vrot.slane %v482, %v535
    %v537 = vlaneseq
    %v538 = vshrl.u32 %v537, 7
    %v539 = vsub.s32 0, %v538
    %v540 = vrot.slane %v497, %v539
    %v541 = vlaneseq
    %v542 = vshrl.u32 %v541, 7
    %v543 = vsub.s32 0, %v542
    %v544 = vrot.slane %v504, %v543
    %v555 = vadd.f32 %v508, %v424
    %v556 = vadd.f32 %v508, %v429
    %v557 = vadd.f32 %v512, %v424
    %v558 = vadd.f32 %v512, %v429
    %v559 = vadd.f32 %v516, %v424
    %v560 = vadd.f32 %v516, %v429
    %v561 = vadd.f32 %v520, %v424
    %v562 = vadd.f32 %v520, %v429
    %v563 = vadd.f32 %v524, %v424
    %v564 = vadd.f32 %v524, %v429
    %v565 = vadd.f32 %v528, %v424
    %v566 = vadd.f32 %v528, %v429
    %v567 = vadd.f32 %v532, %v424
    %v568 = vadd.f32 %v532, %v429
    %v569 = vadd.f32 %v536, %v424
    %v570 = vadd.f32 %v536, %v429
    %v571 = vadd.f32 %v540, %v424
    %v572 = vadd.f32 %v540, %v429
    %v573 = vadd.f32 %v544, %v424
    %v574 = vadd.f32 %v544, %v429
    %vm575 = vcmp.gt.f32.partialorder %v555, 0.0
    %vm576 = vcmp.gt.f32.partialorder %v556, 0.0
    %vm577 = vcmp.gt.f32.partialorder %v557, 0.0
    %vm578 = vcmp.gt.f32.partialorder %v558, 0.0
    %vm579 = vcmp.gt.f32.partialorder %v559, 0.0
    %vm580 = vcmp.gt.f32.partialorder %v560, 0.0
    %vm581 = vcmp.gt.f32.partialorder %v561, 0.0
    %vm582 = vcmp.gt.f32.partialorder %v562, 0.0
    %vm583 = vcmp.gt.f32.partialorder %v563, 0.0
    %vm584 = vcmp.gt.f32.partialorder %v564, 0.0
    %vm585 = vcmp.gt.f32.partialorder %v565, 0.0
    %vm586 = vcmp.gt.f32.partialorder %v566, 0.0
    %vm587 = vcmp.gt.f32.partialorder %v567, 0.0
    %vm588 = vcmp.gt.f32.partialorder %v568, 0.0
    %vm589 = vcmp.gt.f32.partialorder %v569, 0.0
    %vm590 = vcmp.gt.f32.partialorder %v570, 0.0
    %vm591 = vcmp.gt.f32.partialorder %v571, 0.0
    %vm592 = vcmp.gt.f32.partialorder %v572, 0.0
    %vm593 = vcmp.gt.f32.partialorder %v573, 0.0
    %vm594 = vcmp.gt.f32.partialorder %v574, 0.0
    %v595 = vmul.f32 %v555, 0.2
    %v596 = vmul.f32 %v556, 0.2
    %v597 = vmul.f32 %v557, 0.2
    %v598 = vmul.f32 %v558, 0.2
    %v599 = vmul.f32 %v559, 0.2
    %v600 = vmul.f32 %v560, 0.2
    %v601 = vmul.f32 %v561, 0.2
    %v602 = vmul.f32 %v562, 0.2
    %v603 = vmul.f32 %v563, 0.2
    %v604 = vmul.f32 %v564, 0.2
    %v605 = vmul.f32 %v565, 0.2
    %v606 = vmul.f32 %v566, 0.2
    %v607 = vmul.f32 %v567, 0.2
    %v608 = vmul.f32 %v568, 0.2
    %v609 = vmul.f32 %v569, 0.2
    %v610 = vmul.f32 %v570, 0.2
    %v611 = vmul.f32 %v571, 0.2
    %v612 = vmul.f32 %v572, 0.2
    %v613 = vmul.f32 %v573, 0.2
    %v614 = vmul.f32 %v574, 0.2
    %v615 = vsel %vm575, %v555, %v595
    %v616 = vsel %vm576, %v556, %v596
    %v617 = vsel %vm577, %v557, %v597
    %v618 = vsel %vm578, %v558, %v598
    %v619 = vsel %vm579, %v559, %v599
    %v620 = vsel %vm580, %v560, %v600
    %v621 = vsel %vm581, %v561, %v601
    %v622 = vsel %vm582, %v562, %v602
    %v623 = vsel %vm583, %v563, %v603
    %v624 = vsel %vm584, %v564, %v604
    %v625 = vsel %vm585, %v565, %v605
    %v626 = vsel %vm586, %v566, %v606
    %v627 = vsel %vm587, %v567, %v607
    %v628 = vsel %vm588, %v568, %v608
    %v629 = vsel %vm589, %v569, %v609
    %v630 = vsel %vm590, %v570, %v610
    %v631 = vsel %vm591, %v571, %v611
    %v632 = vsel %vm592, %v572, %v612
    %v633 = vsel %vm593, %v573, %v613
    %v634 = vsel %vm594, %v574, %v614
    %v635 = vsel %vm273, %v615, -inf
    %v636 = vsel %vm273, %v617, -inf
    %v637 = vsel %vm273, %v619, -inf
    %v638 = vmax.f32 %v635, %v637
    %v639 = vsel %vm273, %v621, -inf
    %v640 = vmax.f32 %v636, %v639
    %v641 = vsel %vm273, %v623, -inf
    %v642 = vmax.f32 %v638, %v641
    %v643 = vsel %vm273, %v625, -inf
    %v644 = vmax.f32 %v640, %v643
    %v645 = vsel %vm273, %v627, -inf
    %v646 = vmax.f32 %v642, %v645
    %v647 = vsel %vm273, %v629, -inf
    %v648 = vmax.f32 %v644, %v647
    %v649 = vsel %vm273, %v631, -inf
    %v650 = vmax.f32 %v646, %v649
    %v651 = vsel %vm273, %v633, -inf
    %v652 = vmax.f32 %v648, %v651
    %v653 = vmax.f32 %v650, %v652
    %vm654 = vcmask 386048
    %v655 = vsel %vm654, %v616, -inf
    %v656 = vsel %vm654, %v618, -inf
    %v657 = vsel %vm654, %v620, -inf
    %v658 = vmax.f32 %v655, %v657
    %v659 = vsel %vm654, %v622, -inf
    %v660 = vmax.f32 %v656, %v659
    %v661 = vsel %vm654, %v624, -inf
    %v662 = vmax.f32 %v658, %v661
    %v663 = vsel %vm654, %v626, -inf
    %v664 = vmax.f32 %v660, %v663
    %v665 = vsel %vm654, %v628, -inf
    %v666 = vmax.f32 %v662, %v665
    %v667 = vsel %vm654, %v630, -inf
    %v668 = vmax.f32 %v664, %v667
    %v669 = vsel %vm654, %v632, -inf
    %v670 = vmax.f32 %v666, %v669
    %v671 = vsel %vm654, %v634, -inf
    %v672 = vmax.f32 %v668, %v671
    %v673 = vmax.f32 %v670, %v672
    %v674 = vsub.f32 %v615, %v653
    %v675 = vsub.f32 %v616, %v673
    %v676 = vsub.f32 %v617, %v653
    %v677 = vsub.f32 %v618, %v673
    %v678 = vsub.f32 %v619, %v653
    %v679 = vsub.f32 %v620, %v673
    %v680 = vsub.f32 %v621, %v653
    %v681 = vsub.f32 %v622, %v673
    %v682 = vsub.f32 %v623, %v653
    %v683 = vsub.f32 %v624, %v673
    %v684 = vsub.f32 %v625, %v653
    %v685 = vsub.f32 %v626, %v673
    %v686 = vsub.f32 %v627, %v653
    %v687 = vsub.f32 %v628, %v673
    %v688 = vsub.f32 %v629, %v653
    %v689 = vsub.f32 %v630, %v673
    %v690 = vsub.f32 %v631, %v653
    %v691 = vsub.f32 %v632, %v673
    %v692 = vsub.f32 %v633, %v653
    %v693 = vsub.f32 %v634, %v673
    %v694 = vmul.f32 %v674, 1.442695
    %v695 = vpow.pop %v694
    %v696 = vmul.f32 %v675, 1.442695
    %v697 = vpow.pop %v696
    %v698 = vmul.f32 %v676, 1.442695
    %v699 = vpow.pop %v698
    %v700 = vmul.f32 %v677, 1.442695
    %v701 = vpow.pop %v700
    %v702 = vmul.f32 %v678, 1.442695
    %v703 = vpow.pop %v702
    %v704 = vmul.f32 %v679, 1.442695
    %v705 = vpow.pop %v704
    %v706 = vmul.f32 %v680, 1.442695
    %v707 = vpow.pop %v706
    %v708 = vmul.f32 %v681, 1.442695
    %v709 = vpow.pop %v708
    %v710 = vmul.f32 %v682, 1.442695
    %v711 = vpow.pop %v710
    %v712 = vmul.f32 %v683, 1.442695
    %v713 = vpow.pop %v712
    %v714 = vmul.f32 %v684, 1.442695
    %v715 = vpow.pop %v714
    %v716 = vmul.f32 %v685, 1.442695
    %v717 = vpow.pop %v716
    %v718 = vmul.f32 %v686, 1.442695
    %v719 = vpow.pop %v718
    %v720 = vmul.f32 %v687, 1.442695
    %v721 = vpow.pop %v720
    %v722 = vmul.f32 %v688, 1.442695
    %v723 = vpow.pop %v722
    %v724 = vmul.f32 %v689, 1.442695
    %v725 = vpow.pop %v724
    %v726 = vmul.f32 %v690, 1.442695
    %v727 = vpow.pop %v726
    %v728 = vmul.f32 %v691, 1.442695
    %v729 = vpow.pop %v728
    %v730 = vmul.f32 %v692, 1.442695
    %v731 = vpow.pop %v730
    %v732 = vmul.f32 %v693, 1.442695
    %v733 = vpow.pop %v732
    %v734 = vmul.f32 %v235, %v695
    %v735 = vmul.f32 %v236, %v697
    %v736 = vmul.f32 %v237, %v699
    %v737 = vmul.f32 %v238, %v701
    %v738 = vmul.f32 %v239, %v703
    %v739 = vmul.f32 %v240, %v705
    %v740 = vmul.f32 %v241, %v707
    %v741 = vmul.f32 %v242, %v709
    %v742 = vmul.f32 %v243, %v711
    %v743 = vmul.f32 %v244, %v713
    %v744 = vmul.f32 %v245, %v715
    %v745 = vmul.f32 %v246, %v717
    %v746 = vmul.f32 %v247, %v719
    %v747 = vmul.f32 %v248, %v721
    %v748 = vmul.f32 %v249, %v723
    %v749 = vmul.f32 %v250, %v725
    %v750 = vmul.f32 %v251, %v727
    %v751 = vmul.f32 %v252, %v729
    %v752 = vmul.f32 %v253, %v731
    %v753 = vmul.f32 %v254, %v733
    %v754 = vsel %vm273, %v734, 0.0
    %v755 = vsel %vm273, %v736, 0.0
    %v756 = vadd.f32 %v754, %v755
    %v757 = vsel %vm273, %v738, 0.0
    %v758 = vadd.f32 %v756, %v757
    %v759 = vsel %vm273, %v740, 0.0
    %v760 = vadd.f32 %v758, %v759
    %v761 = vsel %vm273, %v742, 0.0
    %v762 = vadd.f32 %v760, %v761
    %v763 = vsel %vm273, %v744, 0.0
    %v764 = vadd.f32 %v762, %v763
    %v765 = vsel %vm273, %v746, 0.0
    %v766 = vadd.f32 %v764, %v765
    %v767 = vsel %vm273, %v748, 0.0
    %v768 = vadd.f32 %v766, %v767
    %v769 = vsel %vm273, %v750, 0.0
    %v770 = vadd.f32 %v768, %v769
    %v771 = vsel %vm273, %v752, 0.0
    %v772 = vadd.f32 %v770, %v771
    %v773 = vsel %vm654, %v735, 0.0
    %v774 = vsel %vm654, %v737, 0.0
    %v775 = vadd.f32 %v773, %v774
    %v776 = vsel %vm654, %v739, 0.0
    %v777 = vadd.f32 %v775, %v776
    %v778 = vsel %vm654, %v741, 0.0
    %v779 = vadd.f32 %v777, %v778
    %v780 = vsel %vm654, %v743, 0.0
    %v781 = vadd.f32 %v779, %v780
    %v782 = vsel %vm654, %v745, 0.0
    %v783 = vadd.f32 %v781, %v782
    %v784 = vsel %vm654, %v747, 0.0
    %v785 = vadd.f32 %v783, %v784
    %v786 = vsel %vm654, %v749, 0.0
    %v787 = vadd.f32 %v785, %v786
    %v788 = vsel %vm654, %v751, 0.0
    %v789 = vadd.f32 %v787, %v788
    %v790 = vsel %vm654, %v753, 0.0
    %v791 = vadd.f32 %v789, %v790
    %v792 = vadd.f32 %v772, 1e-16
    %v793 = vadd.f32 %v791, 1e-16
    %v796 = vcombine.high %v347, %v347
    %v798 = vunpack.c.l.s4 1966171168
    %v799 = vunpack.c.0.s8 %v798
    %v800 = vlaneseq
    %v801 = vshrl.u32 %v800, 7
    %v802 = vsub.s32 %v799, %v801
    %v803 = vrot.slane %v347, %v802
    %v805 = vunpack.c.l.s4 1966171168
    %v806 = vunpack.c.0.s8 %v805
    %v807 = vlaneseq
    %v808 = vshrl.u32 %v807, 7
    %v809 = vsub.s32 %v806, %v808
    %v810 = vrot.slane %v796, %v809
    %v811 = vcombine.high %v803, %v803
    %v812 = vcombine.high %v810, %v810
    %v814 = vunpack.c.l.s4 1966171168
    %v815 = vunpack.c.0.s8 %v814
    %v816 = vlaneseq
    %v817 = vshrl.u32 %v816, 7
    %v818 = vsub.s32 %v815, %v817
    %v819 = vrot.slane %v803, %v818
    %v821 = vunpack.c.l.s4 1966171168
    %v822 = vunpack.c.0.s8 %v821
    %v823 = vlaneseq
    %v824 = vshrl.u32 %v823, 7
    %v825 = vsub.s32 %v822, %v824
    %v826 = vrot.slane %v810, %v825
    %v828 = vunpack.c.l.s4 1966171168
    %v829 = vunpack.c.0.s8 %v828
    %v830 = vlaneseq
    %v831 = vshrl.u32 %v830, 7
    %v832 = vsub.s32 %v829, %v831
    %v833 = vrot.slane %v811, %v832
    %v835 = vunpack.c.l.s4 1966171168
    %v836 = vunpack.c.0.s8 %v835
    %v837 = vlaneseq
    %v838 = vshrl.u32 %v837, 7
    %v839 = vsub.s32 %v836, %v838
    %v840 = vrot.slane %v812, %v839
    %v841 = vcombine.high %v819, %v819
    %v842 = vcombine.high %v826, %v826
    %v843 = vcombine.high %v833, %v833
    %v844 = vcombine.high %v840, %v840
    %v846 = vunpack.c.l.s4 1966171168
    %v847 = vunpack.c.0.s8 %v846
    %v848 = vlaneseq
    %v849 = vshrl.u32 %v848, 7
    %v850 = vsub.s32 %v847, %v849
    %v851 = vrot.slane %v353, %v850
    %v852 = vcombine.high %v851, %v851
    %v854 = vunpack.c.l.s4 1966171168
    %v855 = vunpack.c.0.s8 %v854
    %v856 = vlaneseq
    %v857 = vshrl.u32 %v856, 7
    %v858 = vsub.s32 %v855, %v857
    %v859 = vrot.slane %v851, %v858
    %v861 = vunpack.c.l.s4 1966171168
    %v862 = vunpack.c.0.s8 %v861
    %v863 = vlaneseq
    %v864 = vshrl.u32 %v863, 7
    %v865 = vsub.s32 %v862, %v864
    %v866 = vrot.slane %v852, %v865
    %v867 = vlaneseq
    %v868 = vshrl.u32 %v867, 7
    %v869 = vsub.s32 0, %v868
    %v870 = vrot.slane %v819, %v869
    %v871 = vlaneseq
    %v872 = vshrl.u32 %v871, 7
    %v873 = vsub.s32 0, %v872
    %v874 = vrot.slane %v833, %v873
    %v875 = vlaneseq
    %v876 = vshrl.u32 %v875, 7
    %v877 = vsub.s32 0, %v876
    %v878 = vrot.slane %v841, %v877
    %v879 = vlaneseq
    %v880 = vshrl.u32 %v879, 7
    %v881 = vsub.s32 0, %v880
    %v882 = vrot.slane %v843, %v881
    %v883 = vlaneseq
    %v884 = vshrl.u32 %v883, 7
    %v885 = vsub.s32 0, %v884
    %v886 = vrot.slane %v826, %v885
    %v887 = vlaneseq
    %v888 = vshrl.u32 %v887, 7
    %v889 = vsub.s32 0, %v888
    %v890 = vrot.slane %v840, %v889
    %v891 = vlaneseq
    %v892 = vshrl.u32 %v891, 7
    %v893 = vsub.s32 0, %v892
    %v894 = vrot.slane %v842, %v893
    %v895 = vlaneseq
    %v896 = vshrl.u32 %v895, 7
    %v897 = vsub.s32 0, %v896
    %v898 = vrot.slane %v844, %v897
    %v899 = vlaneseq
    %v900 = vshrl.u32 %v899, 7
    %v901 = vsub.s32 0, %v900
    %v902 = vrot.slane %v859, %v901
    %v903 = vlaneseq
    %v904 = vshrl.u32 %v903, 7
    %v905 = vsub.s32 0, %v904
    %v906 = vrot.slane %v866, %v905
    %v917 = vmul.f32 %v734, %v870
    %v918 = vmul.f32 %v735, %v870
    %v919 = vmul.f32 %v736, %v874
    %v920 = vmul.f32 %v737, %v874
    %v921 = vmul.f32 %v738, %v878
    %v922 = vmul.f32 %v739, %v878
    %v923 = vmul.f32 %v740, %v882
    %v924 = vmul.f32 %v741, %v882
    %v925 = vmul.f32 %v742, %v886
    %v926 = vmul.f32 %v743, %v886
    %v927 = vmul.f32 %v744, %v890
    %v928 = vmul.f32 %v745, %v890
    %v929 = vmul.f32 %v746, %v894
    %v930 = vmul.f32 %v747, %v894
    %v931 = vmul.f32 %v748, %v898
    %v932 = vmul.f32 %v749, %v898
    %v933 = vmul.f32 %v750, %v902
    %v934 = vmul.f32 %v751, %v902
    %v935 = vmul.f32 %v752, %v906
    %v936 = vmul.f32 %v753, %v906
    %v937 = vsel %vm273, %v917, 0.0
    %v938 = vsel %vm273, %v919, 0.0
    %v939 = vadd.f32 %v937, %v938
    %v940 = vsel %vm273, %v921, 0.0
    %v941 = vadd.f32 %v939, %v940
    %v942 = vsel %vm273, %v923, 0.0
    %v943 = vadd.f32 %v941, %v942
    %v944 = vsel %vm273, %v925, 0.0
    %v945 = vadd.f32 %v943, %v944
    %v946 = vsel %vm273, %v927, 0.0
    %v947 = vadd.f32 %v945, %v946
    %v948 = vsel %vm273, %v929, 0.0
    %v949 = vadd.f32 %v947, %v948
    %v950 = vsel %vm273, %v931, 0.0
    %v951 = vadd.f32 %v949, %v950
    %v952 = vsel %vm273, %v933, 0.0
    %v953 = vadd.f32 %v951, %v952
    %v954 = vsel %vm273, %v935, 0.0
    %v955 = vadd.f32 %v953, %v954
    %v956 = vsel %vm654, %v918, 0.0
    %v957 = vsel %vm654, %v920, 0.0
    %v958 = vadd.f32 %v956, %v957
    %v959 = vsel %vm654, %v922, 0.0
    %v960 = vadd.f32 %v958, %v959
    %v961 = vsel %vm654, %v924, 0.0
    %v962 = vadd.f32 %v960, %v961
    %v963 = vsel %vm654, %v926, 0.0
    %v964 = vadd.f32 %v962, %v963
    %v965 = vsel %vm654, %v928, 0.0
    %v966 = vadd.f32 %v964, %v965
    %v967 = vsel %vm654, %v930, 0.0
    %v968 = vadd.f32 %v966, %v967
    %v969 = vsel %vm654, %v932, 0.0
    %v970 = vadd.f32 %v968, %v969
    %v971 = vsel %vm654, %v934, 0.0
    %v972 = vadd.f32 %v970, %v971
    %v973 = vsel %vm654, %v936, 0.0
    %v974 = vadd.f32 %v972, %v973
    %v975 = vrcp.pop %v792
    %v976 = vrcp.pop %v793
    %v977 = vmul.f32 %v955, %v975
    %v978 = vmul.f32 %v974, %v976
    %vm979 = vcmp.gt.f32.partialorder %v977, 0.0
    %vm980 = vcmp.gt.f32.partialorder %v978, 0.0
    %v981 = vmul.f32 %v977, 0.01
    %v982 = vmul.f32 %v978, 0.01
    %v983 = vsel %vm979, %v977, %v981
    %v984 = vsel %vm980, %v978, %v982
    %v985 = vadd.f32 %v983, %v227
    %v986 = vadd.f32 %v984, %v232
    %s987 = scalar_lea.vmem [#allocation6], 144
    %v988 = vld [vmem:[%s987] sm:$0xff]
    %v989 = vld [vmem:[%s987 + $0x8] sm:$0xff]
    %v990 = vld [vmem:[%s987 + $0x10] sm:$0xff]
    %v991 = vld [vmem:[%s987 + $0x18] sm:$0xff]
    %v992 = vld [vmem:[%s987 + $0x20] sm:$0xff]
    %v993 = vld [vmem:[%s987 + $0x28] sm:$0xff]
    %v994 = vld [vmem:[%s987 + $0x30] sm:$0xff]
    %v995 = vld [vmem:[%s987 + $0x38] sm:$0xff]
    %v996 = vld [vmem:[%s987 + $0x40] sm:$0xff]
    %v997 = vld [vmem:[%s987 + $0x48] sm:$0xff]
    %v998 = vld [vmem:[%s987 + $0x50] sm:$0xff]
    %v999 = vld [vmem:[%s987 + $0x58] sm:$0xff]
    %v1000 = vld [vmem:[%s987 + $0x60] sm:$0xff]
    %v1001 = vld [vmem:[%s987 + $0x68] sm:$0xff]
    %v1002 = vld [vmem:[%s987 + $0x70] sm:$0xff]
    %v1003 = vld [vmem:[%s987 + $0x78] sm:$0xff]
    %v1004 = vld [vmem:[%s987 + $0x80] sm:$0xff]
    %v1005 = vld [vmem:[%s987 + $0x88] sm:$0xff]
    %v1007 = vsel %vm273, %v985, 0
    %v1010 = vsel %vm273, %v986, 0
    %1012 = vmatprep.subr.mxu0 %v989
    %1013 = vmatpush1.msra.mxu0 %v988
    %1014 = vmatprep.subr.mxu0 %v992
    %1015 = vmatpush1.msra.mxu0 %v991
    %1016 = vmatprep.subr.mxu0 %v995
    %1017 = vmatpush1.msra.mxu0 %v994
    %1018 = vmatprep.subr.mxu0 %v998
    %1019 = vmatpush1.msra.mxu0 %v997
    %1020 = vmatprep.subr.mxu0 %v1001
    %1021 = vmatpush1.msra.mxu0 %v1000
    %1022 = vmatprep.subr.mxu0 %v1004
    %1023 = vmatpush1.msra.mxu0 %v1003
    %1024 = vmatprep.subr.mxu0 0.0
    %1025 = vmatpush1.msra.mxu0 0.0
    %1026 = vmatprep.subr.mxu0 0.0
    %1027 = vmatpush1.msra.mxu0 0.0
    %1028 = vmatprep.subr.mxu0 0.0
    %1029 = vmatpush1.msra.mxu0 0.0
    %1030 = vmatprep.subr.mxu0 0.0
    %1031 = vmatpush1.msra.mxu0 0.0
    %1032 = vmatprep.subr.mxu0 0.0
    %1033 = vmatpush1.msra.mxu0 0.0
    %1034 = vmatprep.subr.mxu0 0.0
    %1035 = vmatpush1.msra.mxu0 0.0
    %1036 = vmatprep.subr.mxu0 0.0
    %1037 = vmatpush1.msra.mxu0 0.0
    %1038 = vmatprep.subr.mxu0 0.0
    %1039 = vmatpush1.msra.mxu0 0.0
    %1040 = vmatprep.subr.mxu0 0.0
    %1041 = vmatpush1.msra.mxu0 0.0
    %1042 = vmatprep.subr.mxu0 0.0
    %1043 = vmatpush1.msra.mxu0 0.0
    %1044 = vmatprep.subr.mxu0 0.0
    %1045 = vmatpush1.msra.mxu0 0.0
    %1046 = vmatprep.subr.mxu0 0.0
    %1047 = vmatpush1.msra.mxu0 0.0
    %1048 = vmatprep.subr.mxu0 0.0
    %1049 = vmatpush1.msra.mxu0 0.0
    %1050 = vmatprep.subr.mxu0 0.0
    %1051 = vmatpush1.msra.mxu0 0.0
    %1052 = vmatprep.subr.mxu0 0.0
    %1053 = vmatpush1.msra.mxu0 0.0
    %1054 = vmatprep.subr.mxu0 0.0
    %1055 = vmatpush1.msra.mxu0 0.0
    %1056 = vmatprep.subr.mxu0 0.0
    %1057 = vmatpush1.msra.mxu0 0.0
    %1058 = vmatprep.subr.mxu0 0.0
    %1059 = vmatpush1.msra.mxu0 0.0
    %1060 = vmatprep.subr.mxu0 0.0
    %1061 = vmatpush1.msra.mxu0 0.0
    %1062 = vmatprep.subr.mxu0 0.0
    %1063 = vmatpush1.msra.mxu0 0.0
    %1064 = vmatprep.subr.mxu0 0.0
    %1065 = vmatpush1.msra.mxu0 0.0
    %1066 = vmatprep.subr.mxu0 0.0
    %1067 = vmatpush1.msra.mxu0 0.0
    %1068 = vmatprep.subr.mxu0 0.0
    %1069 = vmatpush1.msra.mxu0 0.0
    %1070 = vmatprep.subr.mxu0 0.0
    %1071 = vmatpush1.msra.mxu0 0.0
    %1072 = vmatprep.subr.mxu0 0.0
    %1073 = vmatpush1.msra.mxu0 0.0
    %1074 = vmatprep.subr.mxu0 0.0
    %1075 = vmatpush1.msra.mxu0 0.0
    %1076 = vmatprep.mubr.f32.mxu0 0.0
    %1077 = vmatmul.mubr.f32.gmra.mrb[0].mxu0 %v1007
    %v1078 = vpop.f32.mrb[0].mxu0
    %v1079 = vadd.f32 0.0, %v1078
    %v1080 = vpop.f32.mrb[0].mxu0
    %v1081 = vadd.f32 0.0, %v1080
    %1082 = vmatprep.mubr.f32.mxu0 0.0
    %1083 = vmatmul.mubr.f32.gmra.mrb[0].mxu0 %v1010
    %v1084 = vpop.f32.mrb[0].mxu0
    %v1085 = vadd.f32 0.0, %v1084
    %v1086 = vpop.f32.mrb[0].mxu0
    %v1087 = vadd.f32 0.0, %v1086
    %1088 = vdwg.mxu0
    %1089 = vmatprep.subr.mxu0 0.0
    %1090 = vmatpush1.msra.mxu0 %v990
    %1091 = vmatprep.subr.mxu0 0.0
    %1092 = vmatpush1.msra.mxu0 %v993
    %1093 = vmatprep.subr.mxu0 0.0
    %1094 = vmatpush1.msra.mxu0 %v996
    %1095 = vmatprep.subr.mxu0 0.0
    %1096 = vmatpush1.msra.mxu0 %v999
    %1097 = vmatprep.subr.mxu0 0.0
    %1098 = vmatpush1.msra.mxu0 %v1002
    %1099 = vmatprep.subr.mxu0 0.0
    %1100 = vmatpush1.msra.mxu0 %v1005
    %1101 = vmatprep.subr.mxu0 0.0
    %1102 = vmatpush1.msra.mxu0 0.0
    %1103 = vmatprep.subr.mxu0 0.0
    %1104 = vmatpush1.msra.mxu0 0.0
    %1105 = vmatprep.subr.mxu0 0.0
    %1106 = vmatpush1.msra.mxu0 0.0
    %1107 = vmatprep.subr.mxu0 0.0
    %1108 = vmatpush1.msra.mxu0 0.0
    %1109 = vmatprep.subr.mxu0 0.0
    %1110 = vmatpush1.msra.mxu0 0.0
    %1111 = vmatprep.subr.mxu0 0.0
    %1112 = vmatpush1.msra.mxu0 0.0
    %1113 = vmatprep.subr.mxu0 0.0
    %1114 = vmatpush1.msra.mxu0 0.0
    %1115 = vmatprep.subr.mxu0 0.0
    %1116 = vmatpush1.msra.mxu0 0.0
    %1117 = vmatprep.subr.mxu0 0.0
    %1118 = vmatpush1.msra.mxu0 0.0
    %1119 = vmatprep.subr.mxu0 0.0
    %1120 = vmatpush1.msra.mxu0 0.0
    %1121 = vmatprep.subr.mxu0 0.0
    %1122 = vmatpush1.msra.mxu0 0.0
    %1123 = vmatprep.subr.mxu0 0.0
    %1124 = vmatpush1.msra.mxu0 0.0
    %1125 = vmatprep.subr.mxu0 0.0
    %1126 = vmatpush1.msra.mxu0 0.0
    %1127 = vmatprep.subr.mxu0 0.0
    %1128 = vmatpush1.msra.mxu0 0.0
    %1129 = vmatprep.subr.mxu0 0.0
    %1130 = vmatpush1.msra.mxu0 0.0
    %1131 = vmatprep.subr.mxu0 0.0
    %1132 = vmatpush1.msra.mxu0 0.0
    %1133 = vmatprep.subr.mxu0 0.0
    %1134 = vmatpush1.msra.mxu0 0.0
    %1135 = vmatprep.subr.mxu0 0.0
    %1136 = vmatpush1.msra.mxu0 0.0
    %1137 = vmatprep.subr.mxu0 0.0
    %1138 = vmatpush1.msra.mxu0 0.0
    %1139 = vmatprep.subr.mxu0 0.0
    %1140 = vmatpush1.msra.mxu0 0.0
    %1141 = vmatprep.subr.mxu0 0.0
    %1142 = vmatpush1.msra.mxu0 0.0
    %1143 = vmatprep.subr.mxu0 0.0
    %1144 = vmatpush1.msra.mxu0 0.0
    %1145 = vmatprep.subr.mxu0 0.0
    %1146 = vmatpush1.msra.mxu0 0.0
    %1147 = vmatprep.subr.mxu0 0.0
    %1148 = vmatpush1.msra.mxu0 0.0
    %1149 = vmatprep.subr.mxu0 0.0
    %1150 = vmatpush1.msra.mxu0 0.0
    %1151 = vmatprep.subr.mxu0 0.0
    %1152 = vmatpush1.msra.mxu0 0.0
    %1153 = vmatprep.mubr.f32.mxu0 0.0
    %1154 = vmatmul.mubr.f32.gmra.mrb[0].mxu0 %v1007
    %v1155 = vpop.f32.mrb[0].mxu0
    %v1156 = vadd.f32 0.0, %v1155
    %v1157 = vpop.f32.mrb[0].mxu0
    %1158 = vmatprep.mubr.f32.mxu0 0.0
    %1159 = vmatmul.mubr.f32.gmra.mrb[0].mxu0 %v1010
    %v1160 = vpop.f32.mrb[0].mxu0
    %v1161 = vadd.f32 0.0, %v1160
    %v1162 = vpop.f32.mrb[0].mxu0
    %1163 = vdwg.mxu0
    %v1166 = vcombine.high %v1081, %v1081
    %v1168 = vunpack.c.l.s4 1966171168
    %v1169 = vunpack.c.0.s8 %v1168
    %v1170 = vlaneseq
    %v1171 = vshrl.u32 %v1170, 7
    %v1172 = vsub.s32 %v1169, %v1171
    %v1173 = vrot.slane %v1081, %v1172
    %v1175 = vunpack.c.l.s4 1966171168
    %v1176 = vunpack.c.0.s8 %v1175
    %v1177 = vlaneseq
    %v1178 = vshrl.u32 %v1177, 7
    %v1179 = vsub.s32 %v1176, %v1178
    %v1180 = vrot.slane %v1166, %v1179
    %v1181 = vcombine.high %v1173, %v1173
    %v1182 = vcombine.high %v1180, %v1180
    %v1184 = vunpack.c.l.s4 1966171168
    %v1185 = vunpack.c.0.s8 %v1184
    %v1186 = vlaneseq
    %v1187 = vshrl.u32 %v1186, 7
    %v1188 = vsub.s32 %v1185, %v1187
    %v1189 = vrot.slane %v1173, %v1188
    %v1191 = vunpack.c.l.s4 1966171168
    %v1192 = vunpack.c.0.s8 %v1191
    %v1193 = vlaneseq
    %v1194 = vshrl.u32 %v1193, 7
    %v1195 = vsub.s32 %v1192, %v1194
    %v1196 = vrot.slane %v1180, %v1195
    %v1198 = vunpack.c.l.s4 1966171168
    %v1199 = vunpack.c.0.s8 %v1198
    %v1200 = vlaneseq
    %v1201 = vshrl.u32 %v1200, 7
    %v1202 = vsub.s32 %v1199, %v1201
    %v1203 = vrot.slane %v1181, %v1202
    %v1205 = vunpack.c.l.s4 1966171168
    %v1206 = vunpack.c.0.s8 %v1205
    %v1207 = vlaneseq
    %v1208 = vshrl.u32 %v1207, 7
    %v1209 = vsub.s32 %v1206, %v1208
    %v1210 = vrot.slane %v1182, %v1209
    %v1211 = vcombine.high %v1189, %v1189
    %v1212 = vcombine.high %v1196, %v1196
    %v1213 = vcombine.high %v1203, %v1203
    %v1214 = vcombine.high %v1210, %v1210
    %v1216 = vunpack.c.l.s4 1966171168
    %v1217 = vunpack.c.0.s8 %v1216
    %v1218 = vlaneseq
    %v1219 = vshrl.u32 %v1218, 7
    %v1220 = vsub.s32 %v1217, %v1219
    %v1221 = vrot.slane %v1087, %v1220
    %v1222 = vcombine.high %v1221, %v1221
    %v1224 = vunpack.c.l.s4 1966171168
    %v1225 = vunpack.c.0.s8 %v1224
    %v1226 = vlaneseq
    %v1227 = vshrl.u32 %v1226, 7
    %v1228 = vsub.s32 %v1225, %v1227
    %v1229 = vrot.slane %v1221, %v1228
    %v1231 = vunpack.c.l.s4 1966171168
    %v1232 = vunpack.c.0.s8 %v1231
    %v1233 = vlaneseq
    %v1234 = vshrl.u32 %v1233, 7
    %v1235 = vsub.s32 %v1232, %v1234
    %v1236 = vrot.slane %v1222, %v1235
    %v1237 = vlaneseq
    %v1238 = vshrl.u32 %v1237, 7
    %v1239 = vsub.s32 0, %v1238
    %v1240 = vrot.slane %v1189, %v1239
    %v1241 = vlaneseq
    %v1242 = vshrl.u32 %v1241, 7
    %v1243 = vsub.s32 0, %v1242
    %v1244 = vrot.slane %v1203, %v1243
    %v1245 = vlaneseq
    %v1246 = vshrl.u32 %v1245, 7
    %v1247 = vsub.s32 0, %v1246
    %v1248 = vrot.slane %v1211, %v1247
    %v1249 = vlaneseq
    %v1250 = vshrl.u32 %v1249, 7
    %v1251 = vsub.s32 0, %v1250
    %v1252 = vrot.slane %v1213, %v1251
    %v1253 = vlaneseq
    %v1254 = vshrl.u32 %v1253, 7
    %v1255 = vsub.s32 0, %v1254
    %v1256 = vrot.slane %v1196, %v1255
    %v1257 = vlaneseq
    %v1258 = vshrl.u32 %v1257, 7
    %v1259 = vsub.s32 0, %v1258
    %v1260 = vrot.slane %v1210, %v1259
    %v1261 = vlaneseq
    %v1262 = vshrl.u32 %v1261, 7
    %v1263 = vsub.s32 0, %v1262
    %v1264 = vrot.slane %v1212, %v1263
    %v1265 = vlaneseq
    %v1266 = vshrl.u32 %v1265, 7
    %v1267 = vsub.s32 0, %v1266
    %v1268 = vrot.slane %v1214, %v1267
    %v1269 = vlaneseq
    %v1270 = vshrl.u32 %v1269, 7
    %v1271 = vsub.s32 0, %v1270
    %v1272 = vrot.slane %v1229, %v1271
    %v1273 = vlaneseq
    %v1274 = vshrl.u32 %v1273, 7
    %v1275 = vsub.s32 0, %v1274
    %v1276 = vrot.slane %v1236, %v1275
    %v1287 = vadd.f32 %v1240, %v1156
    %v1288 = vadd.f32 %v1240, %v1161
    %v1289 = vadd.f32 %v1244, %v1156
    %v1290 = vadd.f32 %v1244, %v1161
    %v1291 = vadd.f32 %v1248, %v1156
    %v1292 = vadd.f32 %v1248, %v1161
    %v1293 = vadd.f32 %v1252, %v1156
    %v1294 = vadd.f32 %v1252, %v1161
    %v1295 = vadd.f32 %v1256, %v1156
    %v1296 = vadd.f32 %v1256, %v1161
    %v1297 = vadd.f32 %v1260, %v1156
    %v1298 = vadd.f32 %v1260, %v1161
    %v1299 = vadd.f32 %v1264, %v1156
    %v1300 = vadd.f32 %v1264, %v1161
    %v1301 = vadd.f32 %v1268, %v1156
    %v1302 = vadd.f32 %v1268, %v1161
    %v1303 = vadd.f32 %v1272, %v1156
    %v1304 = vadd.f32 %v1272, %v1161
    %v1305 = vadd.f32 %v1276, %v1156
    %v1306 = vadd.f32 %v1276, %v1161
    %vm1307 = vcmp.gt.f32.partialorder %v1287, 0.0
    %vm1308 = vcmp.gt.f32.partialorder %v1288, 0.0
    %vm1309 = vcmp.gt.f32.partialorder %v1289, 0.0
    %vm1310 = vcmp.gt.f32.partialorder %v1290, 0.0
    %vm1311 = vcmp.gt.f32.partialorder %v1291, 0.0
    %vm1312 = vcmp.gt.f32.partialorder %v1292, 0.0
    %vm1313 = vcmp.gt.f32.partialorder %v1293, 0.0
    %vm1314 = vcmp.gt.f32.partialorder %v1294, 0.0
    %vm1315 = vcmp.gt.f32.partialorder %v1295, 0.0
    %vm1316 = vcmp.gt.f32.partialorder %v1296, 0.0
    %vm1317 = vcmp.gt.f32.partialorder %v1297, 0.0
    %vm1318 = vcmp.gt.f32.partialorder %v1298, 0.0
    %vm1319 = vcmp.gt.f32.partialorder %v1299, 0.0
    %vm1320 = vcmp.gt.f32.partialorder %v1300, 0.0
    %vm1321 = vcmp.gt.f32.partialorder %v1301, 0.0
    %vm1322 = vcmp.gt.f32.partialorder %v1302, 0.0
    %vm1323 = vcmp.gt.f32.partialorder %v1303, 0.0
    %vm1324 = vcmp.gt.f32.partialorder %v1304, 0.0
    %vm1325 = vcmp.gt.f32.partialorder %v1305, 0.0
    %vm1326 = vcmp.gt.f32.partialorder %v1306, 0.0
    %v1327 = vmul.f32 %v1287, 0.2
    %v1328 = vmul.f32 %v1288, 0.2
    %v1329 = vmul.f32 %v1289, 0.2
    %v1330 = vmul.f32 %v1290, 0.2
    %v1331 = vmul.f32 %v1291, 0.2
    %v1332 = vmul.f32 %v1292, 0.2
    %v1333 = vmul.f32 %v1293, 0.2
    %v1334 = vmul.f32 %v1294, 0.2
    %v1335 = vmul.f32 %v1295, 0.2
    %v1336 = vmul.f32 %v1296, 0.2
    %v1337 = vmul.f32 %v1297, 0.2
    %v1338 = vmul.f32 %v1298, 0.2
    %v1339 = vmul.f32 %v1299, 0.2
    %v1340 = vmul.f32 %v1300, 0.2
    %v1341 = vmul.f32 %v1301, 0.2
    %v1342 = vmul.f32 %v1302, 0.2
    %v1343 = vmul.f32 %v1303, 0.2
    %v1344 = vmul.f32 %v1304, 0.2
    %v1345 = vmul.f32 %v1305, 0.2
    %v1346 = vmul.f32 %v1306, 0.2
    %v1347 = vsel %vm1307, %v1287, %v1327
    %v1348 = vsel %vm1308, %v1288, %v1328
    %v1349 = vsel %vm1309, %v1289, %v1329
    %v1350 = vsel %vm1310, %v1290, %v1330
    %v1351 = vsel %vm1311, %v1291, %v1331
    %v1352 = vsel %vm1312, %v1292, %v1332
    %v1353 = vsel %vm1313, %v1293, %v1333
    %v1354 = vsel %vm1314, %v1294, %v1334
    %v1355 = vsel %vm1315, %v1295, %v1335
    %v1356 = vsel %vm1316, %v1296, %v1336
    %v1357 = vsel %vm1317, %v1297, %v1337
    %v1358 = vsel %vm1318, %v1298, %v1338
    %v1359 = vsel %vm1319, %v1299, %v1339
    %v1360 = vsel %vm1320, %v1300, %v1340
    %v1361 = vsel %vm1321, %v1301, %v1341
    %v1362 = vsel %vm1322, %v1302, %v1342
    %v1363 = vsel %vm1323, %v1303, %v1343
    %v1364 = vsel %vm1324, %v1304, %v1344
    %v1365 = vsel %vm1325, %v1305, %v1345
    %v1366 = vsel %vm1326, %v1306, %v1346
    %v1367 = vsel %vm273, %v1347, -inf
    %v1368 = vsel %vm273, %v1349, -inf
    %v1369 = vsel %vm273, %v1351, -inf
    %v1370 = vmax.f32 %v1367, %v1369
    %v1371 = vsel %vm273, %v1353, -inf
    %v1372 = vmax.f32 %v1368, %v1371
    %v1373 = vsel %vm273, %v1355, -inf
    %v1374 = vmax.f32 %v1370, %v1373
    %v1375 = vsel %vm273, %v1357, -inf
    %v1376 = vmax.f32 %v1372, %v1375
    %v1377 = vsel %vm273, %v1359, -inf
    %v1378 = vmax.f32 %v1374, %v1377
    %v1379 = vsel %vm273, %v1361, -inf
    %v1380 = vmax.f32 %v1376, %v1379
    %v1381 = vsel %vm273, %v1363, -inf
    %v1382 = vmax.f32 %v1378, %v1381
    %v1383 = vsel %vm273, %v1365, -inf
    %v1384 = vmax.f32 %v1380, %v1383
    %v1385 = vmax.f32 %v1382, %v1384
    %v1386 = vsel %vm654, %v1348, -inf
    %v1387 = vsel %vm654, %v1350, -inf
    %v1388 = vsel %vm654, %v1352, -inf
    %v1389 = vmax.f32 %v1386, %v1388
    %v1390 = vsel %vm654, %v1354, -inf
    %v1391 = vmax.f32 %v1387, %v1390
    %v1392 = vsel %vm654, %v1356, -inf
    %v1393 = vmax.f32 %v1389, %v1392
    %v1394 = vsel %vm654, %v1358, -inf
    %v1395 = vmax.f32 %v1391, %v1394
    %v1396 = vsel %vm654, %v1360, -inf
    %v1397 = vmax.f32 %v1393, %v1396
    %v1398 = vsel %vm654, %v1362, -inf
    %v1399 = vmax.f32 %v1395, %v1398
    %v1400 = vsel %vm654, %v1364, -inf
    %v1401 = vmax.f32 %v1397, %v1400
    %v1402 = vsel %vm654, %v1366, -inf
    %v1403 = vmax.f32 %v1399, %v1402
    %v1404 = vmax.f32 %v1401, %v1403
    %v1405 = vsub.f32 %v1347, %v1385
    %v1406 = vsub.f32 %v1348, %v1404
    %v1407 = vsub.f32 %v1349, %v1385
    %v1408 = vsub.f32 %v1350, %v1404
    %v1409 = vsub.f32 %v1351, %v1385
    %v1410 = vsub.f32 %v1352, %v1404
    %v1411 = vsub.f32 %v1353, %v1385
    %v1412 = vsub.f32 %v1354, %v1404
    %v1413 = vsub.f32 %v1355, %v1385
    %v1414 = vsub.f32 %v1356, %v1404
    %v1415 = vsub.f32 %v1357, %v1385
    %v1416 = vsub.f32 %v1358, %v1404
    %v1417 = vsub.f32 %v1359, %v1385
    %v1418 = vsub.f32 %v1360, %v1404
    %v1419 = vsub.f32 %v1361, %v1385
    %v1420 = vsub.f32 %v1362, %v1404
    %v1421 = vsub.f32 %v1363, %v1385
    %v1422 = vsub.f32 %v1364, %v1404
    %v1423 = vsub.f32 %v1365, %v1385
    %v1424 = vsub.f32 %v1366, %v1404
    %v1425 = vmul.f32 %v1405, 1.442695
    %v1426 = vpow.pop %v1425
    %v1427 = vmul.f32 %v1406, 1.442695
    %v1428 = vpow.pop %v1427
    %v1429 = vmul.f32 %v1407, 1.442695
    %v1430 = vpow.pop %v1429
    %v1431 = vmul.f32 %v1408, 1.442695
    %v1432 = vpow.pop %v1431
    %v1433 = vmul.f32 %v1409, 1.442695
    %v1434 = vpow.pop %v1433
    %v1435 = vmul.f32 %v1410, 1.442695
    %v1436 = vpow.pop %v1435
    %v1437 = vmul.f32 %v1411, 1.442695
    %v1438 = vpow.pop %v1437
    %v1439 = vmul.f32 %v1412, 1.442695
    %v1440 = vpow.pop %v1439
    %v1441 = vmul.f32 %v1413, 1.442695
    %v1442 = vpow.pop %v1441
    %v1443 = vmul.f32 %v1414, 1.442695
    %v1444 = vpow.pop %v1443
    %v1445 = vmul.f32 %v1415, 1.442695
    %v1446 = vpow.pop %v1445
    %v1447 = vmul.f32 %v1416, 1.442695
    %v1448 = vpow.pop %v1447
    %v1449 = vmul.f32 %v1417, 1.442695
    %v1450 = vpow.pop %v1449
    %v1451 = vmul.f32 %v1418, 1.442695
    %v1452 = vpow.pop %v1451
    %v1453 = vmul.f32 %v1419, 1.442695
    %v1454 = vpow.pop %v1453
    %v1455 = vmul.f32 %v1420, 1.442695
    %v1456 = vpow.pop %v1455
    %v1457 = vmul.f32 %v1421, 1.442695
    %v1458 = vpow.pop %v1457
    %v1459 = vmul.f32 %v1422, 1.442695
    %v1460 = vpow.pop %v1459
    %v1461 = vmul.f32 %v1423, 1.442695
    %v1462 = vpow.pop %v1461
    %v1463 = vmul.f32 %v1424, 1.442695
    %v1464 = vpow.pop %v1463
    %v1465 = vmul.f32 %v235, %v1426
    %v1466 = vmul.f32 %v236, %v1428
    %v1467 = vmul.f32 %v237, %v1430
    %v1468 = vmul.f32 %v238, %v1432
    %v1469 = vmul.f32 %v239, %v1434
    %v1470 = vmul.f32 %v240, %v1436
    %v1471 = vmul.f32 %v241, %v1438
    %v1472 = vmul.f32 %v242, %v1440
    %v1473 = vmul.f32 %v243, %v1442
    %v1474 = vmul.f32 %v244, %v1444
    %v1475 = vmul.f32 %v245, %v1446
    %v1476 = vmul.f32 %v246, %v1448
    %v1477 = vmul.f32 %v247, %v1450
    %v1478 = vmul.f32 %v248, %v1452
    %v1479 = vmul.f32 %v249, %v1454
    %v1480 = vmul.f32 %v250, %v1456
    %v1481 = vmul.f32 %v251, %v1458
    %v1482 = vmul.f32 %v252, %v1460
    %v1483 = vmul.f32 %v253, %v1462
    %v1484 = vmul.f32 %v254, %v1464
    %v1485 = vsel %vm273, %v1465, 0.0
    %v1486 = vsel %vm273, %v1467, 0.0
    %v1487 = vadd.f32 %v1485, %v1486
    %v1488 = vsel %vm273, %v1469, 0.0
    %v1489 = vadd.f32 %v1487, %v1488
    %v1490 = vsel %vm273, %v1471, 0.0
    %v1491 = vadd.f32 %v1489, %v1490
    %v1492 = vsel %vm273, %v1473, 0.0
    %v1493 = vadd.f32 %v1491, %v1492
    %v1494 = vsel %vm273, %v1475, 0.0
    %v1495 = vadd.f32 %v1493, %v1494
    %v1496 = vsel %vm273, %v1477, 0.0
    %v1497 = vadd.f32 %v1495, %v1496
    %v1498 = vsel %vm273, %v1479, 0.0
    %v1499 = vadd.f32 %v1497, %v1498
    %v1500 = vsel %vm273, %v1481, 0.0
    %v1501 = vadd.f32 %v1499, %v1500
    %v1502 = vsel %vm273, %v1483, 0.0
    %v1503 = vadd.f32 %v1501, %v1502
    %v1504 = vsel %vm654, %v1466, 0.0
    %v1505 = vsel %vm654, %v1468, 0.0
    %v1506 = vadd.f32 %v1504, %v1505
    %v1507 = vsel %vm654, %v1470, 0.0
    %v1508 = vadd.f32 %v1506, %v1507
    %v1509 = vsel %vm654, %v1472, 0.0
    %v1510 = vadd.f32 %v1508, %v1509
    %v1511 = vsel %vm654, %v1474, 0.0
    %v1512 = vadd.f32 %v1510, %v1511
    %v1513 = vsel %vm654, %v1476, 0.0
    %v1514 = vadd.f32 %v1512, %v1513
    %v1515 = vsel %vm654, %v1478, 0.0
    %v1516 = vadd.f32 %v1514, %v1515
    %v1517 = vsel %vm654, %v1480, 0.0
    %v1518 = vadd.f32 %v1516, %v1517
    %v1519 = vsel %vm654, %v1482, 0.0
    %v1520 = vadd.f32 %v1518, %v1519
    %v1521 = vsel %vm654, %v1484, 0.0
    %v1522 = vadd.f32 %v1520, %v1521
    %v1523 = vadd.f32 %v1503, 1e-16
    %v1524 = vadd.f32 %v1522, 1e-16
    %v1527 = vcombine.high %v1079, %v1079
    %v1529 = vunpack.c.l.s4 1966171168
    %v1530 = vunpack.c.0.s8 %v1529
    %v1531 = vlaneseq
    %v1532 = vshrl.u32 %v1531, 7
    %v1533 = vsub.s32 %v1530, %v1532
    %v1534 = vrot.slane %v1079, %v1533
    %v1536 = vunpack.c.l.s4 1966171168
    %v1537 = vunpack.c.0.s8 %v1536
    %v1538 = vlaneseq
    %v1539 = vshrl.u32 %v1538, 7
    %v1540 = vsub.s32 %v1537, %v1539
    %v1541 = vrot.slane %v1527, %v1540
    %v1542 = vcombine.high %v1534, %v1534
    %v1543 = vcombine.high %v1541, %v1541
    %v1545 = vunpack.c.l.s4 1966171168
    %v1546 = vunpack.c.0.s8 %v1545
    %v1547 = vlaneseq
    %v1548 = vshrl.u32 %v1547, 7
    %v1549 = vsub.s32 %v1546, %v1548
    %v1550 = vrot.slane %v1534, %v1549
    %v1552 = vunpack.c.l.s4 1966171168
    %v1553 = vunpack.c.0.s8 %v1552
    %v1554 = vlaneseq
    %v1555 = vshrl.u32 %v1554, 7
    %v1556 = vsub.s32 %v1553, %v1555
    %v1557 = vrot.slane %v1541, %v1556
    %v1559 = vunpack.c.l.s4 1966171168
    %v1560 = vunpack.c.0.s8 %v1559
    %v1561 = vlaneseq
    %v1562 = vshrl.u32 %v1561, 7
    %v1563 = vsub.s32 %v1560, %v1562
    %v1564 = vrot.slane %v1542, %v1563
    %v1566 = vunpack.c.l.s4 1966171168
    %v1567 = vunpack.c.0.s8 %v1566
    %v1568 = vlaneseq
    %v1569 = vshrl.u32 %v1568, 7
    %v1570 = vsub.s32 %v1567, %v1569
    %v1571 = vrot.slane %v1543, %v1570
    %v1572 = vcombine.high %v1550, %v1550
    %v1573 = vcombine.high %v1557, %v1557
    %v1574 = vcombine.high %v1564, %v1564
    %v1575 = vcombine.high %v1571, %v1571
    %v1577 = vunpack.c.l.s4 1966171168
    %v1578 = vunpack.c.0.s8 %v1577
    %v1579 = vlaneseq
    %v1580 = vshrl.u32 %v1579, 7
    %v1581 = vsub.s32 %v1578, %v1580
    %v1582 = vrot.slane %v1085, %v1581
    %v1583 = vcombine.high %v1582, %v1582
    %v1585 = vunpack.c.l.s4 1966171168
    %v1586 = vunpack.c.0.s8 %v1585
    %v1587 = vlaneseq
    %v1588 = vshrl.u32 %v1587, 7
    %v1589 = vsub.s32 %v1586, %v1588
    %v1590 = vrot.slane %v1582, %v1589
    %v1592 = vunpack.c.l.s4 1966171168
    %v1593 = vunpack.c.0.s8 %v1592
    %v1594 = vlaneseq
    %v1595 = vshrl.u32 %v1594, 7
    %v1596 = vsub.s32 %v1593, %v1595
    %v1597 = vrot.slane %v1583, %v1596
    %v1598 = vlaneseq
    %v1599 = vshrl.u32 %v1598, 7
    %v1600 = vsub.s32 0, %v1599
    %v1601 = vrot.slane %v1550, %v1600
    %v1602 = vlaneseq
    %v1603 = vshrl.u32 %v1602, 7
    %v1604 = vsub.s32 0, %v1603
    %v1605 = vrot.slane %v1564, %v1604
    %v1606 = vlaneseq
    %v1607 = vshrl.u32 %v1606, 7
    %v1608 = vsub.s32 0, %v1607
    %v1609 = vrot.slane %v1572, %v1608
    %v1610 = vlaneseq
    %v1611 = vshrl.u32 %v1610, 7
    %v1612 = vsub.s32 0, %v1611
    %v1613 = vrot.slane %v1574, %v1612
    %v1614 = vlaneseq
    %v1615 = vshrl.u32 %v1614, 7
    %v1616 = vsub.s32 0, %v1615
    %v1617 = vrot.slane %v1557, %v1616
    %v1618 = vlaneseq
    %v1619 = vshrl.u32 %v1618, 7
    %v1620 = vsub.s32 0, %v1619
    %v1621 = vrot.slane %v1571, %v1620
    %v1622 = vlaneseq
    %v1623 = vshrl.u32 %v1622, 7
    %v1624 = vsub.s32 0, %v1623
    %v1625 = vrot.slane %v1573, %v1624
    %v1626 = vlaneseq
    %v1627 = vshrl.u32 %v1626, 7
    %v1628 = vsub.s32 0, %v1627
    %v1629 = vrot.slane %v1575, %v1628
    %v1630 = vlaneseq
    %v1631 = vshrl.u32 %v1630, 7
    %v1632 = vsub.s32 0, %v1631
    %v1633 = vrot.slane %v1590, %v1632
    %v1634 = vlaneseq
    %v1635 = vshrl.u32 %v1634, 7
    %v1636 = vsub.s32 0, %v1635
    %v1637 = vrot.slane %v1597, %v1636
    %v1648 = vmul.f32 %v1465, %v1601
    %v1649 = vmul.f32 %v1466, %v1601
    %v1650 = vmul.f32 %v1467, %v1605
    %v1651 = vmul.f32 %v1468, %v1605
    %v1652 = vmul.f32 %v1469, %v1609
    %v1653 = vmul.f32 %v1470, %v1609
    %v1654 = vmul.f32 %v1471, %v1613
    %v1655 = vmul.f32 %v1472, %v1613
    %v1656 = vmul.f32 %v1473, %v1617
    %v1657 = vmul.f32 %v1474, %v1617
    %v1658 = vmul.f32 %v1475, %v1621
    %v1659 = vmul.f32 %v1476, %v1621
    %v1660 = vmul.f32 %v1477, %v1625
    %v1661 = vmul.f32 %v1478, %v1625
    %v1662 = vmul.f32 %v1479, %v1629
    %v1663 = vmul.f32 %v1480, %v1629
    %v1664 = vmul.f32 %v1481, %v1633
    %v1665 = vmul.f32 %v1482, %v1633
    %v1666 = vmul.f32 %v1483, %v1637
    %v1667 = vmul.f32 %v1484, %v1637
    %v1668 = vsel %vm273, %v1648, 0.0
    %v1669 = vsel %vm273, %v1650, 0.0
    %v1670 = vadd.f32 %v1668, %v1669
    %v1671 = vsel %vm273, %v1652, 0.0
    %v1672 = vadd.f32 %v1670, %v1671
    %v1673 = vsel %vm273, %v1654, 0.0
    %v1674 = vadd.f32 %v1672, %v1673
    %v1675 = vsel %vm273, %v1656, 0.0
    %v1676 = vadd.f32 %v1674, %v1675
    %v1677 = vsel %vm273, %v1658, 0.0
    %v1678 = vadd.f32 %v1676, %v1677
    %v1679 = vsel %vm273, %v1660, 0.0
    %v1680 = vadd.f32 %v1678, %v1679
    %v1681 = vsel %vm273, %v1662, 0.0
    %v1682 = vadd.f32 %v1680, %v1681
    %v1683 = vsel %vm273, %v1664, 0.0
    %v1684 = vadd.f32 %v1682, %v1683
    %v1685 = vsel %vm273, %v1666, 0.0
    %v1686 = vadd.f32 %v1684, %v1685
    %v1687 = vsel %vm654, %v1649, 0.0
    %v1688 = vsel %vm654, %v1651, 0.0
    %v1689 = vadd.f32 %v1687, %v1688
    %v1690 = vsel %vm654, %v1653, 0.0
    %v1691 = vadd.f32 %v1689, %v1690
    %v1692 = vsel %vm654, %v1655, 0.0
    %v1693 = vadd.f32 %v1691, %v1692
    %v1694 = vsel %vm654, %v1657, 0.0
    %v1695 = vadd.f32 %v1693, %v1694
    %v1696 = vsel %vm654, %v1659, 0.0
    %v1697 = vadd.f32 %v1695, %v1696
    %v1698 = vsel %vm654, %v1661, 0.0
    %v1699 = vadd.f32 %v1697, %v1698
    %v1700 = vsel %vm654, %v1663, 0.0
    %v1701 = vadd.f32 %v1699, %v1700
    %v1702 = vsel %vm654, %v1665, 0.0
    %v1703 = vadd.f32 %v1701, %v1702
    %v1704 = vsel %vm654, %v1667, 0.0
    %v1705 = vadd.f32 %v1703, %v1704
    %v1706 = vrcp.pop %v1523
    %v1707 = vrcp.pop %v1524
    %v1708 = vmul.f32 %v1686, %v1706
    %v1709 = vmul.f32 %v1705, %v1707
    %vm1710 = vcmp.gt.f32.partialorder %v1708, 0.0
    %vm1711 = vcmp.gt.f32.partialorder %v1709, 0.0
    %v1712 = vmul.f32 %v1708, 0.01
    %v1713 = vmul.f32 %v1709, 0.01
    %v1714 = vsel %vm1710, %v1708, %v1712
    %v1715 = vsel %vm1711, %v1709, %v1713
    %v1716 = vadd.f32 %v1714, %v227
    %v1717 = vadd.f32 %v1715, %v232
    %s1718 = scalar_lea.vmem [#allocation6], 288
    %v1719 = vld [vmem:[%s1718] sm:$0xff]
    %v1720 = vld [vmem:[%s1718 + $0x8] sm:$0xff]
    %v1721 = vld [vmem:[%s1718 + $0x10] sm:$0xff]
    %v1722 = vld [vmem:[%s1718 + $0x18] sm:$0xff]
    %v1723 = vld [vmem:[%s1718 + $0x20] sm:$0xff]
    %v1724 = vld [vmem:[%s1718 + $0x28] sm:$0xff]
    %v1725 = vld [vmem:[%s1718 + $0x30] sm:$0xff]
    %v1726 = vld [vmem:[%s1718 + $0x38] sm:$0xff]
    %v1727 = vld [vmem:[%s1718 + $0x40] sm:$0xff]
    %v1728 = vld [vmem:[%s1718 + $0x48] sm:$0xff]
    %v1729 = vld [vmem:[%s1718 + $0x50] sm:$0xff]
    %v1730 = vld [vmem:[%s1718 + $0x58] sm:$0xff]
    %v1731 = vld [vmem:[%s1718 + $0x60] sm:$0xff]
    %v1732 = vld [vmem:[%s1718 + $0x68] sm:$0xff]
    %v1733 = vld [vmem:[%s1718 + $0x70] sm:$0xff]
    %v1734 = vld [vmem:[%s1718 + $0x78] sm:$0xff]
    %v1735 = vld [vmem:[%s1718 + $0x80] sm:$0xff]
    %v1736 = vld [vmem:[%s1718 + $0x88] sm:$0xff]
    %v1738 = vsel %vm273, %v1716, 0
    %v1741 = vsel %vm273, %v1717, 0
    %1743 = vmatprep.subr.mxu0 %v1720
    %1744 = vmatpush1.msra.mxu0 %v1719
    %1745 = vmatprep.subr.mxu0 %v1723
    %1746 = vmatpush1.msra.mxu0 %v1722
    %1747 = vmatprep.subr.mxu0 %v1726
    %1748 = vmatpush1.msra.mxu0 %v1725
    %1749 = vmatprep.subr.mxu0 %v1729
    %1750 = vmatpush1.msra.mxu0 %v1728
    %1751 = vmatprep.subr.mxu0 %v1732
    %1752 = vmatpush1.msra.mxu0 %v1731
    %1753 = vmatprep.subr.mxu0 %v1735
    %1754 = vmatpush1.msra.mxu0 %v1734
    %1755 = vmatprep.subr.mxu0 0.0
    %1756 = vmatpush1.msra.mxu0 0.0
    %1757 = vmatprep.subr.mxu0 0.0
    %1758 = vmatpush1.msra.mxu0 0.0
    %1759 = vmatprep.subr.mxu0 0.0
    %1760 = vmatpush1.msra.mxu0 0.0
    %1761 = vmatprep.subr.mxu0 0.0
    %1762 = vmatpush1.msra.mxu0 0.0
    %1763 = vmatprep.subr.mxu0 0.0
    %1764 = vmatpush1.msra.mxu0 0.0
    %1765 = vmatprep.subr.mxu0 0.0
    %1766 = vmatpush1.msra.mxu0 0.0
    %1767 = vmatprep.subr.mxu0 0.0
    %1768 = vmatpush1.msra.mxu0 0.0
    %1769 = vmatprep.subr.mxu0 0.0
    %1770 = vmatpush1.msra.mxu0 0.0
    %1771 = vmatprep.subr.mxu0 0.0
    %1772 = vmatpush1.msra.mxu0 0.0
    %1773 = vmatprep.subr.mxu0 0.0
    %1774 = vmatpush1.msra.mxu0 0.0
    %1775 = vmatprep.subr.mxu0 0.0
    %1776 = vmatpush1.msra.mxu0 0.0
    %1777 = vmatprep.subr.mxu0 0.0
    %1778 = vmatpush1.msra.mxu0 0.0
    %1779 = vmatprep.subr.mxu0 0.0
    %1780 = vmatpush1.msra.mxu0 0.0
    %1781 = vmatprep.subr.mxu0 0.0
    %1782 = vmatpush1.msra.mxu0 0.0
    %1783 = vmatprep.subr.mxu0 0.0
    %1784 = vmatpush1.msra.mxu0 0.0
    %1785 = vmatprep.subr.mxu0 0.0
    %1786 = vmatpush1.msra.mxu0 0.0
    %1787 = vmatprep.subr.mxu0 0.0
    %1788 = vmatpush1.msra.mxu0 0.0
    %1789 = vmatprep.subr.mxu0 0.0
    %1790 = vmatpush1.msra.mxu0 0.0
    %1791 = vmatprep.subr.mxu0 0.0
    %1792 = vmatpush1.msra.mxu0 0.0
    %1793 = vmatprep.subr.mxu0 0.0
    %1794 = vmatpush1.msra.mxu0 0.0
    %1795 = vmatprep.subr.mxu0 0.0
    %1796 = vmatpush1.msra.mxu0 0.0
    %1797 = vmatprep.subr.mxu0 0.0
    %1798 = vmatpush1.msra.mxu0 0.0
    %1799 = vmatprep.subr.mxu0 0.0
    %1800 = vmatpush1.msra.mxu0 0.0
    %1801 = vmatprep.subr.mxu0 0.0
    %1802 = vmatpush1.msra.mxu0 0.0
    %1803 = vmatprep.subr.mxu0 0.0
    %1804 = vmatpush1.msra.mxu0 0.0
    %1805 = vmatprep.subr.mxu0 0.0
    %1806 = vmatpush1.msra.mxu0 0.0
    %1807 = vmatprep.mubr.f32.mxu0 0.0
    %1808 = vmatmul.mubr.f32.gmra.mrb[0].mxu0 %v1738
    %v1809 = vpop.f32.mrb[0].mxu0
    %v1810 = vadd.f32 0.0, %v1809
    %v1811 = vpop.f32.mrb[0].mxu0
    %v1812 = vadd.f32 0.0, %v1811
    %1813 = vmatprep.mubr.f32.mxu0 0.0
    %1814 = vmatmul.mubr.f32.gmra.mrb[0].mxu0 %v1741
    %v1815 = vpop.f32.mrb[0].mxu0
    %v1816 = vadd.f32 0.0, %v1815
    %v1817 = vpop.f32.mrb[0].mxu0
    %v1818 = vadd.f32 0.0, %v1817
    %1819 = vdwg.mxu0
    %1820 = vmatprep.subr.mxu0 0.0
    %1821 = vmatpush1.msra.mxu0 %v1721
    %1822 = vmatprep.subr.mxu0 0.0
    %1823 = vmatpush1.msra.mxu0 %v1724
    %1824 = vmatprep.subr.mxu0 0.0
    %1825 = vmatpush1.msra.mxu0 %v1727
    %1826 = vmatprep.subr.mxu0 0.0
    %1827 = vmatpush1.msra.mxu0 %v1730
    %1828 = vmatprep.subr.mxu0 0.0
    %1829 = vmatpush1.msra.mxu0 %v1733
    %1830 = vmatprep.subr.mxu0 0.0
    %1831 = vmatpush1.msra.mxu0 %v1736
    %1832 = vmatprep.subr.mxu0 0.0
    %1833 = vmatpush1.msra.mxu0 0.0
    %1834 = vmatprep.subr.mxu0 0.0
    %1835 = vmatpush1.msra.mxu0 0.0
    %1836 = vmatprep.subr.mxu0 0.0
    %1837 = vmatpush1.msra.mxu0 0.0
    %1838 = vmatprep.subr.mxu0 0.0
    %1839 = vmatpush1.msra.mxu0 0.0
    %1840 = vmatprep.subr.mxu0 0.0
    %1841 = vmatpush1.msra.mxu0 0.0
    %1842 = vmatprep.subr.mxu0 0.0
    %1843 = vmatpush1.msra.mxu0 0.0
    %1844 = vmatprep.subr.mxu0 0.0
    %1845 = vmatpush1.msra.mxu0 0.0
    %1846 = vmatprep.subr.mxu0 0.0
    %1847 = vmatpush1.msra.mxu0 0.0
    %1848 = vmatprep.subr.mxu0 0.0
    %1849 = vmatpush1.msra.mxu0 0.0
    %1850 = vmatprep.subr.mxu0 0.0
    %1851 = vmatpush1.msra.mxu0 0.0
    %1852 = vmatprep.subr.mxu0 0.0
    %1853 = vmatpush1.msra.mxu0 0.0
    %1854 = vmatprep.subr.mxu0 0.0
    %1855 = vmatpush1.msra.mxu0 0.0
    %1856 = vmatprep.subr.mxu0 0.0
    %1857 = vmatpush1.msra.mxu0 0.0
    %1858 = vmatprep.subr.mxu0 0.0
    %1859 = vmatpush1.msra.mxu0 0.0
    %1860 = vmatprep.subr.mxu0 0.0
    %1861 = vmatpush1.msra.mxu0 0.0
    %1862 = vmatprep.subr.mxu0 0.0
    %1863 = vmatpush1.msra.mxu0 0.0
    %1864 = vmatprep.subr.mxu0 0.0
    %1865 = vmatpush1.msra.mxu0 0.0
    %1866 = vmatprep.subr.mxu0 0.0
    %1867 = vmatpush1.msra.mxu0 0.0
    %1868 = vmatprep.subr.mxu0 0.0
    %1869 = vmatpush1.msra.mxu0 0.0
    %1870 = vmatprep.subr.mxu0 0.0
    %1871 = vmatpush1.msra.mxu0 0.0
    %1872 = vmatprep.subr.mxu0 0.0
    %1873 = vmatpush1.msra.mxu0 0.0
    %1874 = vmatprep.subr.mxu0 0.0
    %1875 = vmatpush1.msra.mxu0 0.0
    %1876 = vmatprep.subr.mxu0 0.0
    %1877 = vmatpush1.msra.mxu0 0.0
    %1878 = vmatprep.subr.mxu0 0.0
    %1879 = vmatpush1.msra.mxu0 0.0
    %1880 = vmatprep.subr.mxu0 0.0
    %1881 = vmatpush1.msra.mxu0 0.0
    %1882 = vmatprep.subr.mxu0 0.0
    %1883 = vmatpush1.msra.mxu0 0.0
    %1884 = vmatprep.mubr.f32.mxu0 0.0
    %1885 = vmatmul.mubr.f32.gmra.mrb[0].mxu0 %v1738
    %v1886 = vpop.f32.mrb[0].mxu0
    %v1887 = vadd.f32 0.0, %v1886
    %v1888 = vpop.f32.mrb[0].mxu0
    %1889 = vmatprep.mubr.f32.mxu0 0.0
    %1890 = vmatmul.mubr.f32.gmra.mrb[0].mxu0 %v1741
    %v1891 = vpop.f32.mrb[0].mxu0
    %v1892 = vadd.f32 0.0, %v1891
    %v1893 = vpop.f32.mrb[0].mxu0
    %1894 = vdwg.mxu0
    %v1897 = vcombine.high %v1812, %v1812
    %v1899 = vunpack.c.l.s4 1966171168
    %v1900 = vunpack.c.0.s8 %v1899
    %v1901 = vlaneseq
    %v1902 = vshrl.u32 %v1901, 7
    %v1903 = vsub.s32 %v1900, %v1902
    %v1904 = vrot.slane %v1812, %v1903
    %v1906 = vunpack.c.l.s4 1966171168
    %v1907 = vunpack.c.0.s8 %v1906
    %v1908 = vlaneseq
    %v1909 = vshrl.u32 %v1908, 7
    %v1910 = vsub.s32 %v1907, %v1909
    %v1911 = vrot.slane %v1897, %v1910
    %v1912 = vcombine.high %v1904, %v1904
    %v1913 = vcombine.high %v1911, %v1911
    %v1915 = vunpack.c.l.s4 1966171168
    %v1916 = vunpack.c.0.s8 %v1915
    %v1917 = vlaneseq
    %v1918 = vshrl.u32 %v1917, 7
    %v1919 = vsub.s32 %v1916, %v1918
    %v1920 = vrot.slane %v1904, %v1919
    %v1922 = vunpack.c.l.s4 1966171168
    %v1923 = vunpack.c.0.s8 %v1922
    %v1924 = vlaneseq
    %v1925 = vshrl.u32 %v1924, 7
    %v1926 = vsub.s32 %v1923, %v1925
    %v1927 = vrot.slane %v1911, %v1926
    %v1929 = vunpack.c.l.s4 1966171168
    %v1930 = vunpack.c.0.s8 %v1929
    %v1931 = vlaneseq
    %v1932 = vshrl.u32 %v1931, 7
    %v1933 = vsub.s32 %v1930, %v1932
    %v1934 = vrot.slane %v1912, %v1933
    %v1936 = vunpack.c.l.s4 1966171168
    %v1937 = vunpack.c.0.s8 %v1936
    %v1938 = vlaneseq
    %v1939 = vshrl.u32 %v1938, 7
    %v1940 = vsub.s32 %v1937, %v1939
    %v1941 = vrot.slane %v1913, %v1940
    %v1942 = vcombine.high %v1920, %v1920
    %v1943 = vcombine.high %v1927, %v1927
    %v1944 = vcombine.high %v1934, %v1934
    %v1945 = vcombine.high %v1941, %v1941
    %v1947 = vunpack.c.l.s4 1966171168
    %v1948 = vunpack.c.0.s8 %v1947
    %v1949 = vlaneseq
    %v1950 = vshrl.u32 %v1949, 7
    %v1951 = vsub.s32 %v1948, %v1950
    %v1952 = vrot.slane %v1818, %v1951
    %v1953 = vcombine.high %v1952, %v1952
    %v1955 = vunpack.c.l.s4 1966171168
    %v1956 = vunpack.c.0.s8 %v1955
    %v1957 = vlaneseq
    %v1958 = vshrl.u32 %v1957, 7
    %v1959 = vsub.s32 %v1956, %v1958
    %v1960 = vrot.slane %v1952, %v1959
    %v1962 = vunpack.c.l.s4 1966171168
    %v1963 = vunpack.c.0.s8 %v1962
    %v1964 = vlaneseq
    %v1965 = vshrl.u32 %v1964, 7
    %v1966 = vsub.s32 %v1963, %v1965
    %v1967 = vrot.slane %v1953, %v1966
    %v1968 = vlaneseq
    %v1969 = vshrl.u32 %v1968, 7
    %v1970 = vsub.s32 0, %v1969
    %v1971 = vrot.slane %v1920, %v1970
    %v1972 = vlaneseq
    %v1973 = vshrl.u32 %v1972, 7
    %v1974 = vsub.s32 0, %v1973
    %v1975 = vrot.slane %v1934, %v1974
    %v1976 = vlaneseq
    %v1977 = vshrl.u32 %v1976, 7
    %v1978 = vsub.s32 0, %v1977
    %v1979 = vrot.slane %v1942, %v1978
    %v1980 = vlaneseq
    %v1981 = vshrl.u32 %v1980, 7
    %v1982 = vsub.s32 0, %v1981
    %v1983 = vrot.slane %v1944, %v1982
    %v1984 = vlaneseq
    %v1985 = vshrl.u32 %v1984, 7
    %v1986 = vsub.s32 0, %v1985
    %v1987 = vrot.slane %v1927, %v1986
    %v1988 = vlaneseq
    %v1989 = vshrl.u32 %v1988, 7
    %v1990 = vsub.s32 0, %v1989
    %v1991 = vrot.slane %v1941, %v1990
    %v1992 = vlaneseq
    %v1993 = vshrl.u32 %v1992, 7
    %v1994 = vsub.s32 0, %v1993
    %v1995 = vrot.slane %v1943, %v1994
    %v1996 = vlaneseq
    %v1997 = vshrl.u32 %v1996, 7
    %v1998 = vsub.s32 0, %v1997
    %v1999 = vrot.slane %v1945, %v1998
    %v2000 = vlaneseq
    %v2001 = vshrl.u32 %v2000, 7
    %v2002 = vsub.s32 0, %v2001
    %v2003 = vrot.slane %v1960, %v2002
    %v2004 = vlaneseq
    %v2005 = vshrl.u32 %v2004, 7
    %v2006 = vsub.s32 0, %v2005
    %v2007 = vrot.slane %v1967, %v2006
    %v2018 = vadd.f32 %v1971, %v1887
    %v2019 = vadd.f32 %v1971, %v1892
    %v2020 = vadd.f32 %v1975, %v1887
    %v2021 = vadd.f32 %v1975, %v1892
    %v2022 = vadd.f32 %v1979, %v1887
    %v2023 = vadd.f32 %v1979, %v1892
    %v2024 = vadd.f32 %v1983, %v1887
    %v2025 = vadd.f32 %v1983, %v1892
    %v2026 = vadd.f32 %v1987, %v1887
    %v2027 = vadd.f32 %v1987, %v1892
    %v2028 = vadd.f32 %v1991, %v1887
    %v2029 = vadd.f32 %v1991, %v1892
    %v2030 = vadd.f32 %v1995, %v1887
    %v2031 = vadd.f32 %v1995, %v1892
    %v2032 = vadd.f32 %v1999, %v1887
    %v2033 = vadd.f32 %v1999, %v1892
    %v2034 = vadd.f32 %v2003, %v1887
    %v2035 = vadd.f32 %v2003, %v1892
    %v2036 = vadd.f32 %v2007, %v1887
    %v2037 = vadd.f32 %v2007, %v1892
    %vm2038 = vcmp.gt.f32.partialorder %v2018, 0.0
    %vm2039 = vcmp.gt.f32.partialorder %v2019, 0.0
    %vm2040 = vcmp.gt.f32.partialorder %v2020, 0.0
    %vm2041 = vcmp.gt.f32.partialorder %v2021, 0.0
    %vm2042 = vcmp.gt.f32.partialorder %v2022, 0.0
    %vm2043 = vcmp.gt.f32.partialorder %v2023, 0.0
    %vm2044 = vcmp.gt.f32.partialorder %v2024, 0.0
    %vm2045 = vcmp.gt.f32.partialorder %v2025, 0.0
    %vm2046 = vcmp.gt.f32.partialorder %v2026, 0.0
    %vm2047 = vcmp.gt.f32.partialorder %v2027, 0.0
    %vm2048 = vcmp.gt.f32.partialorder %v2028, 0.0
    %vm2049 = vcmp.gt.f32.partialorder %v2029, 0.0
    %vm2050 = vcmp.gt.f32.partialorder %v2030, 0.0
    %vm2051 = vcmp.gt.f32.partialorder %v2031, 0.0
    %vm2052 = vcmp.gt.f32.partialorder %v2032, 0.0
    %vm2053 = vcmp.gt.f32.partialorder %v2033, 0.0
    %vm2054 = vcmp.gt.f32.partialorder %v2034, 0.0
    %vm2055 = vcmp.gt.f32.partialorder %v2035, 0.0
    %vm2056 = vcmp.gt.f32.partialorder %v2036, 0.0
    %vm2057 = vcmp.gt.f32.partialorder %v2037, 0.0
    %v2058 = vmul.f32 %v2018, 0.2
    %v2059 = vmul.f32 %v2019, 0.2
    %v2060 = vmul.f32 %v2020, 0.2
    %v2061 = vmul.f32 %v2021, 0.2
    %v2062 = vmul.f32 %v2022, 0.2
    %v2063 = vmul.f32 %v2023, 0.2
    %v2064 = vmul.f32 %v2024, 0.2
    %v2065 = vmul.f32 %v2025, 0.2
    %v2066 = vmul.f32 %v2026, 0.2
    %v2067 = vmul.f32 %v2027, 0.2
    %v2068 = vmul.f32 %v2028, 0.2
    %v2069 = vmul.f32 %v2029, 0.2
    %v2070 = vmul.f32 %v2030, 0.2
    %v2071 = vmul.f32 %v2031, 0.2
    %v2072 = vmul.f32 %v2032, 0.2
    %v2073 = vmul.f32 %v2033, 0.2
    %v2074 = vmul.f32 %v2034, 0.2
    %v2075 = vmul.f32 %v2035, 0.2
    %v2076 = vmul.f32 %v2036, 0.2
    %v2077 = vmul.f32 %v2037, 0.2
    %v2078 = vsel %vm2038, %v2018, %v2058
    %v2079 = vsel %vm2039, %v2019, %v2059
    %v2080 = vsel %vm2040, %v2020, %v2060
    %v2081 = vsel %vm2041, %v2021, %v2061
    %v2082 = vsel %vm2042, %v2022, %v2062
    %v2083 = vsel %vm2043, %v2023, %v2063
    %v2084 = vsel %vm2044, %v2024, %v2064
    %v2085 = vsel %vm2045, %v2025, %v2065
    %v2086 = vsel %vm2046, %v2026, %v2066
    %v2087 = vsel %vm2047, %v2027, %v2067
    %v2088 = vsel %vm2048, %v2028, %v2068
    %v2089 = vsel %vm2049, %v2029, %v2069
    %v2090 = vsel %vm2050, %v2030, %v2070
    %v2091 = vsel %vm2051, %v2031, %v2071
    %v2092 = vsel %vm2052, %v2032, %v2072
    %v2093 = vsel %vm2053, %v2033, %v2073
    %v2094 = vsel %vm2054, %v2034, %v2074
    %v2095 = vsel %vm2055, %v2035, %v2075
    %v2096 = vsel %vm2056, %v2036, %v2076
    %v2097 = vsel %vm2057, %v2037, %v2077
    %v2098 = vsel %vm273, %v2078, -inf
    %v2099 = vsel %vm273, %v2080, -inf
    %v2100 = vsel %vm273, %v2082, -inf
    %v2101 = vmax.f32 %v2098, %v2100
    %v2102 = vsel %vm273, %v2084, -inf
    %v2103 = vmax.f32 %v2099, %v2102
    %v2104 = vsel %vm273, %v2086, -inf
    %v2105 = vmax.f32 %v2101, %v2104
    %v2106 = vsel %vm273, %v2088, -inf
    %v2107 = vmax.f32 %v2103, %v2106
    %v2108 = vsel %vm273, %v2090, -inf
    %v2109 = vmax.f32 %v2105, %v2108
    %v2110 = vsel %vm273, %v2092, -inf
    %v2111 = vmax.f32 %v2107, %v2110
    %v2112 = vsel %vm273, %v2094, -inf
    %v2113 = vmax.f32 %v2109, %v2112
    %v2114 = vsel %vm273, %v2096, -inf
    %v2115 = vmax.f32 %v2111, %v2114
    %v2116 = vmax.f32 %v2113, %v2115
    %v2117 = vsel %vm654, %v2079, -inf
    %v2118 = vsel %vm654, %v2081, -inf
    %v2119 = vsel %vm654, %v2083, -inf
    %v2120 = vmax.f32 %v2117, %v2119
    %v2121 = vsel %vm654, %v2085, -inf
    %v2122 = vmax.f32 %v2118, %v2121
    %v2123 = vsel %vm654, %v2087, -inf
    %v2124 = vmax.f32 %v2120, %v2123
    %v2125 = vsel %vm654, %v2089, -inf
    %v2126 = vmax.f32 %v2122, %v2125
    %v2127 = vsel %vm654, %v2091, -inf
    %v2128 = vmax.f32 %v2124, %v2127
    %v2129 = vsel %vm654, %v2093, -inf
    %v2130 = vmax.f32 %v2126, %v2129
    %v2131 = vsel %vm654, %v2095, -inf
    %v2132 = vmax.f32 %v2128, %v2131
    %v2133 = vsel %vm654, %v2097, -inf
    %v2134 = vmax.f32 %v2130, %v2133
    %v2135 = vmax.f32 %v2132, %v2134
    %v2136 = vsub.f32 %v2078, %v2116
    %v2137 = vsub.f32 %v2079, %v2135
    %v2138 = vsub.f32 %v2080, %v2116
    %v2139 = vsub.f32 %v2081, %v2135
    %v2140 = vsub.f32 %v2082, %v2116
    %v2141 = vsub.f32 %v2083, %v2135
    %v2142 = vsub.f32 %v2084, %v2116
    %v2143 = vsub.f32 %v2085, %v2135
    %v2144 = vsub.f32 %v2086, %v2116
    %v2145 = vsub.f32 %v2087, %v2135
    %v2146 = vsub.f32 %v2088, %v2116
    %v2147 = vsub.f32 %v2089, %v2135
    %v2148 = vsub.f32 %v2090, %v2116
    %v2149 = vsub.f32 %v2091, %v2135
    %v2150 = vsub.f32 %v2092, %v2116
    %v2151 = vsub.f32 %v2093, %v2135
    %v2152 = vsub.f32 %v2094, %v2116
    %v2153 = vsub.f32 %v2095, %v2135
    %v2154 = vsub.f32 %v2096, %v2116
    %v2155 = vsub.f32 %v2097, %v2135
    %v2156 = vmul.f32 %v2136, 1.442695
    %v2157 = vpow.pop %v2156
    %v2158 = vmul.f32 %v2137, 1.442695
    %v2159 = vpow.pop %v2158
    %v2160 = vmul.f32 %v2138, 1.442695
    %v2161 = vpow.pop %v2160
    %v2162 = vmul.f32 %v2139, 1.442695
    %v2163 = vpow.pop %v2162
    %v2164 = vmul.f32 %v2140, 1.442695
    %v2165 = vpow.pop %v2164
    %v2166 = vmul.f32 %v2141, 1.442695
    %v2167 = vpow.pop %v2166
    %v2168 = vmul.f32 %v2142, 1.442695
    %v2169 = vpow.pop %v2168
    %v2170 = vmul.f32 %v2143, 1.442695
    %v2171 = vpow.pop %v2170
    %v2172 = vmul.f32 %v2144, 1.442695
    %v2173 = vpow.pop %v2172
    %v2174 = vmul.f32 %v2145, 1.442695
    %v2175 = vpow.pop %v2174
    %v2176 = vmul.f32 %v2146, 1.442695
    %v2177 = vpow.pop %v2176
    %v2178 = vmul.f32 %v2147, 1.442695
    %v2179 = vpow.pop %v2178
    %v2180 = vmul.f32 %v2148, 1.442695
    %v2181 = vpow.pop %v2180
    %v2182 = vmul.f32 %v2149, 1.442695
    %v2183 = vpow.pop %v2182
    %v2184 = vmul.f32 %v2150, 1.442695
    %v2185 = vpow.pop %v2184
    %v2186 = vmul.f32 %v2151, 1.442695
    %v2187 = vpow.pop %v2186
    %v2188 = vmul.f32 %v2152, 1.442695
    %v2189 = vpow.pop %v2188
    %v2190 = vmul.f32 %v2153, 1.442695
    %v2191 = vpow.pop %v2190
    %v2192 = vmul.f32 %v2154, 1.442695
    %v2193 = vpow.pop %v2192
    %v2194 = vmul.f32 %v2155, 1.442695
    %v2195 = vpow.pop %v2194
    %v2196 = vmul.f32 %v235, %v2157
    %v2197 = vmul.f32 %v236, %v2159
    %v2198 = vmul.f32 %v237, %v2161
    %v2199 = vmul.f32 %v238, %v2163
    %v2200 = vmul.f32 %v239, %v2165
    %v2201 = vmul.f32 %v240, %v2167
    %v2202 = vmul.f32 %v241, %v2169
    %v2203 = vmul.f32 %v242, %v2171
    %v2204 = vmul.f32 %v243, %v2173
    %v2205 = vmul.f32 %v244, %v2175
    %v2206 = vmul.f32 %v245, %v2177
    %v2207 = vmul.f32 %v246, %v2179
    %v2208 = vmul.f32 %v247, %v2181
    %v2209 = vmul.f32 %v248, %v2183
    %v2210 = vmul.f32 %v249, %v2185
    %v2211 = vmul.f32 %v250, %v2187
    %v2212 = vmul.f32 %v251, %v2189
    %v2213 = vmul.f32 %v252, %v2191
    %v2214 = vmul.f32 %v253, %v2193
    %v2215 = vmul.f32 %v254, %v2195
    %v2216 = vsel %vm273, %v2196, 0.0
    %v2217 = vsel %vm273, %v2198, 0.0
    %v2218 = vadd.f32 %v2216, %v2217
    %v2219 = vsel %vm273, %v2200, 0.0
    %v2220 = vadd.f32 %v2218, %v2219
    %v2221 = vsel %vm273, %v2202, 0.0
    %v2222 = vadd.f32 %v2220, %v2221
    %v2223 = vsel %vm273, %v2204, 0.0
    %v2224 = vadd.f32 %v2222, %v2223
    %v2225 = vsel %vm273, %v2206, 0.0
    %v2226 = vadd.f32 %v2224, %v2225
    %v2227 = vsel %vm273, %v2208, 0.0
    %v2228 = vadd.f32 %v2226, %v2227
    %v2229 = vsel %vm273, %v2210, 0.0
    %v2230 = vadd.f32 %v2228, %v2229
    %v2231 = vsel %vm273, %v2212, 0.0
    %v2232 = vadd.f32 %v2230, %v2231
    %v2233 = vsel %vm273, %v2214, 0.0
    %v2234 = vadd.f32 %v2232, %v2233
    %v2235 = vsel %vm654, %v2197, 0.0
    %v2236 = vsel %vm654, %v2199, 0.0
    %v2237 = vadd.f32 %v2235, %v2236
    %v2238 = vsel %vm654, %v2201, 0.0
    %v2239 = vadd.f32 %v2237, %v2238
    %v2240 = vsel %vm654, %v2203, 0.0
    %v2241 = vadd.f32 %v2239, %v2240
    %v2242 = vsel %vm654, %v2205, 0.0
    %v2243 = vadd.f32 %v2241, %v2242
    %v2244 = vsel %vm654, %v2207, 0.0
    %v2245 = vadd.f32 %v2243, %v2244
    %v2246 = vsel %vm654, %v2209, 0.0
    %v2247 = vadd.f32 %v2245, %v2246
    %v2248 = vsel %vm654, %v2211, 0.0
    %v2249 = vadd.f32 %v2247, %v2248
    %v2250 = vsel %vm654, %v2213, 0.0
    %v2251 = vadd.f32 %v2249, %v2250
    %v2252 = vsel %vm654, %v2215, 0.0
    %v2253 = vadd.f32 %v2251, %v2252
    %v2254 = vadd.f32 %v2234, 1e-16
    %v2255 = vadd.f32 %v2253, 1e-16
    %v2258 = vcombine.high %v1810, %v1810
    %v2260 = vunpack.c.l.s4 1966171168
    %v2261 = vunpack.c.0.s8 %v2260
    %v2262 = vlaneseq
    %v2263 = vshrl.u32 %v2262, 7
    %v2264 = vsub.s32 %v2261, %v2263
    %v2265 = vrot.slane %v1810, %v2264
    %v2267 = vunpack.c.l.s4 1966171168
    %v2268 = vunpack.c.0.s8 %v2267
    %v2269 = vlaneseq
    %v2270 = vshrl.u32 %v2269, 7
    %v2271 = vsub.s32 %v2268, %v2270
    %v2272 = vrot.slane %v2258, %v2271
    %v2273 = vcombine.high %v2265, %v2265
    %v2274 = vcombine.high %v2272, %v2272
    %v2276 = vunpack.c.l.s4 1966171168
    %v2277 = vunpack.c.0.s8 %v2276
    %v2278 = vlaneseq
    %v2279 = vshrl.u32 %v2278, 7
    %v2280 = vsub.s32 %v2277, %v2279
    %v2281 = vrot.slane %v2265, %v2280
    %v2283 = vunpack.c.l.s4 1966171168
    %v2284 = vunpack.c.0.s8 %v2283
    %v2285 = vlaneseq
    %v2286 = vshrl.u32 %v2285, 7
    %v2287 = vsub.s32 %v2284, %v2286
    %v2288 = vrot.slane %v2272, %v2287
    %v2290 = vunpack.c.l.s4 1966171168
    %v2291 = vunpack.c.0.s8 %v2290
    %v2292 = vlaneseq
    %v2293 = vshrl.u32 %v2292, 7
    %v2294 = vsub.s32 %v2291, %v2293
    %v2295 = vrot.slane %v2273, %v2294
    %v2297 = vunpack.c.l.s4 1966171168
    %v2298 = vunpack.c.0.s8 %v2297
    %v2299 = vlaneseq
    %v2300 = vshrl.u32 %v2299, 7
    %v2301 = vsub.s32 %v2298, %v2300
    %v2302 = vrot.slane %v2274, %v2301
    %v2303 = vcombine.high %v2281, %v2281
    %v2304 = vcombine.high %v2288, %v2288
    %v2305 = vcombine.high %v2295, %v2295
    %v2306 = vcombine.high %v2302, %v2302
    %v2308 = vunpack.c.l.s4 1966171168
    %v2309 = vunpack.c.0.s8 %v2308
    %v2310 = vlaneseq
    %v2311 = vshrl.u32 %v2310, 7
    %v2312 = vsub.s32 %v2309, %v2311
    %v2313 = vrot.slane %v1816, %v2312
    %v2314 = vcombine.high %v2313, %v2313
    %v2316 = vunpack.c.l.s4 1966171168
    %v2317 = vunpack.c.0.s8 %v2316
    %v2318 = vlaneseq
    %v2319 = vshrl.u32 %v2318, 7
    %v2320 = vsub.s32 %v2317, %v2319
    %v2321 = vrot.slane %v2313, %v2320
    %v2323 = vunpack.c.l.s4 1966171168
    %v2324 = vunpack.c.0.s8 %v2323
    %v2325 = vlaneseq
    %v2326 = vshrl.u32 %v2325, 7
    %v2327 = vsub.s32 %v2324, %v2326
    %v2328 = vrot.slane %v2314, %v2327
    %v2329 = vlaneseq
    %v2330 = vshrl.u32 %v2329, 7
    %v2331 = vsub.s32 0, %v2330
    %v2332 = vrot.slane %v2281, %v2331
    %v2333 = vlaneseq
    %v2334 = vshrl.u32 %v2333, 7
    %v2335 = vsub.s32 0, %v2334
    %v2336 = vrot.slane %v2295, %v2335
    %v2337 = vlaneseq
    %v2338 = vshrl.u32 %v2337, 7
    %v2339 = vsub.s32 0, %v2338
    %v2340 = vrot.slane %v2303, %v2339
    %v2341 = vlaneseq
    %v2342 = vshrl.u32 %v2341, 7
    %v2343 = vsub.s32 0, %v2342
    %v2344 = vrot.slane %v2305, %v2343
    %v2345 = vlaneseq
    %v2346 = vshrl.u32 %v2345, 7
    %v2347 = vsub.s32 0, %v2346
    %v2348 = vrot.slane %v2288, %v2347
    %v2349 = vlaneseq
    %v2350 = vshrl.u32 %v2349, 7
    %v2351 = vsub.s32 0, %v2350
    %v2352 = vrot.slane %v2302, %v2351
    %v2353 = vlaneseq
    %v2354 = vshrl.u32 %v2353, 7
    %v2355 = vsub.s32 0, %v2354
    %v2356 = vrot.slane %v2304, %v2355
    %v2357 = vlaneseq
    %v2358 = vshrl.u32 %v2357, 7
    %v2359 = vsub.s32 0, %v2358
    %v2360 = vrot.slane %v2306, %v2359
    %v2361 = vlaneseq
    %v2362 = vshrl.u32 %v2361, 7
    %v2363 = vsub.s32 0, %v2362
    %v2364 = vrot.slane %v2321, %v2363
    %v2365 = vlaneseq
    %v2366 = vshrl.u32 %v2365, 7
    %v2367 = vsub.s32 0, %v2366
    %v2368 = vrot.slane %v2328, %v2367
    %v2379 = vmul.f32 %v2196, %v2332
    %v2380 = vmul.f32 %v2197, %v2332
    %v2381 = vmul.f32 %v2198, %v2336
    %v2382 = vmul.f32 %v2199, %v2336
    %v2383 = vmul.f32 %v2200, %v2340
    %v2384 = vmul.f32 %v2201, %v2340
    %v2385 = vmul.f32 %v2202, %v2344
    %v2386 = vmul.f32 %v2203, %v2344
    %v2387 = vmul.f32 %v2204, %v2348
    %v2388 = vmul.f32 %v2205, %v2348
    %v2389 = vmul.f32 %v2206, %v2352
    %v2390 = vmul.f32 %v2207, %v2352
    %v2391 = vmul.f32 %v2208, %v2356
    %v2392 = vmul.f32 %v2209, %v2356
    %v2393 = vmul.f32 %v2210, %v2360
    %v2394 = vmul.f32 %v2211, %v2360
    %v2395 = vmul.f32 %v2212, %v2364
    %v2396 = vmul.f32 %v2213, %v2364
    %v2397 = vmul.f32 %v2214, %v2368
    %v2398 = vmul.f32 %v2215, %v2368
    %v2399 = vsel %vm273, %v2379, 0.0
    %v2400 = vsel %vm273, %v2381, 0.0
    %v2401 = vadd.f32 %v2399, %v2400
    %v2402 = vsel %vm273, %v2383, 0.0
    %v2403 = vadd.f32 %v2401, %v2402
    %v2404 = vsel %vm273, %v2385, 0.0
    %v2405 = vadd.f32 %v2403, %v2404
    %v2406 = vsel %vm273, %v2387, 0.0
    %v2407 = vadd.f32 %v2405, %v2406
    %v2408 = vsel %vm273, %v2389, 0.0
    %v2409 = vadd.f32 %v2407, %v2408
    %v2410 = vsel %vm273, %v2391, 0.0
    %v2411 = vadd.f32 %v2409, %v2410
    %v2412 = vsel %vm273, %v2393, 0.0
    %v2413 = vadd.f32 %v2411, %v2412
    %v2414 = vsel %vm273, %v2395, 0.0
    %v2415 = vadd.f32 %v2413, %v2414
    %v2416 = vsel %vm273, %v2397, 0.0
    %v2417 = vadd.f32 %v2415, %v2416
    %v2418 = vsel %vm654, %v2380, 0.0
    %v2419 = vsel %vm654, %v2382, 0.0
    %v2420 = vadd.f32 %v2418, %v2419
    %v2421 = vsel %vm654, %v2384, 0.0
    %v2422 = vadd.f32 %v2420, %v2421
    %v2423 = vsel %vm654, %v2386, 0.0
    %v2424 = vadd.f32 %v2422, %v2423
    %v2425 = vsel %vm654, %v2388, 0.0
    %v2426 = vadd.f32 %v2424, %v2425
    %v2427 = vsel %vm654, %v2390, 0.0
    %v2428 = vadd.f32 %v2426, %v2427
    %v2429 = vsel %vm654, %v2392, 0.0
    %v2430 = vadd.f32 %v2428, %v2429
    %v2431 = vsel %vm654, %v2394, 0.0
    %v2432 = vadd.f32 %v2430, %v2431
    %v2433 = vsel %vm654, %v2396, 0.0
    %v2434 = vadd.f32 %v2432, %v2433
    %v2435 = vsel %vm654, %v2398, 0.0
    %v2436 = vadd.f32 %v2434, %v2435
    %v2437 = vrcp.pop %v2254
    %v2438 = vrcp.pop %v2255
    %v2439 = vmul.f32 %v2417, %v2437
    %v2440 = vmul.f32 %v2436, %v2438
    %vm2441 = vcmp.gt.f32.partialorder %v2439, 0.0
    %vm2442 = vcmp.gt.f32.partialorder %v2440, 0.0
    %v2443 = vmul.f32 %v2439, 0.01
    %v2444 = vmul.f32 %v2440, 0.01
    %v2445 = vsel %vm2441, %v2439, %v2443
    %v2446 = vsel %vm2442, %v2440, %v2444
    %v2447 = vadd.f32 %v2445, %v227
    %v2448 = vadd.f32 %v2446, %v232
    %s2449 = scalar_lea.vmem [#allocation6], 432
    %v2450 = vld [vmem:[%s2449] sm:$0xff]
    %v2451 = vld [vmem:[%s2449 + $0x8] sm:$0xff]
    %v2452 = vld [vmem:[%s2449 + $0x10] sm:$0xff]
    %v2453 = vld [vmem:[%s2449 + $0x18] sm:$0xff]
    %v2454 = vld [vmem:[%s2449 + $0x20] sm:$0xff]
    %v2455 = vld [vmem:[%s2449 + $0x28] sm:$0xff]
    %v2456 = vld [vmem:[%s2449 + $0x30] sm:$0xff]
    %v2457 = vld [vmem:[%s2449 + $0x38] sm:$0xff]
    %v2458 = vld [vmem:[%s2449 + $0x40] sm:$0xff]
    %v2459 = vld [vmem:[%s2449 + $0x48] sm:$0xff]
    %v2460 = vld [vmem:[%s2449 + $0x50] sm:$0xff]
    %v2461 = vld [vmem:[%s2449 + $0x58] sm:$0xff]
    %v2462 = vld [vmem:[%s2449 + $0x60] sm:$0xff]
    %v2463 = vld [vmem:[%s2449 + $0x68] sm:$0xff]
    %v2464 = vld [vmem:[%s2449 + $0x70] sm:$0xff]
    %v2465 = vld [vmem:[%s2449 + $0x78] sm:$0xff]
    %v2466 = vld [vmem:[%s2449 + $0x80] sm:$0xff]
    %v2467 = vld [vmem:[%s2449 + $0x88] sm:$0xff]
    %v2469 = vsel %vm273, %v2447, 0
    %v2472 = vsel %vm273, %v2448, 0
    %2474 = vmatprep.subr.mxu0 %v2451
    %2475 = vmatpush1.msra.mxu0 %v2450
    %2476 = vmatprep.subr.mxu0 %v2454
    %2477 = vmatpush1.msra.mxu0 %v2453
    %2478 = vmatprep.subr.mxu0 %v2457
    %2479 = vmatpush1.msra.mxu0 %v2456
    %2480 = vmatprep.subr.mxu0 %v2460
    %2481 = vmatpush1.msra.mxu0 %v2459
    %2482 = vmatprep.subr.mxu0 %v2463
    %2483 = vmatpush1.msra.mxu0 %v2462
    %2484 = vmatprep.subr.mxu0 %v2466
    %2485 = vmatpush1.msra.mxu0 %v2465
    %2486 = vmatprep.subr.mxu0 0.0
    %2487 = vmatpush1.msra.mxu0 0.0
    %2488 = vmatprep.subr.mxu0 0.0
    %2489 = vmatpush1.msra.mxu0 0.0
    %2490 = vmatprep.subr.mxu0 0.0
    %2491 = vmatpush1.msra.mxu0 0.0
    %2492 = vmatprep.subr.mxu0 0.0
    %2493 = vmatpush1.msra.mxu0 0.0
    %2494 = vmatprep.subr.mxu0 0.0
    %2495 = vmatpush1.msra.mxu0 0.0
    %2496 = vmatprep.subr.mxu0 0.0
    %2497 = vmatpush1.msra.mxu0 0.0
    %2498 = vmatprep.subr.mxu0 0.0
    %2499 = vmatpush1.msra.mxu0 0.0
    %2500 = vmatprep.subr.mxu0 0.0
    %2501 = vmatpush1.msra.mxu0 0.0
    %2502 = vmatprep.subr.mxu0 0.0
    %2503 = vmatpush1.msra.mxu0 0.0
    %2504 = vmatprep.subr.mxu0 0.0
    %2505 = vmatpush1.msra.mxu0 0.0
    %2506 = vmatprep.subr.mxu0 0.0
    %2507 = vmatpush1.msra.mxu0 0.0
    %2508 = vmatprep.subr.mxu0 0.0
    %2509 = vmatpush1.msra.mxu0 0.0
    %2510 = vmatprep.subr.mxu0 0.0
    %2511 = vmatpush1.msra.mxu0 0.0
    %2512 = vmatprep.subr.mxu0 0.0
    %2513 = vmatpush1.msra.mxu0 0.0
    %2514 = vmatprep.subr.mxu0 0.0
    %2515 = vmatpush1.msra.mxu0 0.0
    %2516 = vmatprep.subr.mxu0 0.0
    %2517 = vmatpush1.msra.mxu0 0.0
    %2518 = vmatprep.subr.mxu0 0.0
    %2519 = vmatpush1.msra.mxu0 0.0
    %2520 = vmatprep.subr.mxu0 0.0
    %2521 = vmatpush1.msra.mxu0 0.0
    %2522 = vmatprep.subr.mxu0 0.0
    %2523 = vmatpush1.msra.mxu0 0.0
    %2524 = vmatprep.subr.mxu0 0.0
    %2525 = vmatpush1.msra.mxu0 0.0
    %2526 = vmatprep.subr.mxu0 0.0
    %2527 = vmatpush1.msra.mxu0 0.0
    %2528 = vmatprep.subr.mxu0 0.0
    %2529 = vmatpush1.msra.mxu0 0.0
    %2530 = vmatprep.subr.mxu0 0.0
    %2531 = vmatpush1.msra.mxu0 0.0
    %2532 = vmatprep.subr.mxu0 0.0
    %2533 = vmatpush1.msra.mxu0 0.0
    %2534 = vmatprep.subr.mxu0 0.0
    %2535 = vmatpush1.msra.mxu0 0.0
    %2536 = vmatprep.subr.mxu0 0.0
    %2537 = vmatpush1.msra.mxu0 0.0
    %2538 = vmatprep.mubr.f32.mxu0 0.0
    %2539 = vmatmul.mubr.f32.gmra.mrb[0].mxu0 %v2469
    %v2540 = vpop.f32.mrb[0].mxu0
    %v2541 = vadd.f32 0.0, %v2540
    %v2542 = vpop.f32.mrb[0].mxu0
    %v2543 = vadd.f32 0.0, %v2542
    %2544 = vmatprep.mubr.f32.mxu0 0.0
    %2545 = vmatmul.mubr.f32.gmra.mrb[0].mxu0 %v2472
    %v2546 = vpop.f32.mrb[0].mxu0
    %v2547 = vadd.f32 0.0, %v2546
    %v2548 = vpop.f32.mrb[0].mxu0
    %v2549 = vadd.f32 0.0, %v2548
    %2550 = vdwg.mxu0
    %2551 = vmatprep.subr.mxu0 0.0
    %2552 = vmatpush1.msra.mxu0 %v2452
    %2553 = vmatprep.subr.mxu0 0.0
    %2554 = vmatpush1.msra.mxu0 %v2455
    %2555 = vmatprep.subr.mxu0 0.0
    %2556 = vmatpush1.msra.mxu0 %v2458
    %2557 = vmatprep.subr.mxu0 0.0
    %2558 = vmatpush1.msra.mxu0 %v2461
    %2559 = vmatprep.subr.mxu0 0.0
    %2560 = vmatpush1.msra.mxu0 %v2464
    %2561 = vmatprep.subr.mxu0 0.0
    %2562 = vmatpush1.msra.mxu0 %v2467
    %2563 = vmatprep.subr.mxu0 0.0
    %2564 = vmatpush1.msra.mxu0 0.0
    %2565 = vmatprep.subr.mxu0 0.0
    %2566 = vmatpush1.msra.mxu0 0.0
    %2567 = vmatprep.subr.mxu0 0.0
    %2568 = vmatpush1.msra.mxu0 0.0
    %2569 = vmatprep.subr.mxu0 0.0
    %2570 = vmatpush1.msra.mxu0 0.0
    %2571 = vmatprep.subr.mxu0 0.0
    %2572 = vmatpush1.msra.mxu0 0.0
    %2573 = vmatprep.subr.mxu0 0.0
    %2574 = vmatpush1.msra.mxu0 0.0
    %2575 = vmatprep.subr.mxu0 0.0
    %2576 = vmatpush1.msra.mxu0 0.0
    %2577 = vmatprep.subr.mxu0 0.0
    %2578 = vmatpush1.msra.mxu0 0.0
    %2579 = vmatprep.subr.mxu0 0.0
    %2580 = vmatpush1.msra.mxu0 0.0
    %2581 = vmatprep.subr.mxu0 0.0
    %2582 = vmatpush1.msra.mxu0 0.0
    %2583 = vmatprep.subr.mxu0 0.0
    %2584 = vmatpush1.msra.mxu0 0.0
    %2585 = vmatprep.subr.mxu0 0.0
    %2586 = vmatpush1.msra.mxu0 0.0
    %2587 = vmatprep.subr.mxu0 0.0
    %2588 = vmatpush1.msra.mxu0 0.0
    %2589 = vmatprep.subr.mxu0 0.0
    %2590 = vmatpush1.msra.mxu0 0.0
    %2591 = vmatprep.subr.mxu0 0.0
    %2592 = vmatpush1.msra.mxu0 0.0
    %2593 = vmatprep.subr.mxu0 0.0
    %2594 = vmatpush1.msra.mxu0 0.0
    %2595 = vmatprep.subr.mxu0 0.0
    %2596 = vmatpush1.msra.mxu0 0.0
    %2597 = vmatprep.subr.mxu0 0.0
    %2598 = vmatpush1.msra.mxu0 0.0
    %2599 = vmatprep.subr.mxu0 0.0
    %2600 = vmatpush1.msra.mxu0 0.0
    %2601 = vmatprep.subr.mxu0 0.0
    %2602 = vmatpush1.msra.mxu0 0.0
    %2603 = vmatprep.subr.mxu0 0.0
    %2604 = vmatpush1.msra.mxu0 0.0
    %2605 = vmatprep.subr.mxu0 0.0
    %2606 = vmatpush1.msra.mxu0 0.0
    %2607 = vmatprep.subr.mxu0 0.0
    %2608 = vmatpush1.msra.mxu0 0.0
    %2609 = vmatprep.subr.mxu0 0.0
    %2610 = vmatpush1.msra.mxu0 0.0
    %2611 = vmatprep.subr.mxu0 0.0
    %2612 = vmatpush1.msra.mxu0 0.0
    %2613 = vmatprep.subr.mxu0 0.0
    %2614 = vmatpush1.msra.mxu0 0.0
    %2615 = vmatprep.mubr.f32.mxu0 0.0
    %2616 = vmatmul.mubr.f32.gmra.mrb[0].mxu0 %v2469
    %v2617 = vpop.f32.mrb[0].mxu0
    %v2618 = vadd.f32 0.0, %v2617
    %v2619 = vpop.f32.mrb[0].mxu0
    %2620 = vmatprep.mubr.f32.mxu0 0.0
    %2621 = vmatmul.mubr.f32.gmra.mrb[0].mxu0 %v2472
    %v2622 = vpop.f32.mrb[0].mxu0
    %v2623 = vadd.f32 0.0, %v2622
    %v2624 = vpop.f32.mrb[0].mxu0
    %2625 = vdwg.mxu0
    %v2628 = vcombine.high %v2543, %v2543
    %v2630 = vunpack.c.l.s4 1966171168
    %v2631 = vunpack.c.0.s8 %v2630
    %v2632 = vlaneseq
    %v2633 = vshrl.u32 %v2632, 7
    %v2634 = vsub.s32 %v2631, %v2633
    %v2635 = vrot.slane %v2543, %v2634
    %v2637 = vunpack.c.l.s4 1966171168
    %v2638 = vunpack.c.0.s8 %v2637
    %v2639 = vlaneseq
    %v2640 = vshrl.u32 %v2639, 7
    %v2641 = vsub.s32 %v2638, %v2640
    %v2642 = vrot.slane %v2628, %v2641
    %v2643 = vcombine.high %v2635, %v2635
    %v2644 = vcombine.high %v2642, %v2642
    %v2646 = vunpack.c.l.s4 1966171168
    %v2647 = vunpack.c.0.s8 %v2646
    %v2648 = vlaneseq
    %v2649 = vshrl.u32 %v2648, 7
    %v2650 = vsub.s32 %v2647, %v2649
    %v2651 = vrot.slane %v2635, %v2650
    %v2653 = vunpack.c.l.s4 1966171168
    %v2654 = vunpack.c.0.s8 %v2653
    %v2655 = vlaneseq
    %v2656 = vshrl.u32 %v2655, 7
    %v2657 = vsub.s32 %v2654, %v2656
    %v2658 = vrot.slane %v2642, %v2657
    %v2660 = vunpack.c.l.s4 1966171168
    %v2661 = vunpack.c.0.s8 %v2660
    %v2662 = vlaneseq
    %v2663 = vshrl.u32 %v2662, 7
    %v2664 = vsub.s32 %v2661, %v2663
    %v2665 = vrot.slane %v2643, %v2664
    %v2667 = vunpack.c.l.s4 1966171168
    %v2668 = vunpack.c.0.s8 %v2667
    %v2669 = vlaneseq
    %v2670 = vshrl.u32 %v2669, 7
    %v2671 = vsub.s32 %v2668, %v2670
    %v2672 = vrot.slane %v2644, %v2671
    %v2673 = vcombine.high %v2651, %v2651
    %v2674 = vcombine.high %v2658, %v2658
    %v2675 = vcombine.high %v2665, %v2665
    %v2676 = vcombine.high %v2672, %v2672
    %v2678 = vunpack.c.l.s4 1966171168
    %v2679 = vunpack.c.0.s8 %v2678
    %v2680 = vlaneseq
    %v2681 = vshrl.u32 %v2680, 7
    %v2682 = vsub.s32 %v2679, %v2681
    %v2683 = vrot.slane %v2549, %v2682
    %v2684 = vcombine.high %v2683, %v2683
    %v2686 = vunpack.c.l.s4 1966171168
    %v2687 = vunpack.c.0.s8 %v2686
    %v2688 = vlaneseq
    %v2689 = vshrl.u32 %v2688, 7
    %v2690 = vsub.s32 %v2687, %v2689
    %v2691 = vrot.slane %v2683, %v2690
    %v2693 = vunpack.c.l.s4 1966171168
    %v2694 = vunpack.c.0.s8 %v2693
    %v2695 = vlaneseq
    %v2696 = vshrl.u32 %v2695, 7
    %v2697 = vsub.s32 %v2694, %v2696
    %v2698 = vrot.slane %v2684, %v2697
    %v2699 = vlaneseq
    %v2700 = vshrl.u32 %v2699, 7
    %v2701 = vsub.s32 0, %v2700
    %v2702 = vrot.slane %v2651, %v2701
    %v2703 = vlaneseq
    %v2704 = vshrl.u32 %v2703, 7
    %v2705 = vsub.s32 0, %v2704
    %v2706 = vrot.slane %v2665, %v2705
    %v2707 = vlaneseq
    %v2708 = vshrl.u32 %v2707, 7
    %v2709 = vsub.s32 0, %v2708
    %v2710 = vrot.slane %v2673, %v2709
    %v2711 = vlaneseq
    %v2712 = vshrl.u32 %v2711, 7
    %v2713 = vsub.s32 0, %v2712
    %v2714 = vrot.slane %v2675, %v2713
    %v2715 = vlaneseq
    %v2716 = vshrl.u32 %v2715, 7
    %v2717 = vsub.s32 0, %v2716
    %v2718 = vrot.slane %v2658, %v2717
    %v2719 = vlaneseq
    %v2720 = vshrl.u32 %v2719, 7
    %v2721 = vsub.s32 0, %v2720
    %v2722 = vrot.slane %v2672, %v2721
    %v2723 = vlaneseq
    %v2724 = vshrl.u32 %v2723, 7
    %v2725 = vsub.s32 0, %v2724
    %v2726 = vrot.slane %v2674, %v2725
    %v2727 = vlaneseq
    %v2728 = vshrl.u32 %v2727, 7
    %v2729 = vsub.s32 0, %v2728
    %v2730 = vrot.slane %v2676, %v2729
    %v2731 = vlaneseq
    %v2732 = vshrl.u32 %v2731, 7
    %v2733 = vsub.s32 0, %v2732
    %v2734 = vrot.slane %v2691, %v2733
    %v2735 = vlaneseq
    %v2736 = vshrl.u32 %v2735, 7
    %v2737 = vsub.s32 0, %v2736
    %v2738 = vrot.slane %v2698, %v2737
    %v2749 = vadd.f32 %v2702, %v2618
    %v2750 = vadd.f32 %v2702, %v2623
    %v2751 = vadd.f32 %v2706, %v2618
    %v2752 = vadd.f32 %v2706, %v2623
    %v2753 = vadd.f32 %v2710, %v2618
    %v2754 = vadd.f32 %v2710, %v2623
    %v2755 = vadd.f32 %v2714, %v2618
    %v2756 = vadd.f32 %v2714, %v2623
    %v2757 = vadd.f32 %v2718, %v2618
    %v2758 = vadd.f32 %v2718, %v2623
    %v2759 = vadd.f32 %v2722, %v2618
    %v2760 = vadd.f32 %v2722, %v2623
    %v2761 = vadd.f32 %v2726, %v2618
    %v2762 = vadd.f32 %v2726, %v2623
    %v2763 = vadd.f32 %v2730, %v2618
    %v2764 = vadd.f32 %v2730, %v2623
    %v2765 = vadd.f32 %v2734, %v2618
    %v2766 = vadd.f32 %v2734, %v2623
    %v2767 = vadd.f32 %v2738, %v2618
    %v2768 = vadd.f32 %v2738, %v2623
    %vm2769 = vcmp.gt.f32.partialorder %v2749, 0.0
    %vm2770 = vcmp.gt.f32.partialorder %v2750, 0.0
    %vm2771 = vcmp.gt.f32.partialorder %v2751, 0.0
    %vm2772 = vcmp.gt.f32.partialorder %v2752, 0.0
    %vm2773 = vcmp.gt.f32.partialorder %v2753, 0.0
    %vm2774 = vcmp.gt.f32.partialorder %v2754, 0.0
    %vm2775 = vcmp.gt.f32.partialorder %v2755, 0.0
    %vm2776 = vcmp.gt.f32.partialorder %v2756, 0.0
    %vm2777 = vcmp.gt.f32.partialorder %v2757, 0.0
    %vm2778 = vcmp.gt.f32.partialorder %v2758, 0.0
    %vm2779 = vcmp.gt.f32.partialorder %v2759, 0.0
    %vm2780 = vcmp.gt.f32.partialorder %v2760, 0.0
    %vm2781 = vcmp.gt.f32.partialorder %v2761, 0.0
    %vm2782 = vcmp.gt.f32.partialorder %v2762, 0.0
    %vm2783 = vcmp.gt.f32.partialorder %v2763, 0.0
    %vm2784 = vcmp.gt.f32.partialorder %v2764, 0.0
    %vm2785 = vcmp.gt.f32.partialorder %v2765, 0.0
    %vm2786 = vcmp.gt.f32.partialorder %v2766, 0.0
    %vm2787 = vcmp.gt.f32.partialorder %v2767, 0.0
    %vm2788 = vcmp.gt.f32.partialorder %v2768, 0.0
    %v2789 = vmul.f32 %v2749, 0.2
    %v2790 = vmul.f32 %v2750, 0.2
    %v2791 = vmul.f32 %v2751, 0.2
    %v2792 = vmul.f32 %v2752, 0.2
    %v2793 = vmul.f32 %v2753, 0.2
    %v2794 = vmul.f32 %v2754, 0.2
    %v2795 = vmul.f32 %v2755, 0.2
    %v2796 = vmul.f32 %v2756, 0.2
    %v2797 = vmul.f32 %v2757, 0.2
    %v2798 = vmul.f32 %v2758, 0.2
    %v2799 = vmul.f32 %v2759, 0.2
    %v2800 = vmul.f32 %v2760, 0.2
    %v2801 = vmul.f32 %v2761, 0.2
    %v2802 = vmul.f32 %v2762, 0.2
    %v2803 = vmul.f32 %v2763, 0.2
    %v2804 = vmul.f32 %v2764, 0.2
    %v2805 = vmul.f32 %v2765, 0.2
    %v2806 = vmul.f32 %v2766, 0.2
    %v2807 = vmul.f32 %v2767, 0.2
    %v2808 = vmul.f32 %v2768, 0.2
    %v2809 = vsel %vm2769, %v2749, %v2789
    %v2810 = vsel %vm2770, %v2750, %v2790
    %v2811 = vsel %vm2771, %v2751, %v2791
    %v2812 = vsel %vm2772, %v2752, %v2792
    %v2813 = vsel %vm2773, %v2753, %v2793
    %v2814 = vsel %vm2774, %v2754, %v2794
    %v2815 = vsel %vm2775, %v2755, %v2795
    %v2816 = vsel %vm2776, %v2756, %v2796
    %v2817 = vsel %vm2777, %v2757, %v2797
    %v2818 = vsel %vm2778, %v2758, %v2798
    %v2819 = vsel %vm2779, %v2759, %v2799
    %v2820 = vsel %vm2780, %v2760, %v2800
    %v2821 = vsel %vm2781, %v2761, %v2801
    %v2822 = vsel %vm2782, %v2762, %v2802
    %v2823 = vsel %vm2783, %v2763, %v2803
    %v2824 = vsel %vm2784, %v2764, %v2804
    %v2825 = vsel %vm2785, %v2765, %v2805
    %v2826 = vsel %vm2786, %v2766, %v2806
    %v2827 = vsel %vm2787, %v2767, %v2807
    %v2828 = vsel %vm2788, %v2768, %v2808
    %v2829 = vsel %vm273, %v2809, -inf
    %v2830 = vsel %vm273, %v2811, -inf
    %v2831 = vsel %vm273, %v2813, -inf
    %v2832 = vmax.f32 %v2829, %v2831
    %v2833 = vsel %vm273, %v2815, -inf
    %v2834 = vmax.f32 %v2830, %v2833
    %v2835 = vsel %vm273, %v2817, -inf
    %v2836 = vmax.f32 %v2832, %v2835
    %v2837 = vsel %vm273, %v2819, -inf
    %v2838 = vmax.f32 %v2834, %v2837
    %v2839 = vsel %vm273, %v2821, -inf
    %v2840 = vmax.f32 %v2836, %v2839
    %v2841 = vsel %vm273, %v2823, -inf
    %v2842 = vmax.f32 %v2838, %v2841
    %v2843 = vsel %vm273, %v2825, -inf
    %v2844 = vmax.f32 %v2840, %v2843
    %v2845 = vsel %vm273, %v2827, -inf
    %v2846 = vmax.f32 %v2842, %v2845
    %v2847 = vmax.f32 %v2844, %v2846
    %v2848 = vsel %vm654, %v2810, -inf
    %v2849 = vsel %vm654, %v2812, -inf
    %v2850 = vsel %vm654, %v2814, -inf
    %v2851 = vmax.f32 %v2848, %v2850
    %v2852 = vsel %vm654, %v2816, -inf
    %v2853 = vmax.f32 %v2849, %v2852
    %v2854 = vsel %vm654, %v2818, -inf
    %v2855 = vmax.f32 %v2851, %v2854
    %v2856 = vsel %vm654, %v2820, -inf
    %v2857 = vmax.f32 %v2853, %v2856
    %v2858 = vsel %vm654, %v2822, -inf
    %v2859 = vmax.f32 %v2855, %v2858
    %v2860 = vsel %vm654, %v2824, -inf
    %v2861 = vmax.f32 %v2857, %v2860
    %v2862 = vsel %vm654, %v2826, -inf
    %v2863 = vmax.f32 %v2859, %v2862
    %v2864 = vsel %vm654, %v2828, -inf
    %v2865 = vmax.f32 %v2861, %v2864
    %v2866 = vmax.f32 %v2863, %v2865
    %v2867 = vsub.f32 %v2809, %v2847
    %v2868 = vsub.f32 %v2810, %v2866
    %v2869 = vsub.f32 %v2811, %v2847
    %v2870 = vsub.f32 %v2812, %v2866
    %v2871 = vsub.f32 %v2813, %v2847
    %v2872 = vsub.f32 %v2814, %v2866
    %v2873 = vsub.f32 %v2815, %v2847
    %v2874 = vsub.f32 %v2816, %v2866
    %v2875 = vsub.f32 %v2817, %v2847
    %v2876 = vsub.f32 %v2818, %v2866
    %v2877 = vsub.f32 %v2819, %v2847
    %v2878 = vsub.f32 %v2820, %v2866
    %v2879 = vsub.f32 %v2821, %v2847
    %v2880 = vsub.f32 %v2822, %v2866
    %v2881 = vsub.f32 %v2823, %v2847
    %v2882 = vsub.f32 %v2824, %v2866
    %v2883 = vsub.f32 %v2825, %v2847
    %v2884 = vsub.f32 %v2826, %v2866
    %v2885 = vsub.f32 %v2827, %v2847
    %v2886 = vsub.f32 %v2828, %v2866
    %v2887 = vmul.f32 %v2867, 1.442695
    %v2888 = vpow.pop %v2887
    %v2889 = vmul.f32 %v2868, 1.442695
    %v2890 = vpow.pop %v2889
    %v2891 = vmul.f32 %v2869, 1.442695
    %v2892 = vpow.pop %v2891
    %v2893 = vmul.f32 %v2870, 1.442695
    %v2894 = vpow.pop %v2893
    %v2895 = vmul.f32 %v2871, 1.442695
    %v2896 = vpow.pop %v2895
    %v2897 = vmul.f32 %v2872, 1.442695
    %v2898 = vpow.pop %v2897
    %v2899 = vmul.f32 %v2873, 1.442695
    %v2900 = vpow.pop %v2899
    %v2901 = vmul.f32 %v2874, 1.442695
    %v2902 = vpow.pop %v2901
    %v2903 = vmul.f32 %v2875, 1.442695
    %v2904 = vpow.pop %v2903
    %v2905 = vmul.f32 %v2876, 1.442695
    %v2906 = vpow.pop %v2905
    %v2907 = vmul.f32 %v2877, 1.442695
    %v2908 = vpow.pop %v2907
    %v2909 = vmul.f32 %v2878, 1.442695
    %v2910 = vpow.pop %v2909
    %v2911 = vmul.f32 %v2879, 1.442695
    %v2912 = vpow.pop %v2911
    %v2913 = vmul.f32 %v2880, 1.442695
    %v2914 = vpow.pop %v2913
    %v2915 = vmul.f32 %v2881, 1.442695
    %v2916 = vpow.pop %v2915
    %v2917 = vmul.f32 %v2882, 1.442695
    %v2918 = vpow.pop %v2917
    %v2919 = vmul.f32 %v2883, 1.442695
    %v2920 = vpow.pop %v2919
    %v2921 = vmul.f32 %v2884, 1.442695
    %v2922 = vpow.pop %v2921
    %v2923 = vmul.f32 %v2885, 1.442695
    %v2924 = vpow.pop %v2923
    %v2925 = vmul.f32 %v2886, 1.442695
    %v2926 = vpow.pop %v2925
    %v2927 = vmul.f32 %v235, %v2888
    %v2928 = vmul.f32 %v236, %v2890
    %v2929 = vmul.f32 %v237, %v2892
    %v2930 = vmul.f32 %v238, %v2894
    %v2931 = vmul.f32 %v239, %v2896
    %v2932 = vmul.f32 %v240, %v2898
    %v2933 = vmul.f32 %v241, %v2900
    %v2934 = vmul.f32 %v242, %v2902
    %v2935 = vmul.f32 %v243, %v2904
    %v2936 = vmul.f32 %v244, %v2906
    %v2937 = vmul.f32 %v245, %v2908
    %v2938 = vmul.f32 %v246, %v2910
    %v2939 = vmul.f32 %v247, %v2912
    %v2940 = vmul.f32 %v248, %v2914
    %v2941 = vmul.f32 %v249, %v2916
    %v2942 = vmul.f32 %v250, %v2918
    %v2943 = vmul.f32 %v251, %v2920
    %v2944 = vmul.f32 %v252, %v2922
    %v2945 = vmul.f32 %v253, %v2924
    %v2946 = vmul.f32 %v254, %v2926
    %v2947 = vsel %vm273, %v2927, 0.0
    %v2948 = vsel %vm273, %v2929, 0.0
    %v2949 = vadd.f32 %v2947, %v2948
    %v2950 = vsel %vm273, %v2931, 0.0
    %v2951 = vadd.f32 %v2949, %v2950
    %v2952 = vsel %vm273, %v2933, 0.0
    %v2953 = vadd.f32 %v2951, %v2952
    %v2954 = vsel %vm273, %v2935, 0.0
    %v2955 = vadd.f32 %v2953, %v2954
    %v2956 = vsel %vm273, %v2937, 0.0
    %v2957 = vadd.f32 %v2955, %v2956
    %v2958 = vsel %vm273, %v2939, 0.0
    %v2959 = vadd.f32 %v2957, %v2958
    %v2960 = vsel %vm273, %v2941, 0.0
    %v2961 = vadd.f32 %v2959, %v2960
    %v2962 = vsel %vm273, %v2943, 0.0
    %v2963 = vadd.f32 %v2961, %v2962
    %v2964 = vsel %vm273, %v2945, 0.0
    %v2965 = vadd.f32 %v2963, %v2964
    %v2966 = vsel %vm654, %v2928, 0.0
    %v2967 = vsel %vm654, %v2930, 0.0
    %v2968 = vadd.f32 %v2966, %v2967
    %v2969 = vsel %vm654, %v2932, 0.0
    %v2970 = vadd.f32 %v2968, %v2969
    %v2971 = vsel %vm654, %v2934, 0.0
    %v2972 = vadd.f32 %v2970, %v2971
    %v2973 = vsel %vm654, %v2936, 0.0
    %v2974 = vadd.f32 %v2972, %v2973
    %v2975 = vsel %vm654, %v2938, 0.0
    %v2976 = vadd.f32 %v2974, %v2975
    %v2977 = vsel %vm654, %v2940, 0.0
    %v2978 = vadd.f32 %v2976, %v2977
    %v2979 = vsel %vm654, %v2942, 0.0
    %v2980 = vadd.f32 %v2978, %v2979
    %v2981 = vsel %vm654, %v2944, 0.0
    %v2982 = vadd.f32 %v2980, %v2981
    %v2983 = vsel %vm654, %v2946, 0.0
    %v2984 = vadd.f32 %v2982, %v2983
    %v2985 = vadd.f32 %v2965, 1e-16
    %v2986 = vadd.f32 %v2984, 1e-16
    %v2989 = vcombine.high %v2541, %v2541
    %v2991 = vunpack.c.l.s4 1966171168
    %v2992 = vunpack.c.0.s8 %v2991
    %v2993 = vlaneseq
    %v2994 = vshrl.u32 %v2993, 7
    %v2995 = vsub.s32 %v2992, %v2994
    %v2996 = vrot.slane %v2541, %v2995
    %v2998 = vunpack.c.l.s4 1966171168
    %v2999 = vunpack.c.0.s8 %v2998
    %v3000 = vlaneseq
    %v3001 = vshrl.u32 %v3000, 7
    %v3002 = vsub.s32 %v2999, %v3001
    %v3003 = vrot.slane %v2989, %v3002
    %v3004 = vcombine.high %v2996, %v2996
    %v3005 = vcombine.high %v3003, %v3003
    %v3007 = vunpack.c.l.s4 1966171168
    %v3008 = vunpack.c.0.s8 %v3007
    %v3009 = vlaneseq
    %v3010 = vshrl.u32 %v3009, 7
    %v3011 = vsub.s32 %v3008, %v3010
    %v3012 = vrot.slane %v2996, %v3011
    %v3014 = vunpack.c.l.s4 1966171168
    %v3015 = vunpack.c.0.s8 %v3014
    %v3016 = vlaneseq
    %v3017 = vshrl.u32 %v3016, 7
    %v3018 = vsub.s32 %v3015, %v3017
    %v3019 = vrot.slane %v3003, %v3018
    %v3021 = vunpack.c.l.s4 1966171168
    %v3022 = vunpack.c.0.s8 %v3021
    %v3023 = vlaneseq
    %v3024 = vshrl.u32 %v3023, 7
    %v3025 = vsub.s32 %v3022, %v3024
    %v3026 = vrot.slane %v3004, %v3025
    %v3028 = vunpack.c.l.s4 1966171168
    %v3029 = vunpack.c.0.s8 %v3028
    %v3030 = vlaneseq
    %v3031 = vshrl.u32 %v3030, 7
    %v3032 = vsub.s32 %v3029, %v3031
    %v3033 = vrot.slane %v3005, %v3032
    %v3034 = vcombine.high %v3012, %v3012
    %v3035 = vcombine.high %v3019, %v3019
    %v3036 = vcombine.high %v3026, %v3026
    %v3037 = vcombine.high %v3033, %v3033
    %v3039 = vunpack.c.l.s4 1966171168
    %v3040 = vunpack.c.0.s8 %v3039
    %v3041 = vlaneseq
    %v3042 = vshrl.u32 %v3041, 7
    %v3043 = vsub.s32 %v3040, %v3042
    %v3044 = vrot.slane %v2547, %v3043
    %v3045 = vcombine.high %v3044, %v3044
    %v3047 = vunpack.c.l.s4 1966171168
    %v3048 = vunpack.c.0.s8 %v3047
    %v3049 = vlaneseq
    %v3050 = vshrl.u32 %v3049, 7
    %v3051 = vsub.s32 %v3048, %v3050
    %v3052 = vrot.slane %v3044, %v3051
    %v3054 = vunpack.c.l.s4 1966171168
    %v3055 = vunpack.c.0.s8 %v3054
    %v3056 = vlaneseq
    %v3057 = vshrl.u32 %v3056, 7
    %v3058 = vsub.s32 %v3055, %v3057
    %v3059 = vrot.slane %v3045, %v3058
    %v3060 = vlaneseq
    %v3061 = vshrl.u32 %v3060, 7
    %v3062 = vsub.s32 0, %v3061
    %v3063 = vrot.slane %v3012, %v3062
    %v3064 = vlaneseq
    %v3065 = vshrl.u32 %v3064, 7
    %v3066 = vsub.s32 0, %v3065
    %v3067 = vrot.slane %v3026, %v3066
    %v3068 = vlaneseq
    %v3069 = vshrl.u32 %v3068, 7
    %v3070 = vsub.s32 0, %v3069
    %v3071 = vrot.slane %v3034, %v3070
    %v3072 = vlaneseq
    %v3073 = vshrl.u32 %v3072, 7
    %v3074 = vsub.s32 0, %v3073
    %v3075 = vrot.slane %v3036, %v3074
    %v3076 = vlaneseq
    %v3077 = vshrl.u32 %v3076, 7
    %v3078 = vsub.s32 0, %v3077
    %v3079 = vrot.slane %v3019, %v3078
    %v3080 = vlaneseq
    %v3081 = vshrl.u32 %v3080, 7
    %v3082 = vsub.s32 0, %v3081
    %v3083 = vrot.slane %v3033, %v3082
    %v3084 = vlaneseq
    %v3085 = vshrl.u32 %v3084, 7
    %v3086 = vsub.s32 0, %v3085
    %v3087 = vrot.slane %v3035, %v3086
    %v3088 = vlaneseq
    %v3089 = vshrl.u32 %v3088, 7
    %v3090 = vsub.s32 0, %v3089
    %v3091 = vrot.slane %v3037, %v3090
    %v3092 = vlaneseq
    %v3093 = vshrl.u32 %v3092, 7
    %v3094 = vsub.s32 0, %v3093
    %v3095 = vrot.slane %v3052, %v3094
    %v3096 = vlaneseq
    %v3097 = vshrl.u32 %v3096, 7
    %v3098 = vsub.s32 0, %v3097
    %v3099 = vrot.slane %v3059, %v3098
    %v3110 = vmul.f32 %v2927, %v3063
    %v3111 = vmul.f32 %v2928, %v3063
    %v3112 = vmul.f32 %v2929, %v3067
    %v3113 = vmul.f32 %v2930, %v3067
    %v3114 = vmul.f32 %v2931, %v3071
    %v3115 = vmul.f32 %v2932, %v3071
    %v3116 = vmul.f32 %v2933, %v3075
    %v3117 = vmul.f32 %v2934, %v3075
    %v3118 = vmul.f32 %v2935, %v3079
    %v3119 = vmul.f32 %v2936, %v3079
    %v3120 = vmul.f32 %v2937, %v3083
    %v3121 = vmul.f32 %v2938, %v3083
    %v3122 = vmul.f32 %v2939, %v3087
    %v3123 = vmul.f32 %v2940, %v3087
    %v3124 = vmul.f32 %v2941, %v3091
    %v3125 = vmul.f32 %v2942, %v3091
    %v3126 = vmul.f32 %v2943, %v3095
    %v3127 = vmul.f32 %v2944, %v3095
    %v3128 = vmul.f32 %v2945, %v3099
    %v3129 = vmul.f32 %v2946, %v3099
    %v3130 = vsel %vm273, %v3110, 0.0
    %v3131 = vsel %vm273, %v3112, 0.0
    %v3132 = vadd.f32 %v3130, %v3131
    %v3133 = vsel %vm273, %v3114, 0.0
    %v3134 = vadd.f32 %v3132, %v3133
    %v3135 = vsel %vm273, %v3116, 0.0
    %v3136 = vadd.f32 %v3134, %v3135
    %v3137 = vsel %vm273, %v3118, 0.0
    %v3138 = vadd.f32 %v3136, %v3137
    %v3139 = vsel %vm273, %v3120, 0.0
    %v3140 = vadd.f32 %v3138, %v3139
    %v3141 = vsel %vm273, %v3122, 0.0
    %v3142 = vadd.f32 %v3140, %v3141
    %v3143 = vsel %vm273, %v3124, 0.0
    %v3144 = vadd.f32 %v3142, %v3143
    %v3145 = vsel %vm273, %v3126, 0.0
    %v3146 = vadd.f32 %v3144, %v3145
    %v3147 = vsel %vm273, %v3128, 0.0
    %v3148 = vadd.f32 %v3146, %v3147
    %v3149 = vsel %vm654, %v3111, 0.0
    %v3150 = vsel %vm654, %v3113, 0.0
    %v3151 = vadd.f32 %v3149, %v3150
    %v3152 = vsel %vm654, %v3115, 0.0
    %v3153 = vadd.f32 %v3151, %v3152
    %v3154 = vsel %vm654, %v3117, 0.0
    %v3155 = vadd.f32 %v3153, %v3154
    %v3156 = vsel %vm654, %v3119, 0.0
    %v3157 = vadd.f32 %v3155, %v3156
    %v3158 = vsel %vm654, %v3121, 0.0
    %v3159 = vadd.f32 %v3157, %v3158
    %v3160 = vsel %vm654, %v3123, 0.0
    %v3161 = vadd.f32 %v3159, %v3160
    %v3162 = vsel %vm654, %v3125, 0.0
    %v3163 = vadd.f32 %v3161, %v3162
    %v3164 = vsel %vm654, %v3127, 0.0
    %v3165 = vadd.f32 %v3163, %v3164
    %v3166 = vsel %vm654, %v3129, 0.0
    %v3167 = vadd.f32 %v3165, %v3166
    %v3168 = vrcp.pop %v2985
    %v3169 = vrcp.pop %v2986
    %v3170 = vmul.f32 %v3148, %v3168
    %v3171 = vmul.f32 %v3167, %v3169
    %vm3172 = vcmp.gt.f32.partialorder %v3170, 0.0
    %vm3173 = vcmp.gt.f32.partialorder %v3171, 0.0
    %v3174 = vmul.f32 %v3170, 0.01
    %v3175 = vmul.f32 %v3171, 0.01
    %v3176 = vsel %vm3172, %v3170, %v3174
    %v3177 = vsel %vm3173, %v3171, %v3175
    %v3178 = vadd.f32 %v3176, %v227
    %v3179 = vadd.f32 %v3177, %v232
    %v3181 = vsel %vm273, %v3178, 0
    %v3184 = vsel %vm273, %v3179, 0
    %3186 = vmatprep.subr.mxu0 0.0
    %3187 = vmatpush1.msra.mxu0 %v57
    %3188 = vmatprep.subr.mxu0 0.0
    %3189 = vmatpush1.msra.mxu0 %v60
    %3190 = vmatprep.subr.mxu0 0.0
    %3191 = vmatpush1.msra.mxu0 %v63
    %3192 = vmatprep.subr.mxu0 0.0
    %3193 = vmatpush1.msra.mxu0 %v65
    %3194 = vmatprep.subr.mxu0 0.0
    %3195 = vmatpush1.msra.mxu0 %v66
    %3196 = vmatprep.subr.mxu0 0.0
    %3197 = vmatpush1.msra.mxu0 %v67
    %3198 = vmatprep.subr.mxu0 0.0
    %3199 = vmatpush1.msra.mxu0 0.0
    %3200 = vmatprep.subr.mxu0 0.0
    %3201 = vmatpush1.msra.mxu0 0.0
    %3202 = vmatprep.subr.mxu0 0.0
    %3203 = vmatpush1.msra.mxu0 0.0
    %3204 = vmatprep.subr.mxu0 0.0
    %3205 = vmatpush1.msra.mxu0 0.0
    %3206 = vmatprep.subr.mxu0 0.0
    %3207 = vmatpush1.msra.mxu0 0.0
    %3208 = vmatprep.subr.mxu0 0.0
    %3209 = vmatpush1.msra.mxu0 0.0
    %3210 = vmatprep.subr.mxu0 0.0
    %3211 = vmatpush1.msra.mxu0 0.0
    %3212 = vmatprep.subr.mxu0 0.0
    %3213 = vmatpush1.msra.mxu0 0.0
    %3214 = vmatprep.subr.mxu0 0.0
    %3215 = vmatpush1.msra.mxu0 0.0
    %3216 = vmatprep.subr.mxu0 0.0
    %3217 = vmatpush1.msra.mxu0 0.0
    %3218 = vmatprep.subr.mxu0 0.0
    %3219 = vmatpush1.msra.mxu0 0.0
    %3220 = vmatprep.subr.mxu0 0.0
    %3221 = vmatpush1.msra.mxu0 0.0
    %3222 = vmatprep.subr.mxu0 0.0
    %3223 = vmatpush1.msra.mxu0 0.0
    %3224 = vmatprep.subr.mxu0 0.0
    %3225 = vmatpush1.msra.mxu0 0.0
    %3226 = vmatprep.subr.mxu0 0.0
    %3227 = vmatpush1.msra.mxu0 0.0
    %3228 = vmatprep.subr.mxu0 0.0
    %3229 = vmatpush1.msra.mxu0 0.0
    %3230 = vmatprep.subr.mxu0 0.0
    %3231 = vmatpush1.msra.mxu0 0.0
    %3232 = vmatprep.subr.mxu0 0.0
    %3233 = vmatpush1.msra.mxu0 0.0
    %3234 = vmatprep.subr.mxu0 0.0
    %3235 = vmatpush1.msra.mxu0 0.0
    %3236 = vmatprep.subr.mxu0 0.0
    %3237 = vmatpush1.msra.mxu0 0.0
    %3238 = vmatprep.subr.mxu0 0.0
    %3239 = vmatpush1.msra.mxu0 0.0
    %3240 = vmatprep.subr.mxu0 0.0
    %3241 = vmatpush1.msra.mxu0 0.0
    %3242 = vmatprep.subr.mxu0 0.0
    %3243 = vmatpush1.msra.mxu0 0.0
    %3244 = vmatprep.subr.mxu0 0.0
    %3245 = vmatpush1.msra.mxu0 0.0
    %3246 = vmatprep.subr.mxu0 0.0
    %3247 = vmatpush1.msra.mxu0 0.0
    %3248 = vmatprep.subr.mxu0 0.0
    %3249 = vmatpush1.msra.mxu0 0.0
    %3250 = vmatprep.mubr.f32.mxu0 0.0
    %3251 = vmatmul.mubr.f32.gmra.mrb[0].mxu0 %v3181
    %v3252 = vpop.f32.mrb[0].mxu0
    %v3253 = vadd.f32 0.0, %v3252
    %v3254 = vpop.f32.mrb[0].mxu0
    %3255 = vmatprep.mubr.f32.mxu0 0.0
    %3256 = vmatmul.mubr.f32.gmra.mrb[0].mxu0 %v3184
    %v3257 = vpop.f32.mrb[0].mxu0
    %v3258 = vadd.f32 0.0, %v3257
    %v3259 = vpop.f32.mrb[0].mxu0
    %3260 = vdwg.mxu0
    %v3261 = vmax.f32 %v3253, 0.0
    %v3262 = vmax.f32 %v3258, 0.0
    %v3264 = vsel %vm70, %v3261, 0
    %v3267 = vsel %vm70, %v3262, 0
    %3269 = vmatprep.subr.mxu0 0.0
    %3270 = vmatpush1.msra.mxu0 %v58
    %3271 = vmatprep.subr.mxu0 0.0
    %3272 = vmatpush1.msra.mxu0 %v61
    %3273 = vmatprep.subr.mxu0 0.0
    %3274 = vmatpush1.msra.mxu0 0.0
    %3275 = vmatprep.subr.mxu0 0.0
    %3276 = vmatpush1.msra.mxu0 0.0
    %3277 = vmatprep.subr.mxu0 0.0
    %3278 = vmatpush1.msra.mxu0 0.0
    %3279 = vmatprep.subr.mxu0 0.0
    %3280 = vmatpush1.msra.mxu0 0.0
    %3281 = vmatprep.subr.mxu0 0.0
    %3282 = vmatpush1.msra.mxu0 0.0
    %3283 = vmatprep.subr.mxu0 0.0
    %3284 = vmatpush1.msra.mxu0 0.0
    %3285 = vmatprep.subr.mxu0 0.0
    %3286 = vmatpush1.msra.mxu0 0.0
    %3287 = vmatprep.subr.mxu0 0.0
    %3288 = vmatpush1.msra.mxu0 0.0
    %3289 = vmatprep.subr.mxu0 0.0
    %3290 = vmatpush1.msra.mxu0 0.0
    %3291 = vmatprep.subr.mxu0 0.0
    %3292 = vmatpush1.msra.mxu0 0.0
    %3293 = vmatprep.subr.mxu0 0.0
    %3294 = vmatpush1.msra.mxu0 0.0
    %3295 = vmatprep.subr.mxu0 0.0
    %3296 = vmatpush1.msra.mxu0 0.0
    %3297 = vmatprep.subr.mxu0 0.0
    %3298 = vmatpush1.msra.mxu0 0.0
    %3299 = vmatprep.subr.mxu0 0.0
    %3300 = vmatpush1.msra.mxu0 0.0
    %3301 = vmatprep.subr.mxu0 0.0
    %3302 = vmatpush1.msra.mxu0 0.0
    %3303 = vmatprep.subr.mxu0 0.0
    %3304 = vmatpush1.msra.mxu0 0.0
    %3305 = vmatprep.subr.mxu0 0.0
    %3306 = vmatpush1.msra.mxu0 0.0
    %3307 = vmatprep.subr.mxu0 0.0
    %3308 = vmatpush1.msra.mxu0 0.0
    %3309 = vmatprep.subr.mxu0 0.0
    %3310 = vmatpush1.msra.mxu0 0.0
    %3311 = vmatprep.subr.mxu0 0.0
    %3312 = vmatpush1.msra.mxu0 0.0
    %3313 = vmatprep.subr.mxu0 0.0
    %3314 = vmatpush1.msra.mxu0 0.0
    %3315 = vmatprep.subr.mxu0 0.0
    %3316 = vmatpush1.msra.mxu0 0.0
    %3317 = vmatprep.subr.mxu0 0.0
    %3318 = vmatpush1.msra.mxu0 0.0
    %3319 = vmatprep.subr.mxu0 0.0
    %3320 = vmatpush1.msra.mxu0 0.0
    %3321 = vmatprep.subr.mxu0 0.0
    %3322 = vmatpush1.msra.mxu0 0.0
    %3323 = vmatprep.subr.mxu0 0.0
    %3324 = vmatpush1.msra.mxu0 0.0
    %3325 = vmatprep.subr.mxu0 0.0
    %3326 = vmatpush1.msra.mxu0 0.0
    %3327 = vmatprep.subr.mxu0 0.0
    %3328 = vmatpush1.msra.mxu0 0.0
    %3329 = vmatprep.subr.mxu0 0.0
    %3330 = vmatpush1.msra.mxu0 0.0
    %3331 = vmatprep.subr.mxu0 0.0
    %3332 = vmatpush1.msra.mxu0 0.0
    %3333 = vmatprep.mubr.f32.mxu0 0.0
    %3334 = vmatmul.mubr.f32.gmra.mrb[0].mxu0 %v3264
    %v3335 = vpop.f32.mrb[0].mxu0
    %v3336 = vadd.f32 0.0, %v3335
    %v3337 = vpop.f32.mrb[0].mxu0
    %3338 = vmatprep.mubr.f32.mxu0 0.0
    %3339 = vmatmul.mubr.f32.gmra.mrb[0].mxu0 %v3267
    %v3340 = vpop.f32.mrb[0].mxu0
    %v3341 = vadd.f32 0.0, %v3340
    %v3342 = vpop.f32.mrb[0].mxu0
    %3343 = vdwg.mxu0
    %vm3344 = vcmask 39936
    %3345 = vst.msk [vmem:[%s3] sm:$0xff] %vm3344, %v3336
    %vm3346 = vcmask 33792
    %3347 = vst.msk [vmem:[%s3 + $0x8] sm:$0x3] %vm3346, %v3341
    // Predicated region
    $region26: #{forward.1} parent=1 // pred_check
      _
    $region27: #{forward.1} parent=1 // pred_check_branch
      %3349 = sbr.rel (0) target = $region29
    $region28: #{forward.1} parent=1 // pred_region
      _
    $region29: #{forward.1} parent=1 // pred_fallthru
      _
    // Predicated region
    $region30: #{forward.1} parent=1 // pred_check
      _
    $region31: #{forward.1} parent=1 // pred_check_branch
      %3351 = sbr.rel (0) target = $region33
    $region32: #{forward.1} parent=1 // pred_region
      _
    $region33: #{forward.1} parent=1 // pred_fallthru
      _
    %3352 = vsyncpa [#allocation3], 1
    %3353 = vsyncpa [#allocation5], 1

</llo_original>
